<compile_context>
chip_gen: v5e
topology: v5e:2x2
jax: 0.10.0
libtpu: 0.0.40
codegen_flags: <defaults>
</compile_context>

<pallas_src>
import itertools

import jax
import jax.numpy as jnp
import numpy as np
from jax.experimental import pallas as pl
from jax.experimental.pallas import tpu as pltpu

# ----------------------------- configuration ---------------------------------
NUM_CLASSES = 4                 # foreground classes
C1 = NUM_CLASSES + 1            # + "no object" class
B, Q, N = 2, 8, 3               # batch, num queries, targets per image
M = B * N                       # total matched boxes (num_boxes; real DETR clamps >= 1)
EOS_COEF = 0.1                  # weight for the "no object" class
# HungarianMatcher default cost weights (DETR): class / bbox-L1 / giou
COST_CLASS, COST_BBOX, COST_GIOU = 1.0, 5.0, 2.0
WEIGHT_DICT = {'loss_ce': 1.0, 'loss_bbox': 5.0, 'loss_giou': 2.0}  # parity with __init__

# all injective assignments target_j -> query (exact Hungarian for small sizes)
_PERMS_NP = np.asarray(list(itertools.permutations(range(Q), N)), dtype=np.int32)  # [P, N]
NUM_PERMS = _PERMS_NP.shape[0]                       # 336
PPAD = ((NUM_PERMS + 127) // 128) * 128              # 384, lane-dense padding

# permutation one-hot tensor: phot[j, q, p] = 1 iff perms[p, j] == q  (padding p >= P is 0)
_phot_np = np.zeros((N, Q, PPAD), np.float32)
for _j in range(N):
    _phot_np[_j, _PERMS_NP[:, _j], np.arange(NUM_PERMS)] = 1.0
_PERM_ONEHOT = jnp.asarray(_phot_np)                 # [N, Q, PPAD], 36 KB VMEM
_PERMS = jnp.asarray(_PERMS_NP)                      # used only by the pure-JAX reference


# ----------------------------- fused Pallas kernel -----------------------------
def criterion_kernel(labels_ref, tboxes_ref, logits_ref, pboxes_ref, phot_ref, out_ref):
    """labels_ref  : SMEM [B, N] int32
       tboxes_ref  : SMEM [B, 4*N] float32 (cxcywh flattened per image)
       logits_ref  : VMEM [B, Q, C1] float32
       pboxes_ref  : VMEM [B, Q, 4] float32 (cxcywh)
       phot_ref    : VMEM [N, Q, PPAD] float32 permutation one-hot
       out_ref     : SMEM [1, 3] -> (loss_ce, loss_bbox, loss_giou)"""
    cls_iota = jax.lax.broadcasted_iota(jnp.int32, (Q, C1), 1)
    p_iota = jax.lax.broadcasted_iota(jnp.int32, (1, PPAD), 1)
    p_iota_f = p_iota.astype(jnp.float32)
    pad_mask = p_iota < NUM_PERMS
    phot = [phot_ref[j] for j in range(N)]            # hoist: each [Q, PPAD]

    ce_num = jnp.float32(0.0)
    ce_den = jnp.float32(0.0)
    l1_sum = jnp.float32(0.0)
    giou_sum = jnp.float32(0.0)

    for b in range(B):                                # B=2, fully unrolled, no grid overhead
        logits = logits_ref[b]                        # [Q, C1]
        pb = pboxes_ref[b]                            # [Q, 4]

        # softmax / log-softmax over classes (shared between matcher and CE)
        mx = jnp.max(logits, axis=-1, keepdims=True)
        ex = jnp.exp(logits - mx)
        sumex = jnp.sum(ex, axis=-1, keepdims=True)
        prob = ex / sumex                             # [Q, C1]
        logp = (logits - mx) - jnp.log(sumex)         # [Q, C1]

        pcx, pcy, pw, ph = pb[:, 0:1], pb[:, 1:2], pb[:, 2:3], pb[:, 3:4]
        px0, py0 = pcx - 0.5 * pw, pcy - 0.5 * ph
        px1, py1 = pcx + 0.5 * pw, pcy + 0.5 * ph
        area_p = (px1 - px0) * (py1 - py0)            # [Q, 1]

        # ---- matcher: total cost per permutation, lane-dense [1, PPAD] ----
        totals = jnp.zeros((1, PPAD), jnp.float32)
        tgt_scalars = []
        for j in range(N):
            lbl = labels_ref[b, j]                    # SMEM scalar reads
            tcx = tboxes_ref[b, 4 * j + 0]
            tcy = tboxes_ref[b, 4 * j + 1]
            tw = tboxes_ref[b, 4 * j + 2]
            th = tboxes_ref[b, 4 * j + 3]
            tgt_scalars.append((lbl, tcx, tcy, tw, th))

            # class cost column: -prob[:, lbl] via VPU one-hot multiply-reduce (no MXU)
            sel = (cls_iota == lbl).astype(jnp.float32)
            cost_class = -jnp.sum(prob * sel, axis=-1, keepdims=True)        # [Q, 1]

            # L1 column in cxcywh space
            cost_bbox = (jnp.abs(pcx - tcx) + jnp.abs(pcy - tcy)
                         + jnp.abs(pw - tw) + jnp.abs(ph - th))              # [Q, 1]

            # GIoU column
            tx0, ty0 = tcx - 0.5 * tw, tcy - 0.5 * th
            tx1, ty1 = tcx + 0.5 * tw, tcy + 0.5 * th
            area_t = (tx1 - tx0) * (ty1 - ty0)
            iw = jnp.maximum(jnp.minimum(px1, tx1) - jnp.maximum(px0, tx0), 0.0)
            ih = jnp.maximum(jnp.minimum(py1, ty1) - jnp.maximum(py0, ty0), 0.0)
            inter = iw * ih
            union = area_p + area_t - inter
            iou = inter / union
            cw = jnp.maximum(px1, tx1) - jnp.minimum(px0, tx0)
            ch = jnp.maximum(py1, ty1) - jnp.minimum(py0, ty0)
            areac = cw * ch
            giou = iou - (areac - union) / areac                             # [Q, 1]

            cost_col = (COST_BBOX * cost_bbox + COST_CLASS * cost_class
                        + COST_GIOU * (-giou))                               # [Q, 1]
            # totals[p] += cost[perms[p, j], j]  (sublane reduce against perm one-hot)
            totals = totals + jnp.sum(phot[j] * cost_col, axis=0, keepdims=True)

        totals = jnp.where(pad_mask, totals, jnp.float32(1e30))
        min_val = jnp.min(totals)
        best_p = jnp.min(jnp.where(totals <= min_val, p_iota_f, jnp.float32(PPAD)))
        best_sel = (p_iota_f == best_p).astype(jnp.float32)                  # one-hot [1, PPAD]

        # ---- matched pairs: box losses + target classes ----
        tc = jnp.full((Q, 1), NUM_CLASSES, jnp.int32)
        for j in range(N):
            lbl, tcx, tcy, tw, th = tgt_scalars[j]
            # one-hot over queries of the matched query for target j: phot[j, :, best_p]
            src_sel = jnp.sum(phot[j] * best_sel, axis=1, keepdims=True)     # [Q, 1]
            tc = jnp.where(src_sel > 0.5, lbl, tc)

            scx = jnp.sum(pcx * src_sel)
            scy = jnp.sum(pcy * src_sel)
            sw = jnp.sum(pw * src_sel)
            sh = jnp.sum(ph * src_sel)
            l1_sum = l1_sum + (jnp.abs(scx - tcx) + jnp.abs(scy - tcy)
                               + jnp.abs(sw - tw) + jnp.abs(sh - th))

            sx0, sy0 = scx - 0.5 * sw, scy - 0.5 * sh
            sx1, sy1 = scx + 0.5 * sw, scy + 0.5 * sh
            tx0, ty0 = tcx - 0.5 * tw, tcy - 0.5 * th
            tx1, ty1 = tcx + 0.5 * tw, tcy + 0.5 * th
            inter = (jnp.maximum(jnp.minimum(sx1, tx1) - jnp.maximum(sx0, tx0), 0.0)
                     * jnp.maximum(jnp.minimum(sy1, ty1) - jnp.maximum(sy0, ty0), 0.0))
            union = (sx1 - sx0) * (sy1 - sy0) + (tx1 - tx0) * (ty1 - ty0) - inter
            iou = inter / union
            areac = ((jnp.maximum(sx1, tx1) - jnp.minimum(sx0, tx0))
                     * (jnp.maximum(sy1, ty1) - jnp.minimum(sy0, ty0)))
            giou_p = iou - (areac - union) / areac
            giou_sum = giou_sum + (1.0 - giou_p)

        # ---- class-weighted cross entropy contribution for this image ----
        onehot_t = (cls_iota == tc).astype(jnp.float32)                      # [Q, C1]
        nll = -jnp.sum(onehot_t * logp, axis=-1, keepdims=True)              # [Q, 1]
        wt = jnp.where(tc == NUM_CLASSES, jnp.float32(EOS_COEF), jnp.float32(1.0))
        ce_num = ce_num + jnp.sum(nll * wt)
        ce_den = ce_den + jnp.sum(wt)

    out_ref[0, 0] = ce_num / ce_den
    out_ref[0, 1] = l1_sum / jnp.float32(M)
    out_ref[0, 2] = giou_sum / jnp.float32(M)


# ----------------------------- forward (SetCriterion) --------------------------
def set_criterion_forward(pred_logits, pred_boxes, tgt_labels, tgt_boxes):
    # NOTE: 'aux_outputs' branch not exercised (synthetic outputs carry no aux layers).
    out = pl.pallas_call(
        criterion_kernel,
        out_shape=jax.ShapeDtypeStruct((1, 3), jnp.float32),
        in_specs=[
            pl.BlockSpec(memory_space=pltpu.MemorySpace.SMEM),   # labels [B, N] int32
            pl.BlockSpec(memory_space=pltpu.MemorySpace.SMEM),   # tgt boxes [B, 4*N] f32
            pl.BlockSpec(memory_space=pltpu.MemorySpace.VMEM),   # pred_logits
            pl.BlockSpec(memory_space=pltpu.MemorySpace.VMEM),   # pred_boxes
            pl.BlockSpec(memory_space=pltpu.MemorySpace.VMEM),   # permutation one-hot
        ],
        out_specs=pl.BlockSpec(memory_space=pltpu.MemorySpace.SMEM),
    )(tgt_labels.astype(jnp.int32),
      tgt_boxes.reshape(B, N * 4),
      pred_logits,
      pred_boxes,
      _PERM_ONEHOT)
    return {'loss_ce': out[0, 0], 'loss_bbox': out[0, 1], 'loss_giou': out[0, 2]}


# ----------------------------- pure-JAX reference (for checking) ---------------
def _ref_losses(pred_logits, pred_boxes, tgt_labels, tgt_boxes):
    def xyxy(b):
        cx, cy, w, h = b[..., 0], b[..., 1], b[..., 2], b[..., 3]
        return jnp.stack([cx - w / 2, cy - h / 2, cx + w / 2, cy + h / 2], -1)

    def giou(a, b):  # elementwise pairs [M,4],[M,4]
        ax0, ay0, ax1, ay1 = a[:, 0], a[:, 1], a[:, 2], a[:, 3]
        bx0, by0, bx1, by1 = b[:, 0], b[:, 1], b[:, 2], b[:, 3]
        inter = (jnp.maximum(jnp.minimum(ax1, bx1) - jnp.maximum(ax0, bx0), 0)
                 * jnp.maximum(jnp.minimum(ay1, by1) - jnp.maximum(ay0, by0), 0))
        union = (ax1 - ax0) * (ay1 - ay0) + (bx1 - bx0) * (by1 - by0) - inter
        iou = inter / union
        areac = ((jnp.maximum(ax1, bx1) - jnp.minimum(ax0, bx0))
                 * (jnp.maximum(ay1, by1) - jnp.minimum(ay0, by0)))
        return iou - (areac - union) / areac

    prob = jax.nn.softmax(pred_logits, -1)                                   # [B,Q,C1]
    cost_class = -jnp.take_along_axis(prob, tgt_labels[:, None, :], axis=2)  # [B,Q,N]
    cost_bbox = jnp.abs(pred_boxes[:, :, None, :] - tgt_boxes[:, None, :, :]).sum(-1)
    pA, tA = xyxy(pred_boxes), xyxy(tgt_boxes)
    cg = jax.vmap(lambda p, t: -jax.vmap(lambda pr: giou(jnp.broadcast_to(pr[None], t.shape), t))(p))(pA, tA)
    cost = COST_BBOX * cost_bbox + COST_CLASS * cost_class + COST_GIOU * cg
    col_ids = jnp.arange(N)
    src_idx = jax.vmap(lambda c: _PERMS[jnp.argmin(c[_PERMS, col_ids[None, :]].sum(-1))])(cost)
    batch_ids = jnp.arange(B)[:, None]

    ew = jnp.ones((C1,)).at[-1].set(EOS_COEF)
    tc = jnp.full((B, Q), NUM_CLASSES, jnp.int32).at[batch_ids, src_idx].set(tgt_labels)
    logp = jax.nn.log_softmax(pred_logits, -1).reshape(-1, C1)
    tcf = tc.reshape(-1)
    nll = -jnp.take_along_axis(logp, tcf[:, None], 1)[:, 0]
    wts = ew[tcf]
    loss_ce = jnp.sum(nll * wts) / jnp.sum(wts)

    sb = pred_boxes[batch_ids, src_idx].reshape(M, 4)
    tb = tgt_boxes.reshape(M, 4)
    loss_bbox = jnp.abs(sb - tb).sum() / M
    loss_giou = (1 - giou(xyxy(sb), xyxy(tb))).sum() / M
    return loss_ce, loss_bbox, loss_giou


# ----------------------------- main --------------------------------------------
if __name__ == "__main__":
    key = jax.random.PRNGKey(0)
    k1, k2, k3, k4 = jax.random.split(key, 4)
    pred_logits = jax.random.normal(k1, (B, Q, C1), jnp.float32)
    pred_boxes = jax.random.uniform(k2, (B, Q, 4), jnp.float32, minval=0.05, maxval=0.95)
    tgt_labels = jax.random.randint(k3, (B, N), 0, NUM_CLASSES, dtype=jnp.int32)
    tgt_boxes = jax.random.uniform(k4, (B, N, 4), jnp.float32, minval=0.05, maxval=0.95)

    losses = jax.jit(set_criterion_forward)(pred_logits, pred_boxes, tgt_labels, tgt_boxes)
    losses = jax.block_until_ready(losses)

    ref_ce, ref_bbox, ref_giou = _ref_losses(pred_logits, pred_boxes, tgt_labels, tgt_boxes)
    np.testing.assert_allclose(np.asarray(losses['loss_ce']), np.asarray(ref_ce), rtol=2e-3, atol=2e-3)
    np.testing.assert_allclose(np.asarray(losses['loss_bbox']), np.asarray(ref_bbox), rtol=2e-3, atol=2e-3)
    np.testing.assert_allclose(np.asarray(losses['loss_giou']), np.asarray(ref_giou), rtol=2e-3, atol=2e-3)
    assert all(bool(np.all(np.isfinite(np.asarray(v)))) for v in losses.values())

    print("KERNEL_OK")
</pallas_src>

<mosaic_0001>
module attributes {stable_mosaic.version = 11 : i64} {
  func.func @criterion_kernel(%arg0: memref<2x3xi32, #tpu.memory_space<smem>>, %arg1: memref<2x12xf32, #tpu.memory_space<smem>>, %arg2: memref<2x8x5xf32, #tpu.memory_space<vmem>>, %arg3: memref<2x8x4xf32, #tpu.memory_space<vmem>>, %arg4: memref<3x8x384xf32, #tpu.memory_space<vmem>>, %arg5: memref<1x3xf32, #tpu.memory_space<smem>>) attributes {dimension_semantics = [], scalar_prefetch = 0 : i64, scratch_operands = 0 : i64, tpu.core_type = #tpu.core_type<tc>} {
    %0 = tpu.iota {dimensions = array<i32: 1>} : vector<8x5xi32>
    %1 = tpu.iota {dimensions = array<i32: 1>} : vector<1x384xi32>
    %2 = arith.sitofp %1 : vector<1x384xi32> to vector<1x384xf32>
    %c336_i32 = arith.constant 336 : i32
    %3 = vector.broadcast %c336_i32 : i32 to vector<1x384xi32>
    %4 = arith.cmpi slt, %1, %3 : vector<1x384xi32>
    %c0 = arith.constant 0 : index
    %c0_0 = arith.constant 0 : index
    %c0_1 = arith.constant 0 : index
    %5 = vector.load %arg4[%c0, %c0_0, %c0_1] : memref<3x8x384xf32, #tpu.memory_space<vmem>>, vector<1x8x384xf32>
    %6 = vector.shape_cast %5 : vector<1x8x384xf32> to vector<8x384xf32>
    %c1 = arith.constant 1 : index
    %c0_2 = arith.constant 0 : index
    %c0_3 = arith.constant 0 : index
    %7 = vector.load %arg4[%c1, %c0_2, %c0_3] : memref<3x8x384xf32, #tpu.memory_space<vmem>>, vector<1x8x384xf32>
    %8 = vector.shape_cast %7 : vector<1x8x384xf32> to vector<8x384xf32>
    %c2 = arith.constant 2 : index
    %c0_4 = arith.constant 0 : index
    %c0_5 = arith.constant 0 : index
    %9 = vector.load %arg4[%c2, %c0_4, %c0_5] : memref<3x8x384xf32, #tpu.memory_space<vmem>>, vector<1x8x384xf32>
    %10 = vector.shape_cast %9 : vector<1x8x384xf32> to vector<8x384xf32>
    %c0_6 = arith.constant 0 : index
    %c0_7 = arith.constant 0 : index
    %c0_8 = arith.constant 0 : index
    %11 = vector.load %arg2[%c0_6, %c0_7, %c0_8] : memref<2x8x5xf32, #tpu.memory_space<vmem>>, vector<1x8x5xf32>
    %12 = vector.shape_cast %11 : vector<1x8x5xf32> to vector<8x5xf32>
    %c0_9 = arith.constant 0 : index
    %c0_10 = arith.constant 0 : index
    %c0_11 = arith.constant 0 : index
    %13 = vector.load %arg3[%c0_9, %c0_10, %c0_11] : memref<2x8x4xf32, #tpu.memory_space<vmem>>, vector<1x8x4xf32>
    %14 = vector.shape_cast %13 : vector<1x8x4xf32> to vector<8x4xf32>
    %cst = arith.constant dense<0xFF800000> : vector<8xf32>
    %15 = vector.multi_reduction <maximumf>, %12, %cst [1] : vector<8x5xf32> to vector<8xf32>
    %16 = vector.shape_cast %15 : vector<8xf32> to vector<8x1xf32>
    %17 = vector.broadcast %16 : vector<8x1xf32> to vector<8x5xf32>
    %18 = arith.subf %12, %17 : vector<8x5xf32>
    %19 = math.exp %18 : vector<8x5xf32>
    %cst_12 = arith.constant dense<0.000000e+00> : vector<8xf32>
    %20 = vector.multi_reduction <add>, %19, %cst_12 [1] : vector<8x5xf32> to vector<8xf32>
    %21 = vector.shape_cast %20 : vector<8xf32> to vector<8x1xf32>
    %22 = vector.broadcast %21 : vector<8x1xf32> to vector<8x5xf32>
    %23 = arith.divf %19, %22 : vector<8x5xf32>
    %24 = vector.broadcast %16 : vector<8x1xf32> to vector<8x5xf32>
    %25 = arith.subf %12, %24 : vector<8x5xf32>
    %26 = math.log %21 : vector<8x1xf32>
    %27 = vector.broadcast %26 : vector<8x1xf32> to vector<8x5xf32>
    %28 = arith.subf %25, %27 : vector<8x5xf32>
    %29 = vector.extract_strided_slice %14 {offsets = [0, 0], sizes = [8, 1], strides = [1, 1]} : vector<8x4xf32> to vector<8x1xf32>
    %30 = vector.extract_strided_slice %14 {offsets = [0, 1], sizes = [8, 1], strides = [1, 1]} : vector<8x4xf32> to vector<8x1xf32>
    %31 = vector.extract_strided_slice %14 {offsets = [0, 2], sizes = [8, 1], strides = [1, 1]} : vector<8x4xf32> to vector<8x1xf32>
    %32 = vector.extract_strided_slice %14 {offsets = [0, 3], sizes = [8, 1], strides = [1, 1]} : vector<8x4xf32> to vector<8x1xf32>
    %cst_13 = arith.constant 5.000000e-01 : f32
    %33 = vector.broadcast %cst_13 : f32 to vector<8x1xf32>
    %34 = arith.mulf %33, %31 : vector<8x1xf32>
    %35 = arith.subf %29, %34 : vector<8x1xf32>
    %cst_14 = arith.constant 5.000000e-01 : f32
    %36 = vector.broadcast %cst_14 : f32 to vector<8x1xf32>
    %37 = arith.mulf %36, %32 : vector<8x1xf32>
    %38 = arith.subf %30, %37 : vector<8x1xf32>
    %cst_15 = arith.constant 5.000000e-01 : f32
    %39 = vector.broadcast %cst_15 : f32 to vector<8x1xf32>
    %40 = arith.mulf %39, %31 : vector<8x1xf32>
    %41 = arith.addf %29, %40 : vector<8x1xf32>
    %cst_16 = arith.constant 5.000000e-01 : f32
    %42 = vector.broadcast %cst_16 : f32 to vector<8x1xf32>
    %43 = arith.mulf %42, %32 : vector<8x1xf32>
    %44 = arith.addf %30, %43 : vector<8x1xf32>
    %45 = arith.subf %41, %35 : vector<8x1xf32>
    %46 = arith.subf %44, %38 : vector<8x1xf32>
    %47 = arith.mulf %45, %46 : vector<8x1xf32>
    %cst_17 = arith.constant 0.000000e+00 : f32
    %48 = vector.broadcast %cst_17 : f32 to vector<1x384xf32>
    %c0_18 = arith.constant 0 : index
    %c0_19 = arith.constant 0 : index
    %49 = memref.load %arg0[%c0_18, %c0_19] : memref<2x3xi32, #tpu.memory_space<smem>>
    %c0_20 = arith.constant 0 : index
    %c0_21 = arith.constant 0 : index
    %50 = memref.load %arg1[%c0_20, %c0_21] : memref<2x12xf32, #tpu.memory_space<smem>>
    %c0_22 = arith.constant 0 : index
    %c1_23 = arith.constant 1 : index
    %51 = memref.load %arg1[%c0_22, %c1_23] : memref<2x12xf32, #tpu.memory_space<smem>>
    %c0_24 = arith.constant 0 : index
    %c2_25 = arith.constant 2 : index
    %52 = memref.load %arg1[%c0_24, %c2_25] : memref<2x12xf32, #tpu.memory_space<smem>>
    %c0_26 = arith.constant 0 : index
    %c3 = arith.constant 3 : index
    %53 = memref.load %arg1[%c0_26, %c3] : memref<2x12xf32, #tpu.memory_space<smem>>
    %54 = vector.broadcast %49 : i32 to vector<8x5xi32>
    %55 = arith.cmpi eq, %0, %54 : vector<8x5xi32>
    %56 = arith.extui %55 : vector<8x5xi1> to vector<8x5xi32>
    %57 = arith.sitofp %56 : vector<8x5xi32> to vector<8x5xf32>
    %58 = arith.mulf %23, %57 : vector<8x5xf32>
    %cst_27 = arith.constant dense<0.000000e+00> : vector<8xf32>
    %59 = vector.multi_reduction <add>, %58, %cst_27 [1] : vector<8x5xf32> to vector<8xf32>
    %60 = vector.shape_cast %59 : vector<8xf32> to vector<8x1xf32>
    %cst_28 = arith.constant 0.000000e+00 : f32
    %61 = vector.broadcast %cst_28 : f32 to vector<8x1xf32>
    %62 = arith.subf %61, %60 : vector<8x1xf32>
    %63 = vector.broadcast %50 : f32 to vector<8x1xf32>
    %64 = arith.subf %29, %63 : vector<8x1xf32>
    %65 = math.absf %64 : vector<8x1xf32>
    %66 = vector.broadcast %51 : f32 to vector<8x1xf32>
    %67 = arith.subf %30, %66 : vector<8x1xf32>
    %68 = math.absf %67 : vector<8x1xf32>
    %69 = arith.addf %65, %68 : vector<8x1xf32>
    %70 = vector.broadcast %52 : f32 to vector<8x1xf32>
    %71 = arith.subf %31, %70 : vector<8x1xf32>
    %72 = math.absf %71 : vector<8x1xf32>
    %73 = arith.addf %69, %72 : vector<8x1xf32>
    %74 = vector.broadcast %53 : f32 to vector<8x1xf32>
    %75 = arith.subf %32, %74 : vector<8x1xf32>
    %76 = math.absf %75 : vector<8x1xf32>
    %77 = arith.addf %73, %76 : vector<8x1xf32>
    %cst_29 = arith.constant 5.000000e-01 : f32
    %78 = arith.mulf %cst_29, %52 : f32
    %79 = arith.subf %50, %78 : f32
    %cst_30 = arith.constant 5.000000e-01 : f32
    %80 = arith.mulf %cst_30, %53 : f32
    %81 = arith.subf %51, %80 : f32
    %cst_31 = arith.constant 5.000000e-01 : f32
    %82 = arith.mulf %cst_31, %52 : f32
    %83 = arith.addf %50, %82 : f32
    %cst_32 = arith.constant 5.000000e-01 : f32
    %84 = arith.mulf %cst_32, %53 : f32
    %85 = arith.addf %51, %84 : f32
    %86 = arith.subf %83, %79 : f32
    %87 = arith.subf %85, %81 : f32
    %88 = arith.mulf %86, %87 : f32
    %89 = vector.broadcast %83 : f32 to vector<8x1xf32>
    %90 = arith.minimumf %41, %89 : vector<8x1xf32>
    %91 = vector.broadcast %79 : f32 to vector<8x1xf32>
    %92 = arith.maximumf %35, %91 : vector<8x1xf32>
    %93 = arith.subf %90, %92 : vector<8x1xf32>
    %cst_33 = arith.constant 0.000000e+00 : f32
    %94 = vector.broadcast %cst_33 : f32 to vector<8x1xf32>
    %95 = arith.maximumf %93, %94 : vector<8x1xf32>
    %96 = vector.broadcast %85 : f32 to vector<8x1xf32>
    %97 = arith.minimumf %44, %96 : vector<8x1xf32>
    %98 = vector.broadcast %81 : f32 to vector<8x1xf32>
    %99 = arith.maximumf %38, %98 : vector<8x1xf32>
    %100 = arith.subf %97, %99 : vector<8x1xf32>
    %cst_34 = arith.constant 0.000000e+00 : f32
    %101 = vector.broadcast %cst_34 : f32 to vector<8x1xf32>
    %102 = arith.maximumf %100, %101 : vector<8x1xf32>
    %103 = arith.mulf %95, %102 : vector<8x1xf32>
    %104 = vector.broadcast %88 : f32 to vector<8x1xf32>
    %105 = arith.addf %47, %104 : vector<8x1xf32>
    %106 = arith.subf %105, %103 : vector<8x1xf32>
    %107 = arith.divf %103, %106 : vector<8x1xf32>
    %108 = vector.broadcast %83 : f32 to vector<8x1xf32>
    %109 = arith.maximumf %41, %108 : vector<8x1xf32>
    %110 = vector.broadcast %79 : f32 to vector<8x1xf32>
    %111 = arith.minimumf %35, %110 : vector<8x1xf32>
    %112 = arith.subf %109, %111 : vector<8x1xf32>
    %113 = vector.broadcast %85 : f32 to vector<8x1xf32>
    %114 = arith.maximumf %44, %113 : vector<8x1xf32>
    %115 = vector.broadcast %81 : f32 to vector<8x1xf32>
    %116 = arith.minimumf %38, %115 : vector<8x1xf32>
    %117 = arith.subf %114, %116 : vector<8x1xf32>
    %118 = arith.mulf %112, %117 : vector<8x1xf32>
    %119 = arith.subf %118, %106 : vector<8x1xf32>
    %120 = arith.divf %119, %118 : vector<8x1xf32>
    %121 = arith.subf %107, %120 : vector<8x1xf32>
    %cst_35 = arith.constant 5.000000e+00 : f32
    %122 = vector.broadcast %cst_35 : f32 to vector<8x1xf32>
    %123 = arith.mulf %122, %77 : vector<8x1xf32>
    %cst_36 = arith.constant 1.000000e+00 : f32
    %124 = vector.broadcast %cst_36 : f32 to vector<8x1xf32>
    %125 = arith.mulf %124, %62 : vector<8x1xf32>
    %126 = arith.addf %123, %125 : vector<8x1xf32>
    %cst_37 = arith.constant 0.000000e+00 : f32
    %127 = vector.broadcast %cst_37 : f32 to vector<8x1xf32>
    %128 = arith.subf %127, %121 : vector<8x1xf32>
    %cst_38 = arith.constant 2.000000e+00 : f32
    %129 = vector.broadcast %cst_38 : f32 to vector<8x1xf32>
    %130 = arith.mulf %129, %128 : vector<8x1xf32>
    %131 = arith.addf %126, %130 : vector<8x1xf32>
    %132 = vector.broadcast %131 : vector<8x1xf32> to vector<8x384xf32>
    %133 = arith.mulf %6, %132 : vector<8x384xf32>
    %cst_39 = arith.constant dense<0.000000e+00> : vector<384xf32>
    %134 = vector.multi_reduction <add>, %133, %cst_39 [0] : vector<8x384xf32> to vector<384xf32>
    %135 = vector.shape_cast %134 : vector<384xf32> to vector<1x384xf32>
    %136 = arith.addf %48, %135 : vector<1x384xf32>
    %c0_40 = arith.constant 0 : index
    %c1_41 = arith.constant 1 : index
    %137 = memref.load %arg0[%c0_40, %c1_41] : memref<2x3xi32, #tpu.memory_space<smem>>
    %c0_42 = arith.constant 0 : index
    %c4 = arith.constant 4 : index
    %138 = memref.load %arg1[%c0_42, %c4] : memref<2x12xf32, #tpu.memory_space<smem>>
    %c0_43 = arith.constant 0 : index
    %c5 = arith.constant 5 : index
    %139 = memref.load %arg1[%c0_43, %c5] : memref<2x12xf32, #tpu.memory_space<smem>>
    %c0_44 = arith.constant 0 : index
    %c6 = arith.constant 6 : index
    %140 = memref.load %arg1[%c0_44, %c6] : memref<2x12xf32, #tpu.memory_space<smem>>
    %c0_45 = arith.constant 0 : index
    %c7 = arith.constant 7 : index
    %141 = memref.load %arg1[%c0_45, %c7] : memref<2x12xf32, #tpu.memory_space<smem>>
    %142 = vector.broadcast %137 : i32 to vector<8x5xi32>
    %143 = arith.cmpi eq, %0, %142 : vector<8x5xi32>
    %144 = arith.extui %143 : vector<8x5xi1> to vector<8x5xi32>
    %145 = arith.sitofp %144 : vector<8x5xi32> to vector<8x5xf32>
    %146 = arith.mulf %23, %145 : vector<8x5xf32>
    %cst_46 = arith.constant dense<0.000000e+00> : vector<8xf32>
    %147 = vector.multi_reduction <add>, %146, %cst_46 [1] : vector<8x5xf32> to vector<8xf32>
    %148 = vector.shape_cast %147 : vector<8xf32> to vector<8x1xf32>
    %cst_47 = arith.constant 0.000000e+00 : f32
    %149 = vector.broadcast %cst_47 : f32 to vector<8x1xf32>
    %150 = arith.subf %149, %148 : vector<8x1xf32>
    %151 = vector.broadcast %138 : f32 to vector<8x1xf32>
    %152 = arith.subf %29, %151 : vector<8x1xf32>
    %153 = math.absf %152 : vector<8x1xf32>
    %154 = vector.broadcast %139 : f32 to vector<8x1xf32>
    %155 = arith.subf %30, %154 : vector<8x1xf32>
    %156 = math.absf %155 : vector<8x1xf32>
    %157 = arith.addf %153, %156 : vector<8x1xf32>
    %158 = vector.broadcast %140 : f32 to vector<8x1xf32>
    %159 = arith.subf %31, %158 : vector<8x1xf32>
    %160 = math.absf %159 : vector<8x1xf32>
    %161 = arith.addf %157, %160 : vector<8x1xf32>
    %162 = vector.broadcast %141 : f32 to vector<8x1xf32>
    %163 = arith.subf %32, %162 : vector<8x1xf32>
    %164 = math.absf %163 : vector<8x1xf32>
    %165 = arith.addf %161, %164 : vector<8x1xf32>
    %cst_48 = arith.constant 5.000000e-01 : f32
    %166 = arith.mulf %cst_48, %140 : f32
    %167 = arith.subf %138, %166 : f32
    %cst_49 = arith.constant 5.000000e-01 : f32
    %168 = arith.mulf %cst_49, %141 : f32
    %169 = arith.subf %139, %168 : f32
    %cst_50 = arith.constant 5.000000e-01 : f32
    %170 = arith.mulf %cst_50, %140 : f32
    %171 = arith.addf %138, %170 : f32
    %cst_51 = arith.constant 5.000000e-01 : f32
    %172 = arith.mulf %cst_51, %141 : f32
    %173 = arith.addf %139, %172 : f32
    %174 = arith.subf %171, %167 : f32
    %175 = arith.subf %173, %169 : f32
    %176 = arith.mulf %174, %175 : f32
    %177 = vector.broadcast %171 : f32 to vector<8x1xf32>
    %178 = arith.minimumf %41, %177 : vector<8x1xf32>
    %179 = vector.broadcast %167 : f32 to vector<8x1xf32>
    %180 = arith.maximumf %35, %179 : vector<8x1xf32>
    %181 = arith.subf %178, %180 : vector<8x1xf32>
    %cst_52 = arith.constant 0.000000e+00 : f32
    %182 = vector.broadcast %cst_52 : f32 to vector<8x1xf32>
    %183 = arith.maximumf %181, %182 : vector<8x1xf32>
    %184 = vector.broadcast %173 : f32 to vector<8x1xf32>
    %185 = arith.minimumf %44, %184 : vector<8x1xf32>
    %186 = vector.broadcast %169 : f32 to vector<8x1xf32>
    %187 = arith.maximumf %38, %186 : vector<8x1xf32>
    %188 = arith.subf %185, %187 : vector<8x1xf32>
    %cst_53 = arith.constant 0.000000e+00 : f32
    %189 = vector.broadcast %cst_53 : f32 to vector<8x1xf32>
    %190 = arith.maximumf %188, %189 : vector<8x1xf32>
    %191 = arith.mulf %183, %190 : vector<8x1xf32>
    %192 = vector.broadcast %176 : f32 to vector<8x1xf32>
    %193 = arith.addf %47, %192 : vector<8x1xf32>
    %194 = arith.subf %193, %191 : vector<8x1xf32>
    %195 = arith.divf %191, %194 : vector<8x1xf32>
    %196 = vector.broadcast %171 : f32 to vector<8x1xf32>
    %197 = arith.maximumf %41, %196 : vector<8x1xf32>
    %198 = vector.broadcast %167 : f32 to vector<8x1xf32>
    %199 = arith.minimumf %35, %198 : vector<8x1xf32>
    %200 = arith.subf %197, %199 : vector<8x1xf32>
    %201 = vector.broadcast %173 : f32 to vector<8x1xf32>
    %202 = arith.maximumf %44, %201 : vector<8x1xf32>
    %203 = vector.broadcast %169 : f32 to vector<8x1xf32>
    %204 = arith.minimumf %38, %203 : vector<8x1xf32>
    %205 = arith.subf %202, %204 : vector<8x1xf32>
    %206 = arith.mulf %200, %205 : vector<8x1xf32>
    %207 = arith.subf %206, %194 : vector<8x1xf32>
    %208 = arith.divf %207, %206 : vector<8x1xf32>
    %209 = arith.subf %195, %208 : vector<8x1xf32>
    %cst_54 = arith.constant 5.000000e+00 : f32
    %210 = vector.broadcast %cst_54 : f32 to vector<8x1xf32>
    %211 = arith.mulf %210, %165 : vector<8x1xf32>
    %cst_55 = arith.constant 1.000000e+00 : f32
    %212 = vector.broadcast %cst_55 : f32 to vector<8x1xf32>
    %213 = arith.mulf %212, %150 : vector<8x1xf32>
    %214 = arith.addf %211, %213 : vector<8x1xf32>
    %cst_56 = arith.constant 0.000000e+00 : f32
    %215 = vector.broadcast %cst_56 : f32 to vector<8x1xf32>
    %216 = arith.subf %215, %209 : vector<8x1xf32>
    %cst_57 = arith.constant 2.000000e+00 : f32
    %217 = vector.broadcast %cst_57 : f32 to vector<8x1xf32>
    %218 = arith.mulf %217, %216 : vector<8x1xf32>
    %219 = arith.addf %214, %218 : vector<8x1xf32>
    %220 = vector.broadcast %219 : vector<8x1xf32> to vector<8x384xf32>
    %221 = arith.mulf %8, %220 : vector<8x384xf32>
    %cst_58 = arith.constant dense<0.000000e+00> : vector<384xf32>
    %222 = vector.multi_reduction <add>, %221, %cst_58 [0] : vector<8x384xf32> to vector<384xf32>
    %223 = vector.shape_cast %222 : vector<384xf32> to vector<1x384xf32>
    %224 = arith.addf %136, %223 : vector<1x384xf32>
    %c0_59 = arith.constant 0 : index
    %c2_60 = arith.constant 2 : index
    %225 = memref.load %arg0[%c0_59, %c2_60] : memref<2x3xi32, #tpu.memory_space<smem>>
    %c0_61 = arith.constant 0 : index
    %c8 = arith.constant 8 : index
    %226 = memref.load %arg1[%c0_61, %c8] : memref<2x12xf32, #tpu.memory_space<smem>>
    %c0_62 = arith.constant 0 : index
    %c9 = arith.constant 9 : index
    %227 = memref.load %arg1[%c0_62, %c9] : memref<2x12xf32, #tpu.memory_space<smem>>
    %c0_63 = arith.constant 0 : index
    %c10 = arith.constant 10 : index
    %228 = memref.load %arg1[%c0_63, %c10] : memref<2x12xf32, #tpu.memory_space<smem>>
    %c0_64 = arith.constant 0 : index
    %c11 = arith.constant 11 : index
    %229 = memref.load %arg1[%c0_64, %c11] : memref<2x12xf32, #tpu.memory_space<smem>>
    %230 = vector.broadcast %225 : i32 to vector<8x5xi32>
    %231 = arith.cmpi eq, %0, %230 : vector<8x5xi32>
    %232 = arith.extui %231 : vector<8x5xi1> to vector<8x5xi32>
    %233 = arith.sitofp %232 : vector<8x5xi32> to vector<8x5xf32>
    %234 = arith.mulf %23, %233 : vector<8x5xf32>
    %cst_65 = arith.constant dense<0.000000e+00> : vector<8xf32>
    %235 = vector.multi_reduction <add>, %234, %cst_65 [1] : vector<8x5xf32> to vector<8xf32>
    %236 = vector.shape_cast %235 : vector<8xf32> to vector<8x1xf32>
    %cst_66 = arith.constant 0.000000e+00 : f32
    %237 = vector.broadcast %cst_66 : f32 to vector<8x1xf32>
    %238 = arith.subf %237, %236 : vector<8x1xf32>
    %239 = vector.broadcast %226 : f32 to vector<8x1xf32>
    %240 = arith.subf %29, %239 : vector<8x1xf32>
    %241 = math.absf %240 : vector<8x1xf32>
    %242 = vector.broadcast %227 : f32 to vector<8x1xf32>
    %243 = arith.subf %30, %242 : vector<8x1xf32>
    %244 = math.absf %243 : vector<8x1xf32>
    %245 = arith.addf %241, %244 : vector<8x1xf32>
    %246 = vector.broadcast %228 : f32 to vector<8x1xf32>
    %247 = arith.subf %31, %246 : vector<8x1xf32>
    %248 = math.absf %247 : vector<8x1xf32>
    %249 = arith.addf %245, %248 : vector<8x1xf32>
    %250 = vector.broadcast %229 : f32 to vector<8x1xf32>
    %251 = arith.subf %32, %250 : vector<8x1xf32>
    %252 = math.absf %251 : vector<8x1xf32>
    %253 = arith.addf %249, %252 : vector<8x1xf32>
    %cst_67 = arith.constant 5.000000e-01 : f32
    %254 = arith.mulf %cst_67, %228 : f32
    %255 = arith.subf %226, %254 : f32
    %cst_68 = arith.constant 5.000000e-01 : f32
    %256 = arith.mulf %cst_68, %229 : f32
    %257 = arith.subf %227, %256 : f32
    %cst_69 = arith.constant 5.000000e-01 : f32
    %258 = arith.mulf %cst_69, %228 : f32
    %259 = arith.addf %226, %258 : f32
    %cst_70 = arith.constant 5.000000e-01 : f32
    %260 = arith.mulf %cst_70, %229 : f32
    %261 = arith.addf %227, %260 : f32
    %262 = arith.subf %259, %255 : f32
    %263 = arith.subf %261, %257 : f32
    %264 = arith.mulf %262, %263 : f32
    %265 = vector.broadcast %259 : f32 to vector<8x1xf32>
    %266 = arith.minimumf %41, %265 : vector<8x1xf32>
    %267 = vector.broadcast %255 : f32 to vector<8x1xf32>
    %268 = arith.maximumf %35, %267 : vector<8x1xf32>
    %269 = arith.subf %266, %268 : vector<8x1xf32>
    %cst_71 = arith.constant 0.000000e+00 : f32
    %270 = vector.broadcast %cst_71 : f32 to vector<8x1xf32>
    %271 = arith.maximumf %269, %270 : vector<8x1xf32>
    %272 = vector.broadcast %261 : f32 to vector<8x1xf32>
    %273 = arith.minimumf %44, %272 : vector<8x1xf32>
    %274 = vector.broadcast %257 : f32 to vector<8x1xf32>
    %275 = arith.maximumf %38, %274 : vector<8x1xf32>
    %276 = arith.subf %273, %275 : vector<8x1xf32>
    %cst_72 = arith.constant 0.000000e+00 : f32
    %277 = vector.broadcast %cst_72 : f32 to vector<8x1xf32>
    %278 = arith.maximumf %276, %277 : vector<8x1xf32>
    %279 = arith.mulf %271, %278 : vector<8x1xf32>
    %280 = vector.broadcast %264 : f32 to vector<8x1xf32>
    %281 = arith.addf %47, %280 : vector<8x1xf32>
    %282 = arith.subf %281, %279 : vector<8x1xf32>
    %283 = arith.divf %279, %282 : vector<8x1xf32>
    %284 = vector.broadcast %259 : f32 to vector<8x1xf32>
    %285 = arith.maximumf %41, %284 : vector<8x1xf32>
    %286 = vector.broadcast %255 : f32 to vector<8x1xf32>
    %287 = arith.minimumf %35, %286 : vector<8x1xf32>
    %288 = arith.subf %285, %287 : vector<8x1xf32>
    %289 = vector.broadcast %261 : f32 to vector<8x1xf32>
    %290 = arith.maximumf %44, %289 : vector<8x1xf32>
    %291 = vector.broadcast %257 : f32 to vector<8x1xf32>
    %292 = arith.minimumf %38, %291 : vector<8x1xf32>
    %293 = arith.subf %290, %292 : vector<8x1xf32>
    %294 = arith.mulf %288, %293 : vector<8x1xf32>
    %295 = arith.subf %294, %282 : vector<8x1xf32>
    %296 = arith.divf %295, %294 : vector<8x1xf32>
    %297 = arith.subf %283, %296 : vector<8x1xf32>
    %cst_73 = arith.constant 5.000000e+00 : f32
    %298 = vector.broadcast %cst_73 : f32 to vector<8x1xf32>
    %299 = arith.mulf %298, %253 : vector<8x1xf32>
    %cst_74 = arith.constant 1.000000e+00 : f32
    %300 = vector.broadcast %cst_74 : f32 to vector<8x1xf32>
    %301 = arith.mulf %300, %238 : vector<8x1xf32>
    %302 = arith.addf %299, %301 : vector<8x1xf32>
    %cst_75 = arith.constant 0.000000e+00 : f32
    %303 = vector.broadcast %cst_75 : f32 to vector<8x1xf32>
    %304 = arith.subf %303, %297 : vector<8x1xf32>
    %cst_76 = arith.constant 2.000000e+00 : f32
    %305 = vector.broadcast %cst_76 : f32 to vector<8x1xf32>
    %306 = arith.mulf %305, %304 : vector<8x1xf32>
    %307 = arith.addf %302, %306 : vector<8x1xf32>
    %308 = vector.broadcast %307 : vector<8x1xf32> to vector<8x384xf32>
    %309 = arith.mulf %10, %308 : vector<8x384xf32>
    %cst_77 = arith.constant dense<0.000000e+00> : vector<384xf32>
    %310 = vector.multi_reduction <add>, %309, %cst_77 [0] : vector<8x384xf32> to vector<384xf32>
    %311 = vector.shape_cast %310 : vector<384xf32> to vector<1x384xf32>
    %312 = arith.addf %224, %311 : vector<1x384xf32>
    %cst_78 = arith.constant 1.000000e+30 : f32
    %313 = vector.broadcast %cst_78 : f32 to vector<1x384xf32>
    %314 = arith.select %4, %312, %313 : vector<1x384xi1>, vector<1x384xf32>
    %315 = vector.shape_cast %314 : vector<1x384xf32> to vector<1x1x384xf32>
    %cst_79 = arith.constant dense<0x7F800000> : vector<1xf32>
    %316 = vector.multi_reduction <minimumf>, %315, %cst_79 [1, 2] : vector<1x1x384xf32> to vector<1xf32>
    %317 = vector.shape_cast %316 : vector<1xf32> to vector<1x1x1xf32>
    %318 = vector.extract %317[0, 0, 0] : f32 from vector<1x1x1xf32>
    %319 = vector.broadcast %318 : f32 to vector<1x384xf32>
    %320 = arith.cmpf ole, %314, %319 : vector<1x384xf32>
    %cst_80 = arith.constant 3.840000e+02 : f32
    %321 = vector.broadcast %cst_80 : f32 to vector<1x384xf32>
    %322 = arith.select %320, %2, %321 : vector<1x384xi1>, vector<1x384xf32>
    %323 = vector.shape_cast %322 : vector<1x384xf32> to vector<1x1x384xf32>
    %cst_81 = arith.constant dense<0x7F800000> : vector<1xf32>
    %324 = vector.multi_reduction <minimumf>, %323, %cst_81 [1, 2] : vector<1x1x384xf32> to vector<1xf32>
    %325 = vector.shape_cast %324 : vector<1xf32> to vector<1x1x1xf32>
    %326 = vector.extract %325[0, 0, 0] : f32 from vector<1x1x1xf32>
    %327 = vector.broadcast %326 : f32 to vector<1x384xf32>
    %328 = arith.cmpf oeq, %2, %327 : vector<1x384xf32>
    %329 = arith.extui %328 : vector<1x384xi1> to vector<1x384xi32>
    %330 = arith.sitofp %329 : vector<1x384xi32> to vector<1x384xf32>
    %c4_i32 = arith.constant 4 : i32
    %331 = vector.broadcast %c4_i32 : i32 to vector<8x1xi32>
    %332 = vector.broadcast %330 : vector<1x384xf32> to vector<8x384xf32>
    %333 = arith.mulf %6, %332 : vector<8x384xf32>
    %cst_82 = arith.constant dense<0.000000e+00> : vector<8xf32>
    %334 = vector.multi_reduction <add>, %333, %cst_82 [1] : vector<8x384xf32> to vector<8xf32>
    %335 = vector.shape_cast %334 : vector<8xf32> to vector<8x1xf32>
    %cst_83 = arith.constant 5.000000e-01 : f32
    %336 = vector.broadcast %cst_83 : f32 to vector<8x1xf32>
    %337 = arith.cmpf ogt, %335, %336 : vector<8x1xf32>
    %338 = vector.broadcast %49 : i32 to vector<8x1xi32>
    %339 = arith.select %337, %338, %331 : vector<8x1xi1>, vector<8x1xi32>
    %340 = arith.mulf %29, %335 : vector<8x1xf32>
    %341 = vector.shape_cast %340 : vector<8x1xf32> to vector<1x8x1xf32>
    %cst_84 = arith.constant dense<0.000000e+00> : vector<1xf32>
    %342 = vector.multi_reduction <add>, %341, %cst_84 [1, 2] : vector<1x8x1xf32> to vector<1xf32>
    %343 = vector.shape_cast %342 : vector<1xf32> to vector<1x1x1xf32>
    %344 = vector.extract %343[0, 0, 0] : f32 from vector<1x1x1xf32>
    %345 = arith.mulf %30, %335 : vector<8x1xf32>
    %346 = vector.shape_cast %345 : vector<8x1xf32> to vector<1x8x1xf32>
    %cst_85 = arith.constant dense<0.000000e+00> : vector<1xf32>
    %347 = vector.multi_reduction <add>, %346, %cst_85 [1, 2] : vector<1x8x1xf32> to vector<1xf32>
    %348 = vector.shape_cast %347 : vector<1xf32> to vector<1x1x1xf32>
    %349 = vector.extract %348[0, 0, 0] : f32 from vector<1x1x1xf32>
    %350 = arith.mulf %31, %335 : vector<8x1xf32>
    %351 = vector.shape_cast %350 : vector<8x1xf32> to vector<1x8x1xf32>
    %cst_86 = arith.constant dense<0.000000e+00> : vector<1xf32>
    %352 = vector.multi_reduction <add>, %351, %cst_86 [1, 2] : vector<1x8x1xf32> to vector<1xf32>
    %353 = vector.shape_cast %352 : vector<1xf32> to vector<1x1x1xf32>
    %354 = vector.extract %353[0, 0, 0] : f32 from vector<1x1x1xf32>
    %355 = arith.mulf %32, %335 : vector<8x1xf32>
    %356 = vector.shape_cast %355 : vector<8x1xf32> to vector<1x8x1xf32>
    %cst_87 = arith.constant dense<0.000000e+00> : vector<1xf32>
    %357 = vector.multi_reduction <add>, %356, %cst_87 [1, 2] : vector<1x8x1xf32> to vector<1xf32>
    %358 = vector.shape_cast %357 : vector<1xf32> to vector<1x1x1xf32>
    %359 = vector.extract %358[0, 0, 0] : f32 from vector<1x1x1xf32>
    %360 = arith.subf %344, %50 : f32
    %361 = math.absf %360 : f32
    %362 = arith.subf %349, %51 : f32
    %363 = math.absf %362 : f32
    %364 = arith.addf %361, %363 : f32
    %365 = arith.subf %354, %52 : f32
    %366 = math.absf %365 : f32
    %367 = arith.addf %364, %366 : f32
    %368 = arith.subf %359, %53 : f32
    %369 = math.absf %368 : f32
    %370 = arith.addf %367, %369 : f32
    %cst_88 = arith.constant 0.000000e+00 : f32
    %371 = arith.addf %cst_88, %370 : f32
    %cst_89 = arith.constant 5.000000e-01 : f32
    %372 = arith.mulf %cst_89, %354 : f32
    %373 = arith.subf %344, %372 : f32
    %cst_90 = arith.constant 5.000000e-01 : f32
    %374 = arith.mulf %cst_90, %359 : f32
    %375 = arith.subf %349, %374 : f32
    %cst_91 = arith.constant 5.000000e-01 : f32
    %376 = arith.mulf %cst_91, %354 : f32
    %377 = arith.addf %344, %376 : f32
    %cst_92 = arith.constant 5.000000e-01 : f32
    %378 = arith.mulf %cst_92, %359 : f32
    %379 = arith.addf %349, %378 : f32
    %cst_93 = arith.constant 5.000000e-01 : f32
    %380 = arith.mulf %cst_93, %52 : f32
    %381 = arith.subf %50, %380 : f32
    %cst_94 = arith.constant 5.000000e-01 : f32
    %382 = arith.mulf %cst_94, %53 : f32
    %383 = arith.subf %51, %382 : f32
    %cst_95 = arith.constant 5.000000e-01 : f32
    %384 = arith.mulf %cst_95, %52 : f32
    %385 = arith.addf %50, %384 : f32
    %cst_96 = arith.constant 5.000000e-01 : f32
    %386 = arith.mulf %cst_96, %53 : f32
    %387 = arith.addf %51, %386 : f32
    %388 = arith.minimumf %377, %385 : f32
    %389 = arith.maximumf %373, %381 : f32
    %390 = arith.subf %388, %389 : f32
    %cst_97 = arith.constant 0.000000e+00 : f32
    %391 = arith.maximumf %390, %cst_97 : f32
    %392 = arith.minimumf %379, %387 : f32
    %393 = arith.maximumf %375, %383 : f32
    %394 = arith.subf %392, %393 : f32
    %cst_98 = arith.constant 0.000000e+00 : f32
    %395 = arith.maximumf %394, %cst_98 : f32
    %396 = arith.mulf %391, %395 : f32
    %397 = arith.subf %377, %373 : f32
    %398 = arith.subf %379, %375 : f32
    %399 = arith.mulf %397, %398 : f32
    %400 = arith.subf %385, %381 : f32
    %401 = arith.subf %387, %383 : f32
    %402 = arith.mulf %400, %401 : f32
    %403 = arith.addf %399, %402 : f32
    %404 = arith.subf %403, %396 : f32
    %405 = arith.divf %396, %404 : f32
    %406 = arith.maximumf %377, %385 : f32
    %407 = arith.minimumf %373, %381 : f32
    %408 = arith.subf %406, %407 : f32
    %409 = arith.maximumf %379, %387 : f32
    %410 = arith.minimumf %375, %383 : f32
    %411 = arith.subf %409, %410 : f32
    %412 = arith.mulf %408, %411 : f32
    %413 = arith.subf %412, %404 : f32
    %414 = arith.divf %413, %412 : f32
    %415 = arith.subf %405, %414 : f32
    %cst_99 = arith.constant 1.000000e+00 : f32
    %416 = arith.subf %cst_99, %415 : f32
    %cst_100 = arith.constant 0.000000e+00 : f32
    %417 = arith.addf %cst_100, %416 : f32
    %418 = vector.broadcast %330 : vector<1x384xf32> to vector<8x384xf32>
    %419 = arith.mulf %8, %418 : vector<8x384xf32>
    %cst_101 = arith.constant dense<0.000000e+00> : vector<8xf32>
    %420 = vector.multi_reduction <add>, %419, %cst_101 [1] : vector<8x384xf32> to vector<8xf32>
    %421 = vector.shape_cast %420 : vector<8xf32> to vector<8x1xf32>
    %cst_102 = arith.constant 5.000000e-01 : f32
    %422 = vector.broadcast %cst_102 : f32 to vector<8x1xf32>
    %423 = arith.cmpf ogt, %421, %422 : vector<8x1xf32>
    %424 = vector.broadcast %137 : i32 to vector<8x1xi32>
    %425 = arith.select %423, %424, %339 : vector<8x1xi1>, vector<8x1xi32>
    %426 = arith.mulf %29, %421 : vector<8x1xf32>
    %427 = vector.shape_cast %426 : vector<8x1xf32> to vector<1x8x1xf32>
    %cst_103 = arith.constant dense<0.000000e+00> : vector<1xf32>
    %428 = vector.multi_reduction <add>, %427, %cst_103 [1, 2] : vector<1x8x1xf32> to vector<1xf32>
    %429 = vector.shape_cast %428 : vector<1xf32> to vector<1x1x1xf32>
    %430 = vector.extract %429[0, 0, 0] : f32 from vector<1x1x1xf32>
    %431 = arith.mulf %30, %421 : vector<8x1xf32>
    %432 = vector.shape_cast %431 : vector<8x1xf32> to vector<1x8x1xf32>
    %cst_104 = arith.constant dense<0.000000e+00> : vector<1xf32>
    %433 = vector.multi_reduction <add>, %432, %cst_104 [1, 2] : vector<1x8x1xf32> to vector<1xf32>
    %434 = vector.shape_cast %433 : vector<1xf32> to vector<1x1x1xf32>
    %435 = vector.extract %434[0, 0, 0] : f32 from vector<1x1x1xf32>
    %436 = arith.mulf %31, %421 : vector<8x1xf32>
    %437 = vector.shape_cast %436 : vector<8x1xf32> to vector<1x8x1xf32>
    %cst_105 = arith.constant dense<0.000000e+00> : vector<1xf32>
    %438 = vector.multi_reduction <add>, %437, %cst_105 [1, 2] : vector<1x8x1xf32> to vector<1xf32>
    %439 = vector.shape_cast %438 : vector<1xf32> to vector<1x1x1xf32>
    %440 = vector.extract %439[0, 0, 0] : f32 from vector<1x1x1xf32>
    %441 = arith.mulf %32, %421 : vector<8x1xf32>
    %442 = vector.shape_cast %441 : vector<8x1xf32> to vector<1x8x1xf32>
    %cst_106 = arith.constant dense<0.000000e+00> : vector<1xf32>
    %443 = vector.multi_reduction <add>, %442, %cst_106 [1, 2] : vector<1x8x1xf32> to vector<1xf32>
    %444 = vector.shape_cast %443 : vector<1xf32> to vector<1x1x1xf32>
    %445 = vector.extract %444[0, 0, 0] : f32 from vector<1x1x1xf32>
    %446 = arith.subf %430, %138 : f32
    %447 = math.absf %446 : f32
    %448 = arith.subf %435, %139 : f32
    %449 = math.absf %448 : f32
    %450 = arith.addf %447, %449 : f32
    %451 = arith.subf %440, %140 : f32
    %452 = math.absf %451 : f32
    %453 = arith.addf %450, %452 : f32
    %454 = arith.subf %445, %141 : f32
    %455 = math.absf %454 : f32
    %456 = arith.addf %453, %455 : f32
    %457 = arith.addf %371, %456 : f32
    %cst_107 = arith.constant 5.000000e-01 : f32
    %458 = arith.mulf %cst_107, %440 : f32
    %459 = arith.subf %430, %458 : f32
    %cst_108 = arith.constant 5.000000e-01 : f32
    %460 = arith.mulf %cst_108, %445 : f32
    %461 = arith.subf %435, %460 : f32
    %cst_109 = arith.constant 5.000000e-01 : f32
    %462 = arith.mulf %cst_109, %440 : f32
    %463 = arith.addf %430, %462 : f32
    %cst_110 = arith.constant 5.000000e-01 : f32
    %464 = arith.mulf %cst_110, %445 : f32
    %465 = arith.addf %435, %464 : f32
    %cst_111 = arith.constant 5.000000e-01 : f32
    %466 = arith.mulf %cst_111, %140 : f32
    %467 = arith.subf %138, %466 : f32
    %cst_112 = arith.constant 5.000000e-01 : f32
    %468 = arith.mulf %cst_112, %141 : f32
    %469 = arith.subf %139, %468 : f32
    %cst_113 = arith.constant 5.000000e-01 : f32
    %470 = arith.mulf %cst_113, %140 : f32
    %471 = arith.addf %138, %470 : f32
    %cst_114 = arith.constant 5.000000e-01 : f32
    %472 = arith.mulf %cst_114, %141 : f32
    %473 = arith.addf %139, %472 : f32
    %474 = arith.minimumf %463, %471 : f32
    %475 = arith.maximumf %459, %467 : f32
    %476 = arith.subf %474, %475 : f32
    %cst_115 = arith.constant 0.000000e+00 : f32
    %477 = arith.maximumf %476, %cst_115 : f32
    %478 = arith.minimumf %465, %473 : f32
    %479 = arith.maximumf %461, %469 : f32
    %480 = arith.subf %478, %479 : f32
    %cst_116 = arith.constant 0.000000e+00 : f32
    %481 = arith.maximumf %480, %cst_116 : f32
    %482 = arith.mulf %477, %481 : f32
    %483 = arith.subf %463, %459 : f32
    %484 = arith.subf %465, %461 : f32
    %485 = arith.mulf %483, %484 : f32
    %486 = arith.subf %471, %467 : f32
    %487 = arith.subf %473, %469 : f32
    %488 = arith.mulf %486, %487 : f32
    %489 = arith.addf %485, %488 : f32
    %490 = arith.subf %489, %482 : f32
    %491 = arith.divf %482, %490 : f32
    %492 = arith.maximumf %463, %471 : f32
    %493 = arith.minimumf %459, %467 : f32
    %494 = arith.subf %492, %493 : f32
    %495 = arith.maximumf %465, %473 : f32
    %496 = arith.minimumf %461, %469 : f32
    %497 = arith.subf %495, %496 : f32
    %498 = arith.mulf %494, %497 : f32
    %499 = arith.subf %498, %490 : f32
    %500 = arith.divf %499, %498 : f32
    %501 = arith.subf %491, %500 : f32
    %cst_117 = arith.constant 1.000000e+00 : f32
    %502 = arith.subf %cst_117, %501 : f32
    %503 = arith.addf %417, %502 : f32
    %504 = vector.broadcast %330 : vector<1x384xf32> to vector<8x384xf32>
    %505 = arith.mulf %10, %504 : vector<8x384xf32>
    %cst_118 = arith.constant dense<0.000000e+00> : vector<8xf32>
    %506 = vector.multi_reduction <add>, %505, %cst_118 [1] : vector<8x384xf32> to vector<8xf32>
    %507 = vector.shape_cast %506 : vector<8xf32> to vector<8x1xf32>
    %cst_119 = arith.constant 5.000000e-01 : f32
    %508 = vector.broadcast %cst_119 : f32 to vector<8x1xf32>
    %509 = arith.cmpf ogt, %507, %508 : vector<8x1xf32>
    %510 = vector.broadcast %225 : i32 to vector<8x1xi32>
    %511 = arith.select %509, %510, %425 : vector<8x1xi1>, vector<8x1xi32>
    %512 = arith.mulf %29, %507 : vector<8x1xf32>
    %513 = vector.shape_cast %512 : vector<8x1xf32> to vector<1x8x1xf32>
    %cst_120 = arith.constant dense<0.000000e+00> : vector<1xf32>
    %514 = vector.multi_reduction <add>, %513, %cst_120 [1, 2] : vector<1x8x1xf32> to vector<1xf32>
    %515 = vector.shape_cast %514 : vector<1xf32> to vector<1x1x1xf32>
    %516 = vector.extract %515[0, 0, 0] : f32 from vector<1x1x1xf32>
    %517 = arith.mulf %30, %507 : vector<8x1xf32>
    %518 = vector.shape_cast %517 : vector<8x1xf32> to vector<1x8x1xf32>
    %cst_121 = arith.constant dense<0.000000e+00> : vector<1xf32>
    %519 = vector.multi_reduction <add>, %518, %cst_121 [1, 2] : vector<1x8x1xf32> to vector<1xf32>
    %520 = vector.shape_cast %519 : vector<1xf32> to vector<1x1x1xf32>
    %521 = vector.extract %520[0, 0, 0] : f32 from vector<1x1x1xf32>
    %522 = arith.mulf %31, %507 : vector<8x1xf32>
    %523 = vector.shape_cast %522 : vector<8x1xf32> to vector<1x8x1xf32>
    %cst_122 = arith.constant dense<0.000000e+00> : vector<1xf32>
    %524 = vector.multi_reduction <add>, %523, %cst_122 [1, 2] : vector<1x8x1xf32> to vector<1xf32>
    %525 = vector.shape_cast %524 : vector<1xf32> to vector<1x1x1xf32>
    %526 = vector.extract %525[0, 0, 0] : f32 from vector<1x1x1xf32>
    %527 = arith.mulf %32, %507 : vector<8x1xf32>
    %528 = vector.shape_cast %527 : vector<8x1xf32> to vector<1x8x1xf32>
    %cst_123 = arith.constant dense<0.000000e+00> : vector<1xf32>
    %529 = vector.multi_reduction <add>, %528, %cst_123 [1, 2] : vector<1x8x1xf32> to vector<1xf32>
    %530 = vector.shape_cast %529 : vector<1xf32> to vector<1x1x1xf32>
    %531 = vector.extract %530[0, 0, 0] : f32 from vector<1x1x1xf32>
    %532 = arith.subf %516, %226 : f32
    %533 = math.absf %532 : f32
    %534 = arith.subf %521, %227 : f32
    %535 = math.absf %534 : f32
    %536 = arith.addf %533, %535 : f32
    %537 = arith.subf %526, %228 : f32
    %538 = math.absf %537 : f32
    %539 = arith.addf %536, %538 : f32
    %540 = arith.subf %531, %229 : f32
    %541 = math.absf %540 : f32
    %542 = arith.addf %539, %541 : f32
    %543 = arith.addf %457, %542 : f32
    %cst_124 = arith.constant 5.000000e-01 : f32
    %544 = arith.mulf %cst_124, %526 : f32
    %545 = arith.subf %516, %544 : f32
    %cst_125 = arith.constant 5.000000e-01 : f32
    %546 = arith.mulf %cst_125, %531 : f32
    %547 = arith.subf %521, %546 : f32
    %cst_126 = arith.constant 5.000000e-01 : f32
    %548 = arith.mulf %cst_126, %526 : f32
    %549 = arith.addf %516, %548 : f32
    %cst_127 = arith.constant 5.000000e-01 : f32
    %550 = arith.mulf %cst_127, %531 : f32
    %551 = arith.addf %521, %550 : f32
    %cst_128 = arith.constant 5.000000e-01 : f32
    %552 = arith.mulf %cst_128, %228 : f32
    %553 = arith.subf %226, %552 : f32
    %cst_129 = arith.constant 5.000000e-01 : f32
    %554 = arith.mulf %cst_129, %229 : f32
    %555 = arith.subf %227, %554 : f32
    %cst_130 = arith.constant 5.000000e-01 : f32
    %556 = arith.mulf %cst_130, %228 : f32
    %557 = arith.addf %226, %556 : f32
    %cst_131 = arith.constant 5.000000e-01 : f32
    %558 = arith.mulf %cst_131, %229 : f32
    %559 = arith.addf %227, %558 : f32
    %560 = arith.minimumf %549, %557 : f32
    %561 = arith.maximumf %545, %553 : f32
    %562 = arith.subf %560, %561 : f32
    %cst_132 = arith.constant 0.000000e+00 : f32
    %563 = arith.maximumf %562, %cst_132 : f32
    %564 = arith.minimumf %551, %559 : f32
    %565 = arith.maximumf %547, %555 : f32
    %566 = arith.subf %564, %565 : f32
    %cst_133 = arith.constant 0.000000e+00 : f32
    %567 = arith.maximumf %566, %cst_133 : f32
    %568 = arith.mulf %563, %567 : f32
    %569 = arith.subf %549, %545 : f32
    %570 = arith.subf %551, %547 : f32
    %571 = arith.mulf %569, %570 : f32
    %572 = arith.subf %557, %553 : f32
    %573 = arith.subf %559, %555 : f32
    %574 = arith.mulf %572, %573 : f32
    %575 = arith.addf %571, %574 : f32
    %576 = arith.subf %575, %568 : f32
    %577 = arith.divf %568, %576 : f32
    %578 = arith.maximumf %549, %557 : f32
    %579 = arith.minimumf %545, %553 : f32
    %580 = arith.subf %578, %579 : f32
    %581 = arith.maximumf %551, %559 : f32
    %582 = arith.minimumf %547, %555 : f32
    %583 = arith.subf %581, %582 : f32
    %584 = arith.mulf %580, %583 : f32
    %585 = arith.subf %584, %576 : f32
    %586 = arith.divf %585, %584 : f32
    %587 = arith.subf %577, %586 : f32
    %cst_134 = arith.constant 1.000000e+00 : f32
    %588 = arith.subf %cst_134, %587 : f32
    %589 = arith.addf %503, %588 : f32
    %590 = vector.broadcast %511 : vector<8x1xi32> to vector<8x5xi32>
    %591 = arith.cmpi eq, %0, %590 : vector<8x5xi32>
    %592 = arith.extui %591 : vector<8x5xi1> to vector<8x5xi32>
    %593 = arith.sitofp %592 : vector<8x5xi32> to vector<8x5xf32>
    %594 = arith.mulf %593, %28 : vector<8x5xf32>
    %cst_135 = arith.constant dense<0.000000e+00> : vector<8xf32>
    %595 = vector.multi_reduction <add>, %594, %cst_135 [1] : vector<8x5xf32> to vector<8xf32>
    %596 = vector.shape_cast %595 : vector<8xf32> to vector<8x1xf32>
    %cst_136 = arith.constant 0.000000e+00 : f32
    %597 = vector.broadcast %cst_136 : f32 to vector<8x1xf32>
    %598 = arith.subf %597, %596 : vector<8x1xf32>
    %c4_i32_137 = arith.constant 4 : i32
    %599 = vector.broadcast %c4_i32_137 : i32 to vector<8x1xi32>
    %600 = arith.cmpi eq, %511, %599 : vector<8x1xi32>
    %cst_138 = arith.constant 1.000000e-01 : f32
    %cst_139 = arith.constant 1.000000e+00 : f32
    %601 = vector.broadcast %cst_138 : f32 to vector<8x1xf32>
    %602 = vector.broadcast %cst_139 : f32 to vector<8x1xf32>
    %603 = arith.select %600, %601, %602 : vector<8x1xi1>, vector<8x1xf32>
    %604 = arith.mulf %598, %603 : vector<8x1xf32>
    %605 = vector.shape_cast %604 : vector<8x1xf32> to vector<1x8x1xf32>
    %cst_140 = arith.constant dense<0.000000e+00> : vector<1xf32>
    %606 = vector.multi_reduction <add>, %605, %cst_140 [1, 2] : vector<1x8x1xf32> to vector<1xf32>
    %607 = vector.shape_cast %606 : vector<1xf32> to vector<1x1x1xf32>
    %608 = vector.extract %607[0, 0, 0] : f32 from vector<1x1x1xf32>
    %cst_141 = arith.constant 0.000000e+00 : f32
    %609 = arith.addf %cst_141, %608 : f32
    %610 = vector.shape_cast %603 : vector<8x1xf32> to vector<1x8x1xf32>
    %cst_142 = arith.constant dense<0.000000e+00> : vector<1xf32>
    %611 = vector.multi_reduction <add>, %610, %cst_142 [1, 2] : vector<1x8x1xf32> to vector<1xf32>
    %612 = vector.shape_cast %611 : vector<1xf32> to vector<1x1x1xf32>
    %613 = vector.extract %612[0, 0, 0] : f32 from vector<1x1x1xf32>
    %cst_143 = arith.constant 0.000000e+00 : f32
    %614 = arith.addf %cst_143, %613 : f32
    %c1_144 = arith.constant 1 : index
    %c0_145 = arith.constant 0 : index
    %c0_146 = arith.constant 0 : index
    %615 = vector.load %arg2[%c1_144, %c0_145, %c0_146] : memref<2x8x5xf32, #tpu.memory_space<vmem>>, vector<1x8x5xf32>
    %616 = vector.shape_cast %615 : vector<1x8x5xf32> to vector<8x5xf32>
    %c1_147 = arith.constant 1 : index
    %c0_148 = arith.constant 0 : index
    %c0_149 = arith.constant 0 : index
    %617 = vector.load %arg3[%c1_147, %c0_148, %c0_149] : memref<2x8x4xf32, #tpu.memory_space<vmem>>, vector<1x8x4xf32>
    %618 = vector.shape_cast %617 : vector<1x8x4xf32> to vector<8x4xf32>
    %cst_150 = arith.constant dense<0xFF800000> : vector<8xf32>
    %619 = vector.multi_reduction <maximumf>, %616, %cst_150 [1] : vector<8x5xf32> to vector<8xf32>
    %620 = vector.shape_cast %619 : vector<8xf32> to vector<8x1xf32>
    %621 = vector.broadcast %620 : vector<8x1xf32> to vector<8x5xf32>
    %622 = arith.subf %616, %621 : vector<8x5xf32>
    %623 = math.exp %622 : vector<8x5xf32>
    %cst_151 = arith.constant dense<0.000000e+00> : vector<8xf32>
    %624 = vector.multi_reduction <add>, %623, %cst_151 [1] : vector<8x5xf32> to vector<8xf32>
    %625 = vector.shape_cast %624 : vector<8xf32> to vector<8x1xf32>
    %626 = vector.broadcast %625 : vector<8x1xf32> to vector<8x5xf32>
    %627 = arith.divf %623, %626 : vector<8x5xf32>
    %628 = vector.broadcast %620 : vector<8x1xf32> to vector<8x5xf32>
    %629 = arith.subf %616, %628 : vector<8x5xf32>
    %630 = math.log %625 : vector<8x1xf32>
    %631 = vector.broadcast %630 : vector<8x1xf32> to vector<8x5xf32>
    %632 = arith.subf %629, %631 : vector<8x5xf32>
    %633 = vector.extract_strided_slice %618 {offsets = [0, 0], sizes = [8, 1], strides = [1, 1]} : vector<8x4xf32> to vector<8x1xf32>
    %634 = vector.extract_strided_slice %618 {offsets = [0, 1], sizes = [8, 1], strides = [1, 1]} : vector<8x4xf32> to vector<8x1xf32>
    %635 = vector.extract_strided_slice %618 {offsets = [0, 2], sizes = [8, 1], strides = [1, 1]} : vector<8x4xf32> to vector<8x1xf32>
    %636 = vector.extract_strided_slice %618 {offsets = [0, 3], sizes = [8, 1], strides = [1, 1]} : vector<8x4xf32> to vector<8x1xf32>
    %cst_152 = arith.constant 5.000000e-01 : f32
    %637 = vector.broadcast %cst_152 : f32 to vector<8x1xf32>
    %638 = arith.mulf %637, %635 : vector<8x1xf32>
    %639 = arith.subf %633, %638 : vector<8x1xf32>
    %cst_153 = arith.constant 5.000000e-01 : f32
    %640 = vector.broadcast %cst_153 : f32 to vector<8x1xf32>
    %641 = arith.mulf %640, %636 : vector<8x1xf32>
    %642 = arith.subf %634, %641 : vector<8x1xf32>
    %cst_154 = arith.constant 5.000000e-01 : f32
    %643 = vector.broadcast %cst_154 : f32 to vector<8x1xf32>
    %644 = arith.mulf %643, %635 : vector<8x1xf32>
    %645 = arith.addf %633, %644 : vector<8x1xf32>
    %cst_155 = arith.constant 5.000000e-01 : f32
    %646 = vector.broadcast %cst_155 : f32 to vector<8x1xf32>
    %647 = arith.mulf %646, %636 : vector<8x1xf32>
    %648 = arith.addf %634, %647 : vector<8x1xf32>
    %649 = arith.subf %645, %639 : vector<8x1xf32>
    %650 = arith.subf %648, %642 : vector<8x1xf32>
    %651 = arith.mulf %649, %650 : vector<8x1xf32>
    %cst_156 = arith.constant 0.000000e+00 : f32
    %652 = vector.broadcast %cst_156 : f32 to vector<1x384xf32>
    %c1_157 = arith.constant 1 : index
    %c0_158 = arith.constant 0 : index
    %653 = memref.load %arg0[%c1_157, %c0_158] : memref<2x3xi32, #tpu.memory_space<smem>>
    %c1_159 = arith.constant 1 : index
    %c0_160 = arith.constant 0 : index
    %654 = memref.load %arg1[%c1_159, %c0_160] : memref<2x12xf32, #tpu.memory_space<smem>>
    %c1_161 = arith.constant 1 : index
    %c1_162 = arith.constant 1 : index
    %655 = memref.load %arg1[%c1_161, %c1_162] : memref<2x12xf32, #tpu.memory_space<smem>>
    %c1_163 = arith.constant 1 : index
    %c2_164 = arith.constant 2 : index
    %656 = memref.load %arg1[%c1_163, %c2_164] : memref<2x12xf32, #tpu.memory_space<smem>>
    %c1_165 = arith.constant 1 : index
    %c3_166 = arith.constant 3 : index
    %657 = memref.load %arg1[%c1_165, %c3_166] : memref<2x12xf32, #tpu.memory_space<smem>>
    %658 = vector.broadcast %653 : i32 to vector<8x5xi32>
    %659 = arith.cmpi eq, %0, %658 : vector<8x5xi32>
    %660 = arith.extui %659 : vector<8x5xi1> to vector<8x5xi32>
    %661 = arith.sitofp %660 : vector<8x5xi32> to vector<8x5xf32>
    %662 = arith.mulf %627, %661 : vector<8x5xf32>
    %cst_167 = arith.constant dense<0.000000e+00> : vector<8xf32>
    %663 = vector.multi_reduction <add>, %662, %cst_167 [1] : vector<8x5xf32> to vector<8xf32>
    %664 = vector.shape_cast %663 : vector<8xf32> to vector<8x1xf32>
    %cst_168 = arith.constant 0.000000e+00 : f32
    %665 = vector.broadcast %cst_168 : f32 to vector<8x1xf32>
    %666 = arith.subf %665, %664 : vector<8x1xf32>
    %667 = vector.broadcast %654 : f32 to vector<8x1xf32>
    %668 = arith.subf %633, %667 : vector<8x1xf32>
    %669 = math.absf %668 : vector<8x1xf32>
    %670 = vector.broadcast %655 : f32 to vector<8x1xf32>
    %671 = arith.subf %634, %670 : vector<8x1xf32>
    %672 = math.absf %671 : vector<8x1xf32>
    %673 = arith.addf %669, %672 : vector<8x1xf32>
    %674 = vector.broadcast %656 : f32 to vector<8x1xf32>
    %675 = arith.subf %635, %674 : vector<8x1xf32>
    %676 = math.absf %675 : vector<8x1xf32>
    %677 = arith.addf %673, %676 : vector<8x1xf32>
    %678 = vector.broadcast %657 : f32 to vector<8x1xf32>
    %679 = arith.subf %636, %678 : vector<8x1xf32>
    %680 = math.absf %679 : vector<8x1xf32>
    %681 = arith.addf %677, %680 : vector<8x1xf32>
    %cst_169 = arith.constant 5.000000e-01 : f32
    %682 = arith.mulf %cst_169, %656 : f32
    %683 = arith.subf %654, %682 : f32
    %cst_170 = arith.constant 5.000000e-01 : f32
    %684 = arith.mulf %cst_170, %657 : f32
    %685 = arith.subf %655, %684 : f32
    %cst_171 = arith.constant 5.000000e-01 : f32
    %686 = arith.mulf %cst_171, %656 : f32
    %687 = arith.addf %654, %686 : f32
    %cst_172 = arith.constant 5.000000e-01 : f32
    %688 = arith.mulf %cst_172, %657 : f32
    %689 = arith.addf %655, %688 : f32
    %690 = arith.subf %687, %683 : f32
    %691 = arith.subf %689, %685 : f32
    %692 = arith.mulf %690, %691 : f32
    %693 = vector.broadcast %687 : f32 to vector<8x1xf32>
    %694 = arith.minimumf %645, %693 : vector<8x1xf32>
    %695 = vector.broadcast %683 : f32 to vector<8x1xf32>
    %696 = arith.maximumf %639, %695 : vector<8x1xf32>
    %697 = arith.subf %694, %696 : vector<8x1xf32>
    %cst_173 = arith.constant 0.000000e+00 : f32
    %698 = vector.broadcast %cst_173 : f32 to vector<8x1xf32>
    %699 = arith.maximumf %697, %698 : vector<8x1xf32>
    %700 = vector.broadcast %689 : f32 to vector<8x1xf32>
    %701 = arith.minimumf %648, %700 : vector<8x1xf32>
    %702 = vector.broadcast %685 : f32 to vector<8x1xf32>
    %703 = arith.maximumf %642, %702 : vector<8x1xf32>
    %704 = arith.subf %701, %703 : vector<8x1xf32>
    %cst_174 = arith.constant 0.000000e+00 : f32
    %705 = vector.broadcast %cst_174 : f32 to vector<8x1xf32>
    %706 = arith.maximumf %704, %705 : vector<8x1xf32>
    %707 = arith.mulf %699, %706 : vector<8x1xf32>
    %708 = vector.broadcast %692 : f32 to vector<8x1xf32>
    %709 = arith.addf %651, %708 : vector<8x1xf32>
    %710 = arith.subf %709, %707 : vector<8x1xf32>
    %711 = arith.divf %707, %710 : vector<8x1xf32>
    %712 = vector.broadcast %687 : f32 to vector<8x1xf32>
    %713 = arith.maximumf %645, %712 : vector<8x1xf32>
    %714 = vector.broadcast %683 : f32 to vector<8x1xf32>
    %715 = arith.minimumf %639, %714 : vector<8x1xf32>
    %716 = arith.subf %713, %715 : vector<8x1xf32>
    %717 = vector.broadcast %689 : f32 to vector<8x1xf32>
    %718 = arith.maximumf %648, %717 : vector<8x1xf32>
    %719 = vector.broadcast %685 : f32 to vector<8x1xf32>
    %720 = arith.minimumf %642, %719 : vector<8x1xf32>
    %721 = arith.subf %718, %720 : vector<8x1xf32>
    %722 = arith.mulf %716, %721 : vector<8x1xf32>
    %723 = arith.subf %722, %710 : vector<8x1xf32>
    %724 = arith.divf %723, %722 : vector<8x1xf32>
    %725 = arith.subf %711, %724 : vector<8x1xf32>
    %cst_175 = arith.constant 5.000000e+00 : f32
    %726 = vector.broadcast %cst_175 : f32 to vector<8x1xf32>
    %727 = arith.mulf %726, %681 : vector<8x1xf32>
    %cst_176 = arith.constant 1.000000e+00 : f32
    %728 = vector.broadcast %cst_176 : f32 to vector<8x1xf32>
    %729 = arith.mulf %728, %666 : vector<8x1xf32>
    %730 = arith.addf %727, %729 : vector<8x1xf32>
    %cst_177 = arith.constant 0.000000e+00 : f32
    %731 = vector.broadcast %cst_177 : f32 to vector<8x1xf32>
    %732 = arith.subf %731, %725 : vector<8x1xf32>
    %cst_178 = arith.constant 2.000000e+00 : f32
    %733 = vector.broadcast %cst_178 : f32 to vector<8x1xf32>
    %734 = arith.mulf %733, %732 : vector<8x1xf32>
    %735 = arith.addf %730, %734 : vector<8x1xf32>
    %736 = vector.broadcast %735 : vector<8x1xf32> to vector<8x384xf32>
    %737 = arith.mulf %6, %736 : vector<8x384xf32>
    %cst_179 = arith.constant dense<0.000000e+00> : vector<384xf32>
    %738 = vector.multi_reduction <add>, %737, %cst_179 [0] : vector<8x384xf32> to vector<384xf32>
    %739 = vector.shape_cast %738 : vector<384xf32> to vector<1x384xf32>
    %740 = arith.addf %652, %739 : vector<1x384xf32>
    %c1_180 = arith.constant 1 : index
    %c1_181 = arith.constant 1 : index
    %741 = memref.load %arg0[%c1_180, %c1_181] : memref<2x3xi32, #tpu.memory_space<smem>>
    %c1_182 = arith.constant 1 : index
    %c4_183 = arith.constant 4 : index
    %742 = memref.load %arg1[%c1_182, %c4_183] : memref<2x12xf32, #tpu.memory_space<smem>>
    %c1_184 = arith.constant 1 : index
    %c5_185 = arith.constant 5 : index
    %743 = memref.load %arg1[%c1_184, %c5_185] : memref<2x12xf32, #tpu.memory_space<smem>>
    %c1_186 = arith.constant 1 : index
    %c6_187 = arith.constant 6 : index
    %744 = memref.load %arg1[%c1_186, %c6_187] : memref<2x12xf32, #tpu.memory_space<smem>>
    %c1_188 = arith.constant 1 : index
    %c7_189 = arith.constant 7 : index
    %745 = memref.load %arg1[%c1_188, %c7_189] : memref<2x12xf32, #tpu.memory_space<smem>>
    %746 = vector.broadcast %741 : i32 to vector<8x5xi32>
    %747 = arith.cmpi eq, %0, %746 : vector<8x5xi32>
    %748 = arith.extui %747 : vector<8x5xi1> to vector<8x5xi32>
    %749 = arith.sitofp %748 : vector<8x5xi32> to vector<8x5xf32>
    %750 = arith.mulf %627, %749 : vector<8x5xf32>
    %cst_190 = arith.constant dense<0.000000e+00> : vector<8xf32>
    %751 = vector.multi_reduction <add>, %750, %cst_190 [1] : vector<8x5xf32> to vector<8xf32>
    %752 = vector.shape_cast %751 : vector<8xf32> to vector<8x1xf32>
    %cst_191 = arith.constant 0.000000e+00 : f32
    %753 = vector.broadcast %cst_191 : f32 to vector<8x1xf32>
    %754 = arith.subf %753, %752 : vector<8x1xf32>
    %755 = vector.broadcast %742 : f32 to vector<8x1xf32>
    %756 = arith.subf %633, %755 : vector<8x1xf32>
    %757 = math.absf %756 : vector<8x1xf32>
    %758 = vector.broadcast %743 : f32 to vector<8x1xf32>
    %759 = arith.subf %634, %758 : vector<8x1xf32>
    %760 = math.absf %759 : vector<8x1xf32>
    %761 = arith.addf %757, %760 : vector<8x1xf32>
    %762 = vector.broadcast %744 : f32 to vector<8x1xf32>
    %763 = arith.subf %635, %762 : vector<8x1xf32>
    %764 = math.absf %763 : vector<8x1xf32>
    %765 = arith.addf %761, %764 : vector<8x1xf32>
    %766 = vector.broadcast %745 : f32 to vector<8x1xf32>
    %767 = arith.subf %636, %766 : vector<8x1xf32>
    %768 = math.absf %767 : vector<8x1xf32>
    %769 = arith.addf %765, %768 : vector<8x1xf32>
    %cst_192 = arith.constant 5.000000e-01 : f32
    %770 = arith.mulf %cst_192, %744 : f32
    %771 = arith.subf %742, %770 : f32
    %cst_193 = arith.constant 5.000000e-01 : f32
    %772 = arith.mulf %cst_193, %745 : f32
    %773 = arith.subf %743, %772 : f32
    %cst_194 = arith.constant 5.000000e-01 : f32
    %774 = arith.mulf %cst_194, %744 : f32
    %775 = arith.addf %742, %774 : f32
    %cst_195 = arith.constant 5.000000e-01 : f32
    %776 = arith.mulf %cst_195, %745 : f32
    %777 = arith.addf %743, %776 : f32
    %778 = arith.subf %775, %771 : f32
    %779 = arith.subf %777, %773 : f32
    %780 = arith.mulf %778, %779 : f32
    %781 = vector.broadcast %775 : f32 to vector<8x1xf32>
    %782 = arith.minimumf %645, %781 : vector<8x1xf32>
    %783 = vector.broadcast %771 : f32 to vector<8x1xf32>
    %784 = arith.maximumf %639, %783 : vector<8x1xf32>
    %785 = arith.subf %782, %784 : vector<8x1xf32>
    %cst_196 = arith.constant 0.000000e+00 : f32
    %786 = vector.broadcast %cst_196 : f32 to vector<8x1xf32>
    %787 = arith.maximumf %785, %786 : vector<8x1xf32>
    %788 = vector.broadcast %777 : f32 to vector<8x1xf32>
    %789 = arith.minimumf %648, %788 : vector<8x1xf32>
    %790 = vector.broadcast %773 : f32 to vector<8x1xf32>
    %791 = arith.maximumf %642, %790 : vector<8x1xf32>
    %792 = arith.subf %789, %791 : vector<8x1xf32>
    %cst_197 = arith.constant 0.000000e+00 : f32
    %793 = vector.broadcast %cst_197 : f32 to vector<8x1xf32>
    %794 = arith.maximumf %792, %793 : vector<8x1xf32>
    %795 = arith.mulf %787, %794 : vector<8x1xf32>
    %796 = vector.broadcast %780 : f32 to vector<8x1xf32>
    %797 = arith.addf %651, %796 : vector<8x1xf32>
    %798 = arith.subf %797, %795 : vector<8x1xf32>
    %799 = arith.divf %795, %798 : vector<8x1xf32>
    %800 = vector.broadcast %775 : f32 to vector<8x1xf32>
    %801 = arith.maximumf %645, %800 : vector<8x1xf32>
    %802 = vector.broadcast %771 : f32 to vector<8x1xf32>
    %803 = arith.minimumf %639, %802 : vector<8x1xf32>
    %804 = arith.subf %801, %803 : vector<8x1xf32>
    %805 = vector.broadcast %777 : f32 to vector<8x1xf32>
    %806 = arith.maximumf %648, %805 : vector<8x1xf32>
    %807 = vector.broadcast %773 : f32 to vector<8x1xf32>
    %808 = arith.minimumf %642, %807 : vector<8x1xf32>
    %809 = arith.subf %806, %808 : vector<8x1xf32>
    %810 = arith.mulf %804, %809 : vector<8x1xf32>
    %811 = arith.subf %810, %798 : vector<8x1xf32>
    %812 = arith.divf %811, %810 : vector<8x1xf32>
    %813 = arith.subf %799, %812 : vector<8x1xf32>
    %cst_198 = arith.constant 5.000000e+00 : f32
    %814 = vector.broadcast %cst_198 : f32 to vector<8x1xf32>
    %815 = arith.mulf %814, %769 : vector<8x1xf32>
    %cst_199 = arith.constant 1.000000e+00 : f32
    %816 = vector.broadcast %cst_199 : f32 to vector<8x1xf32>
    %817 = arith.mulf %816, %754 : vector<8x1xf32>
    %818 = arith.addf %815, %817 : vector<8x1xf32>
    %cst_200 = arith.constant 0.000000e+00 : f32
    %819 = vector.broadcast %cst_200 : f32 to vector<8x1xf32>
    %820 = arith.subf %819, %813 : vector<8x1xf32>
    %cst_201 = arith.constant 2.000000e+00 : f32
    %821 = vector.broadcast %cst_201 : f32 to vector<8x1xf32>
    %822 = arith.mulf %821, %820 : vector<8x1xf32>
    %823 = arith.addf %818, %822 : vector<8x1xf32>
    %824 = vector.broadcast %823 : vector<8x1xf32> to vector<8x384xf32>
    %825 = arith.mulf %8, %824 : vector<8x384xf32>
    %cst_202 = arith.constant dense<0.000000e+00> : vector<384xf32>
    %826 = vector.multi_reduction <add>, %825, %cst_202 [0] : vector<8x384xf32> to vector<384xf32>
    %827 = vector.shape_cast %826 : vector<384xf32> to vector<1x384xf32>
    %828 = arith.addf %740, %827 : vector<1x384xf32>
    %c1_203 = arith.constant 1 : index
    %c2_204 = arith.constant 2 : index
    %829 = memref.load %arg0[%c1_203, %c2_204] : memref<2x3xi32, #tpu.memory_space<smem>>
    %c1_205 = arith.constant 1 : index
    %c8_206 = arith.constant 8 : index
    %830 = memref.load %arg1[%c1_205, %c8_206] : memref<2x12xf32, #tpu.memory_space<smem>>
    %c1_207 = arith.constant 1 : index
    %c9_208 = arith.constant 9 : index
    %831 = memref.load %arg1[%c1_207, %c9_208] : memref<2x12xf32, #tpu.memory_space<smem>>
    %c1_209 = arith.constant 1 : index
    %c10_210 = arith.constant 10 : index
    %832 = memref.load %arg1[%c1_209, %c10_210] : memref<2x12xf32, #tpu.memory_space<smem>>
    %c1_211 = arith.constant 1 : index
    %c11_212 = arith.constant 11 : index
    %833 = memref.load %arg1[%c1_211, %c11_212] : memref<2x12xf32, #tpu.memory_space<smem>>
    %834 = vector.broadcast %829 : i32 to vector<8x5xi32>
    %835 = arith.cmpi eq, %0, %834 : vector<8x5xi32>
    %836 = arith.extui %835 : vector<8x5xi1> to vector<8x5xi32>
    %837 = arith.sitofp %836 : vector<8x5xi32> to vector<8x5xf32>
    %838 = arith.mulf %627, %837 : vector<8x5xf32>
    %cst_213 = arith.constant dense<0.000000e+00> : vector<8xf32>
    %839 = vector.multi_reduction <add>, %838, %cst_213 [1] : vector<8x5xf32> to vector<8xf32>
    %840 = vector.shape_cast %839 : vector<8xf32> to vector<8x1xf32>
    %cst_214 = arith.constant 0.000000e+00 : f32
    %841 = vector.broadcast %cst_214 : f32 to vector<8x1xf32>
    %842 = arith.subf %841, %840 : vector<8x1xf32>
    %843 = vector.broadcast %830 : f32 to vector<8x1xf32>
    %844 = arith.subf %633, %843 : vector<8x1xf32>
    %845 = math.absf %844 : vector<8x1xf32>
    %846 = vector.broadcast %831 : f32 to vector<8x1xf32>
    %847 = arith.subf %634, %846 : vector<8x1xf32>
    %848 = math.absf %847 : vector<8x1xf32>
    %849 = arith.addf %845, %848 : vector<8x1xf32>
    %850 = vector.broadcast %832 : f32 to vector<8x1xf32>
    %851 = arith.subf %635, %850 : vector<8x1xf32>
    %852 = math.absf %851 : vector<8x1xf32>
    %853 = arith.addf %849, %852 : vector<8x1xf32>
    %854 = vector.broadcast %833 : f32 to vector<8x1xf32>
    %855 = arith.subf %636, %854 : vector<8x1xf32>
    %856 = math.absf %855 : vector<8x1xf32>
    %857 = arith.addf %853, %856 : vector<8x1xf32>
    %cst_215 = arith.constant 5.000000e-01 : f32
    %858 = arith.mulf %cst_215, %832 : f32
    %859 = arith.subf %830, %858 : f32
    %cst_216 = arith.constant 5.000000e-01 : f32
    %860 = arith.mulf %cst_216, %833 : f32
    %861 = arith.subf %831, %860 : f32
    %cst_217 = arith.constant 5.000000e-01 : f32
    %862 = arith.mulf %cst_217, %832 : f32
    %863 = arith.addf %830, %862 : f32
    %cst_218 = arith.constant 5.000000e-01 : f32
    %864 = arith.mulf %cst_218, %833 : f32
    %865 = arith.addf %831, %864 : f32
    %866 = arith.subf %863, %859 : f32
    %867 = arith.subf %865, %861 : f32
    %868 = arith.mulf %866, %867 : f32
    %869 = vector.broadcast %863 : f32 to vector<8x1xf32>
    %870 = arith.minimumf %645, %869 : vector<8x1xf32>
    %871 = vector.broadcast %859 : f32 to vector<8x1xf32>
    %872 = arith.maximumf %639, %871 : vector<8x1xf32>
    %873 = arith.subf %870, %872 : vector<8x1xf32>
    %cst_219 = arith.constant 0.000000e+00 : f32
    %874 = vector.broadcast %cst_219 : f32 to vector<8x1xf32>
    %875 = arith.maximumf %873, %874 : vector<8x1xf32>
    %876 = vector.broadcast %865 : f32 to vector<8x1xf32>
    %877 = arith.minimumf %648, %876 : vector<8x1xf32>
    %878 = vector.broadcast %861 : f32 to vector<8x1xf32>
    %879 = arith.maximumf %642, %878 : vector<8x1xf32>
    %880 = arith.subf %877, %879 : vector<8x1xf32>
    %cst_220 = arith.constant 0.000000e+00 : f32
    %881 = vector.broadcast %cst_220 : f32 to vector<8x1xf32>
    %882 = arith.maximumf %880, %881 : vector<8x1xf32>
    %883 = arith.mulf %875, %882 : vector<8x1xf32>
    %884 = vector.broadcast %868 : f32 to vector<8x1xf32>
    %885 = arith.addf %651, %884 : vector<8x1xf32>
    %886 = arith.subf %885, %883 : vector<8x1xf32>
    %887 = arith.divf %883, %886 : vector<8x1xf32>
    %888 = vector.broadcast %863 : f32 to vector<8x1xf32>
    %889 = arith.maximumf %645, %888 : vector<8x1xf32>
    %890 = vector.broadcast %859 : f32 to vector<8x1xf32>
    %891 = arith.minimumf %639, %890 : vector<8x1xf32>
    %892 = arith.subf %889, %891 : vector<8x1xf32>
    %893 = vector.broadcast %865 : f32 to vector<8x1xf32>
    %894 = arith.maximumf %648, %893 : vector<8x1xf32>
    %895 = vector.broadcast %861 : f32 to vector<8x1xf32>
    %896 = arith.minimumf %642, %895 : vector<8x1xf32>
    %897 = arith.subf %894, %896 : vector<8x1xf32>
    %898 = arith.mulf %892, %897 : vector<8x1xf32>
    %899 = arith.subf %898, %886 : vector<8x1xf32>
    %900 = arith.divf %899, %898 : vector<8x1xf32>
    %901 = arith.subf %887, %900 : vector<8x1xf32>
    %cst_221 = arith.constant 5.000000e+00 : f32
    %902 = vector.broadcast %cst_221 : f32 to vector<8x1xf32>
    %903 = arith.mulf %902, %857 : vector<8x1xf32>
    %cst_222 = arith.constant 1.000000e+00 : f32
    %904 = vector.broadcast %cst_222 : f32 to vector<8x1xf32>
    %905 = arith.mulf %904, %842 : vector<8x1xf32>
    %906 = arith.addf %903, %905 : vector<8x1xf32>
    %cst_223 = arith.constant 0.000000e+00 : f32
    %907 = vector.broadcast %cst_223 : f32 to vector<8x1xf32>
    %908 = arith.subf %907, %901 : vector<8x1xf32>
    %cst_224 = arith.constant 2.000000e+00 : f32
    %909 = vector.broadcast %cst_224 : f32 to vector<8x1xf32>
    %910 = arith.mulf %909, %908 : vector<8x1xf32>
    %911 = arith.addf %906, %910 : vector<8x1xf32>
    %912 = vector.broadcast %911 : vector<8x1xf32> to vector<8x384xf32>
    %913 = arith.mulf %10, %912 : vector<8x384xf32>
    %cst_225 = arith.constant dense<0.000000e+00> : vector<384xf32>
    %914 = vector.multi_reduction <add>, %913, %cst_225 [0] : vector<8x384xf32> to vector<384xf32>
    %915 = vector.shape_cast %914 : vector<384xf32> to vector<1x384xf32>
    %916 = arith.addf %828, %915 : vector<1x384xf32>
    %cst_226 = arith.constant 1.000000e+30 : f32
    %917 = vector.broadcast %cst_226 : f32 to vector<1x384xf32>
    %918 = arith.select %4, %916, %917 : vector<1x384xi1>, vector<1x384xf32>
    %919 = vector.shape_cast %918 : vector<1x384xf32> to vector<1x1x384xf32>
    %cst_227 = arith.constant dense<0x7F800000> : vector<1xf32>
    %920 = vector.multi_reduction <minimumf>, %919, %cst_227 [1, 2] : vector<1x1x384xf32> to vector<1xf32>
    %921 = vector.shape_cast %920 : vector<1xf32> to vector<1x1x1xf32>
    %922 = vector.extract %921[0, 0, 0] : f32 from vector<1x1x1xf32>
    %923 = vector.broadcast %922 : f32 to vector<1x384xf32>
    %924 = arith.cmpf ole, %918, %923 : vector<1x384xf32>
    %cst_228 = arith.constant 3.840000e+02 : f32
    %925 = vector.broadcast %cst_228 : f32 to vector<1x384xf32>
    %926 = arith.select %924, %2, %925 : vector<1x384xi1>, vector<1x384xf32>
    %927 = vector.shape_cast %926 : vector<1x384xf32> to vector<1x1x384xf32>
    %cst_229 = arith.constant dense<0x7F800000> : vector<1xf32>
    %928 = vector.multi_reduction <minimumf>, %927, %cst_229 [1, 2] : vector<1x1x384xf32> to vector<1xf32>
    %929 = vector.shape_cast %928 : vector<1xf32> to vector<1x1x1xf32>
    %930 = vector.extract %929[0, 0, 0] : f32 from vector<1x1x1xf32>
    %931 = vector.broadcast %930 : f32 to vector<1x384xf32>
    %932 = arith.cmpf oeq, %2, %931 : vector<1x384xf32>
    %933 = arith.extui %932 : vector<1x384xi1> to vector<1x384xi32>
    %934 = arith.sitofp %933 : vector<1x384xi32> to vector<1x384xf32>
    %c4_i32_230 = arith.constant 4 : i32
    %935 = vector.broadcast %c4_i32_230 : i32 to vector<8x1xi32>
    %936 = vector.broadcast %934 : vector<1x384xf32> to vector<8x384xf32>
    %937 = arith.mulf %6, %936 : vector<8x384xf32>
    %cst_231 = arith.constant dense<0.000000e+00> : vector<8xf32>
    %938 = vector.multi_reduction <add>, %937, %cst_231 [1] : vector<8x384xf32> to vector<8xf32>
    %939 = vector.shape_cast %938 : vector<8xf32> to vector<8x1xf32>
    %cst_232 = arith.constant 5.000000e-01 : f32
    %940 = vector.broadcast %cst_232 : f32 to vector<8x1xf32>
    %941 = arith.cmpf ogt, %939, %940 : vector<8x1xf32>
    %942 = vector.broadcast %653 : i32 to vector<8x1xi32>
    %943 = arith.select %941, %942, %935 : vector<8x1xi1>, vector<8x1xi32>
    %944 = arith.mulf %633, %939 : vector<8x1xf32>
    %945 = vector.shape_cast %944 : vector<8x1xf32> to vector<1x8x1xf32>
    %cst_233 = arith.constant dense<0.000000e+00> : vector<1xf32>
    %946 = vector.multi_reduction <add>, %945, %cst_233 [1, 2] : vector<1x8x1xf32> to vector<1xf32>
    %947 = vector.shape_cast %946 : vector<1xf32> to vector<1x1x1xf32>
    %948 = vector.extract %947[0, 0, 0] : f32 from vector<1x1x1xf32>
    %949 = arith.mulf %634, %939 : vector<8x1xf32>
    %950 = vector.shape_cast %949 : vector<8x1xf32> to vector<1x8x1xf32>
    %cst_234 = arith.constant dense<0.000000e+00> : vector<1xf32>
    %951 = vector.multi_reduction <add>, %950, %cst_234 [1, 2] : vector<1x8x1xf32> to vector<1xf32>
    %952 = vector.shape_cast %951 : vector<1xf32> to vector<1x1x1xf32>
    %953 = vector.extract %952[0, 0, 0] : f32 from vector<1x1x1xf32>
    %954 = arith.mulf %635, %939 : vector<8x1xf32>
    %955 = vector.shape_cast %954 : vector<8x1xf32> to vector<1x8x1xf32>
    %cst_235 = arith.constant dense<0.000000e+00> : vector<1xf32>
    %956 = vector.multi_reduction <add>, %955, %cst_235 [1, 2] : vector<1x8x1xf32> to vector<1xf32>
    %957 = vector.shape_cast %956 : vector<1xf32> to vector<1x1x1xf32>
    %958 = vector.extract %957[0, 0, 0] : f32 from vector<1x1x1xf32>
    %959 = arith.mulf %636, %939 : vector<8x1xf32>
    %960 = vector.shape_cast %959 : vector<8x1xf32> to vector<1x8x1xf32>
    %cst_236 = arith.constant dense<0.000000e+00> : vector<1xf32>
    %961 = vector.multi_reduction <add>, %960, %cst_236 [1, 2] : vector<1x8x1xf32> to vector<1xf32>
    %962 = vector.shape_cast %961 : vector<1xf32> to vector<1x1x1xf32>
    %963 = vector.extract %962[0, 0, 0] : f32 from vector<1x1x1xf32>
    %964 = arith.subf %948, %654 : f32
    %965 = math.absf %964 : f32
    %966 = arith.subf %953, %655 : f32
    %967 = math.absf %966 : f32
    %968 = arith.addf %965, %967 : f32
    %969 = arith.subf %958, %656 : f32
    %970 = math.absf %969 : f32
    %971 = arith.addf %968, %970 : f32
    %972 = arith.subf %963, %657 : f32
    %973 = math.absf %972 : f32
    %974 = arith.addf %971, %973 : f32
    %975 = arith.addf %543, %974 : f32
    %cst_237 = arith.constant 5.000000e-01 : f32
    %976 = arith.mulf %cst_237, %958 : f32
    %977 = arith.subf %948, %976 : f32
    %cst_238 = arith.constant 5.000000e-01 : f32
    %978 = arith.mulf %cst_238, %963 : f32
    %979 = arith.subf %953, %978 : f32
    %cst_239 = arith.constant 5.000000e-01 : f32
    %980 = arith.mulf %cst_239, %958 : f32
    %981 = arith.addf %948, %980 : f32
    %cst_240 = arith.constant 5.000000e-01 : f32
    %982 = arith.mulf %cst_240, %963 : f32
    %983 = arith.addf %953, %982 : f32
    %cst_241 = arith.constant 5.000000e-01 : f32
    %984 = arith.mulf %cst_241, %656 : f32
    %985 = arith.subf %654, %984 : f32
    %cst_242 = arith.constant 5.000000e-01 : f32
    %986 = arith.mulf %cst_242, %657 : f32
    %987 = arith.subf %655, %986 : f32
    %cst_243 = arith.constant 5.000000e-01 : f32
    %988 = arith.mulf %cst_243, %656 : f32
    %989 = arith.addf %654, %988 : f32
    %cst_244 = arith.constant 5.000000e-01 : f32
    %990 = arith.mulf %cst_244, %657 : f32
    %991 = arith.addf %655, %990 : f32
    %992 = arith.minimumf %981, %989 : f32
    %993 = arith.maximumf %977, %985 : f32
    %994 = arith.subf %992, %993 : f32
    %cst_245 = arith.constant 0.000000e+00 : f32
    %995 = arith.maximumf %994, %cst_245 : f32
    %996 = arith.minimumf %983, %991 : f32
    %997 = arith.maximumf %979, %987 : f32
    %998 = arith.subf %996, %997 : f32
    %cst_246 = arith.constant 0.000000e+00 : f32
    %999 = arith.maximumf %998, %cst_246 : f32
    %1000 = arith.mulf %995, %999 : f32
    %1001 = arith.subf %981, %977 : f32
    %1002 = arith.subf %983, %979 : f32
    %1003 = arith.mulf %1001, %1002 : f32
    %1004 = arith.subf %989, %985 : f32
    %1005 = arith.subf %991, %987 : f32
    %1006 = arith.mulf %1004, %1005 : f32
    %1007 = arith.addf %1003, %1006 : f32
    %1008 = arith.subf %1007, %1000 : f32
    %1009 = arith.divf %1000, %1008 : f32
    %1010 = arith.maximumf %981, %989 : f32
    %1011 = arith.minimumf %977, %985 : f32
    %1012 = arith.subf %1010, %1011 : f32
    %1013 = arith.maximumf %983, %991 : f32
    %1014 = arith.minimumf %979, %987 : f32
    %1015 = arith.subf %1013, %1014 : f32
    %1016 = arith.mulf %1012, %1015 : f32
    %1017 = arith.subf %1016, %1008 : f32
    %1018 = arith.divf %1017, %1016 : f32
    %1019 = arith.subf %1009, %1018 : f32
    %cst_247 = arith.constant 1.000000e+00 : f32
    %1020 = arith.subf %cst_247, %1019 : f32
    %1021 = arith.addf %589, %1020 : f32
    %1022 = vector.broadcast %934 : vector<1x384xf32> to vector<8x384xf32>
    %1023 = arith.mulf %8, %1022 : vector<8x384xf32>
    %cst_248 = arith.constant dense<0.000000e+00> : vector<8xf32>
    %1024 = vector.multi_reduction <add>, %1023, %cst_248 [1] : vector<8x384xf32> to vector<8xf32>
    %1025 = vector.shape_cast %1024 : vector<8xf32> to vector<8x1xf32>
    %cst_249 = arith.constant 5.000000e-01 : f32
    %1026 = vector.broadcast %cst_249 : f32 to vector<8x1xf32>
    %1027 = arith.cmpf ogt, %1025, %1026 : vector<8x1xf32>
    %1028 = vector.broadcast %741 : i32 to vector<8x1xi32>
    %1029 = arith.select %1027, %1028, %943 : vector<8x1xi1>, vector<8x1xi32>
    %1030 = arith.mulf %633, %1025 : vector<8x1xf32>
    %1031 = vector.shape_cast %1030 : vector<8x1xf32> to vector<1x8x1xf32>
    %cst_250 = arith.constant dense<0.000000e+00> : vector<1xf32>
    %1032 = vector.multi_reduction <add>, %1031, %cst_250 [1, 2] : vector<1x8x1xf32> to vector<1xf32>
    %1033 = vector.shape_cast %1032 : vector<1xf32> to vector<1x1x1xf32>
    %1034 = vector.extract %1033[0, 0, 0] : f32 from vector<1x1x1xf32>
    %1035 = arith.mulf %634, %1025 : vector<8x1xf32>
    %1036 = vector.shape_cast %1035 : vector<8x1xf32> to vector<1x8x1xf32>
    %cst_251 = arith.constant dense<0.000000e+00> : vector<1xf32>
    %1037 = vector.multi_reduction <add>, %1036, %cst_251 [1, 2] : vector<1x8x1xf32> to vector<1xf32>
    %1038 = vector.shape_cast %1037 : vector<1xf32> to vector<1x1x1xf32>
    %1039 = vector.extract %1038[0, 0, 0] : f32 from vector<1x1x1xf32>
    %1040 = arith.mulf %635, %1025 : vector<8x1xf32>
    %1041 = vector.shape_cast %1040 : vector<8x1xf32> to vector<1x8x1xf32>
    %cst_252 = arith.constant dense<0.000000e+00> : vector<1xf32>
    %1042 = vector.multi_reduction <add>, %1041, %cst_252 [1, 2] : vector<1x8x1xf32> to vector<1xf32>
    %1043 = vector.shape_cast %1042 : vector<1xf32> to vector<1x1x1xf32>
    %1044 = vector.extract %1043[0, 0, 0] : f32 from vector<1x1x1xf32>
    %1045 = arith.mulf %636, %1025 : vector<8x1xf32>
    %1046 = vector.shape_cast %1045 : vector<8x1xf32> to vector<1x8x1xf32>
    %cst_253 = arith.constant dense<0.000000e+00> : vector<1xf32>
    %1047 = vector.multi_reduction <add>, %1046, %cst_253 [1, 2] : vector<1x8x1xf32> to vector<1xf32>
    %1048 = vector.shape_cast %1047 : vector<1xf32> to vector<1x1x1xf32>
    %1049 = vector.extract %1048[0, 0, 0] : f32 from vector<1x1x1xf32>
    %1050 = arith.subf %1034, %742 : f32
    %1051 = math.absf %1050 : f32
    %1052 = arith.subf %1039, %743 : f32
    %1053 = math.absf %1052 : f32
    %1054 = arith.addf %1051, %1053 : f32
    %1055 = arith.subf %1044, %744 : f32
    %1056 = math.absf %1055 : f32
    %1057 = arith.addf %1054, %1056 : f32
    %1058 = arith.subf %1049, %745 : f32
    %1059 = math.absf %1058 : f32
    %1060 = arith.addf %1057, %1059 : f32
    %1061 = arith.addf %975, %1060 : f32
    %cst_254 = arith.constant 5.000000e-01 : f32
    %1062 = arith.mulf %cst_254, %1044 : f32
    %1063 = arith.subf %1034, %1062 : f32
    %cst_255 = arith.constant 5.000000e-01 : f32
    %1064 = arith.mulf %cst_255, %1049 : f32
    %1065 = arith.subf %1039, %1064 : f32
    %cst_256 = arith.constant 5.000000e-01 : f32
    %1066 = arith.mulf %cst_256, %1044 : f32
    %1067 = arith.addf %1034, %1066 : f32
    %cst_257 = arith.constant 5.000000e-01 : f32
    %1068 = arith.mulf %cst_257, %1049 : f32
    %1069 = arith.addf %1039, %1068 : f32
    %cst_258 = arith.constant 5.000000e-01 : f32
    %1070 = arith.mulf %cst_258, %744 : f32
    %1071 = arith.subf %742, %1070 : f32
    %cst_259 = arith.constant 5.000000e-01 : f32
    %1072 = arith.mulf %cst_259, %745 : f32
    %1073 = arith.subf %743, %1072 : f32
    %cst_260 = arith.constant 5.000000e-01 : f32
    %1074 = arith.mulf %cst_260, %744 : f32
    %1075 = arith.addf %742, %1074 : f32
    %cst_261 = arith.constant 5.000000e-01 : f32
    %1076 = arith.mulf %cst_261, %745 : f32
    %1077 = arith.addf %743, %1076 : f32
    %1078 = arith.minimumf %1067, %1075 : f32
    %1079 = arith.maximumf %1063, %1071 : f32
    %1080 = arith.subf %1078, %1079 : f32
    %cst_262 = arith.constant 0.000000e+00 : f32
    %1081 = arith.maximumf %1080, %cst_262 : f32
    %1082 = arith.minimumf %1069, %1077 : f32
    %1083 = arith.maximumf %1065, %1073 : f32
    %1084 = arith.subf %1082, %1083 : f32
    %cst_263 = arith.constant 0.000000e+00 : f32
    %1085 = arith.maximumf %1084, %cst_263 : f32
    %1086 = arith.mulf %1081, %1085 : f32
    %1087 = arith.subf %1067, %1063 : f32
    %1088 = arith.subf %1069, %1065 : f32
    %1089 = arith.mulf %1087, %1088 : f32
    %1090 = arith.subf %1075, %1071 : f32
    %1091 = arith.subf %1077, %1073 : f32
    %1092 = arith.mulf %1090, %1091 : f32
    %1093 = arith.addf %1089, %1092 : f32
    %1094 = arith.subf %1093, %1086 : f32
    %1095 = arith.divf %1086, %1094 : f32
    %1096 = arith.maximumf %1067, %1075 : f32
    %1097 = arith.minimumf %1063, %1071 : f32
    %1098 = arith.subf %1096, %1097 : f32
    %1099 = arith.maximumf %1069, %1077 : f32
    %1100 = arith.minimumf %1065, %1073 : f32
    %1101 = arith.subf %1099, %1100 : f32
    %1102 = arith.mulf %1098, %1101 : f32
    %1103 = arith.subf %1102, %1094 : f32
    %1104 = arith.divf %1103, %1102 : f32
    %1105 = arith.subf %1095, %1104 : f32
    %cst_264 = arith.constant 1.000000e+00 : f32
    %1106 = arith.subf %cst_264, %1105 : f32
    %1107 = arith.addf %1021, %1106 : f32
    %1108 = vector.broadcast %934 : vector<1x384xf32> to vector<8x384xf32>
    %1109 = arith.mulf %10, %1108 : vector<8x384xf32>
    %cst_265 = arith.constant dense<0.000000e+00> : vector<8xf32>
    %1110 = vector.multi_reduction <add>, %1109, %cst_265 [1] : vector<8x384xf32> to vector<8xf32>
    %1111 = vector.shape_cast %1110 : vector<8xf32> to vector<8x1xf32>
    %cst_266 = arith.constant 5.000000e-01 : f32
    %1112 = vector.broadcast %cst_266 : f32 to vector<8x1xf32>
    %1113 = arith.cmpf ogt, %1111, %1112 : vector<8x1xf32>
    %1114 = vector.broadcast %829 : i32 to vector<8x1xi32>
    %1115 = arith.select %1113, %1114, %1029 : vector<8x1xi1>, vector<8x1xi32>
    %1116 = arith.mulf %633, %1111 : vector<8x1xf32>
    %1117 = vector.shape_cast %1116 : vector<8x1xf32> to vector<1x8x1xf32>
    %cst_267 = arith.constant dense<0.000000e+00> : vector<1xf32>
    %1118 = vector.multi_reduction <add>, %1117, %cst_267 [1, 2] : vector<1x8x1xf32> to vector<1xf32>
    %1119 = vector.shape_cast %1118 : vector<1xf32> to vector<1x1x1xf32>
    %1120 = vector.extract %1119[0, 0, 0] : f32 from vector<1x1x1xf32>
    %1121 = arith.mulf %634, %1111 : vector<8x1xf32>
    %1122 = vector.shape_cast %1121 : vector<8x1xf32> to vector<1x8x1xf32>
    %cst_268 = arith.constant dense<0.000000e+00> : vector<1xf32>
    %1123 = vector.multi_reduction <add>, %1122, %cst_268 [1, 2] : vector<1x8x1xf32> to vector<1xf32>
    %1124 = vector.shape_cast %1123 : vector<1xf32> to vector<1x1x1xf32>
    %1125 = vector.extract %1124[0, 0, 0] : f32 from vector<1x1x1xf32>
    %1126 = arith.mulf %635, %1111 : vector<8x1xf32>
    %1127 = vector.shape_cast %1126 : vector<8x1xf32> to vector<1x8x1xf32>
    %cst_269 = arith.constant dense<0.000000e+00> : vector<1xf32>
    %1128 = vector.multi_reduction <add>, %1127, %cst_269 [1, 2] : vector<1x8x1xf32> to vector<1xf32>
    %1129 = vector.shape_cast %1128 : vector<1xf32> to vector<1x1x1xf32>
    %1130 = vector.extract %1129[0, 0, 0] : f32 from vector<1x1x1xf32>
    %1131 = arith.mulf %636, %1111 : vector<8x1xf32>
    %1132 = vector.shape_cast %1131 : vector<8x1xf32> to vector<1x8x1xf32>
    %cst_270 = arith.constant dense<0.000000e+00> : vector<1xf32>
    %1133 = vector.multi_reduction <add>, %1132, %cst_270 [1, 2] : vector<1x8x1xf32> to vector<1xf32>
    %1134 = vector.shape_cast %1133 : vector<1xf32> to vector<1x1x1xf32>
    %1135 = vector.extract %1134[0, 0, 0] : f32 from vector<1x1x1xf32>
    %1136 = arith.subf %1120, %830 : f32
    %1137 = math.absf %1136 : f32
    %1138 = arith.subf %1125, %831 : f32
    %1139 = math.absf %1138 : f32
    %1140 = arith.addf %1137, %1139 : f32
    %1141 = arith.subf %1130, %832 : f32
    %1142 = math.absf %1141 : f32
    %1143 = arith.addf %1140, %1142 : f32
    %1144 = arith.subf %1135, %833 : f32
    %1145 = math.absf %1144 : f32
    %1146 = arith.addf %1143, %1145 : f32
    %1147 = arith.addf %1061, %1146 : f32
    %cst_271 = arith.constant 5.000000e-01 : f32
    %1148 = arith.mulf %cst_271, %1130 : f32
    %1149 = arith.subf %1120, %1148 : f32
    %cst_272 = arith.constant 5.000000e-01 : f32
    %1150 = arith.mulf %cst_272, %1135 : f32
    %1151 = arith.subf %1125, %1150 : f32
    %cst_273 = arith.constant 5.000000e-01 : f32
    %1152 = arith.mulf %cst_273, %1130 : f32
    %1153 = arith.addf %1120, %1152 : f32
    %cst_274 = arith.constant 5.000000e-01 : f32
    %1154 = arith.mulf %cst_274, %1135 : f32
    %1155 = arith.addf %1125, %1154 : f32
    %cst_275 = arith.constant 5.000000e-01 : f32
    %1156 = arith.mulf %cst_275, %832 : f32
    %1157 = arith.subf %830, %1156 : f32
    %cst_276 = arith.constant 5.000000e-01 : f32
    %1158 = arith.mulf %cst_276, %833 : f32
    %1159 = arith.subf %831, %1158 : f32
    %cst_277 = arith.constant 5.000000e-01 : f32
    %1160 = arith.mulf %cst_277, %832 : f32
    %1161 = arith.addf %830, %1160 : f32
    %cst_278 = arith.constant 5.000000e-01 : f32
    %1162 = arith.mulf %cst_278, %833 : f32
    %1163 = arith.addf %831, %1162 : f32
    %1164 = arith.minimumf %1153, %1161 : f32
    %1165 = arith.maximumf %1149, %1157 : f32
    %1166 = arith.subf %1164, %1165 : f32
    %cst_279 = arith.constant 0.000000e+00 : f32
    %1167 = arith.maximumf %1166, %cst_279 : f32
    %1168 = arith.minimumf %1155, %1163 : f32
    %1169 = arith.maximumf %1151, %1159 : f32
    %1170 = arith.subf %1168, %1169 : f32
    %cst_280 = arith.constant 0.000000e+00 : f32
    %1171 = arith.maximumf %1170, %cst_280 : f32
    %1172 = arith.mulf %1167, %1171 : f32
    %1173 = arith.subf %1153, %1149 : f32
    %1174 = arith.subf %1155, %1151 : f32
    %1175 = arith.mulf %1173, %1174 : f32
    %1176 = arith.subf %1161, %1157 : f32
    %1177 = arith.subf %1163, %1159 : f32
    %1178 = arith.mulf %1176, %1177 : f32
    %1179 = arith.addf %1175, %1178 : f32
    %1180 = arith.subf %1179, %1172 : f32
    %1181 = arith.divf %1172, %1180 : f32
    %1182 = arith.maximumf %1153, %1161 : f32
    %1183 = arith.minimumf %1149, %1157 : f32
    %1184 = arith.subf %1182, %1183 : f32
    %1185 = arith.maximumf %1155, %1163 : f32
    %1186 = arith.minimumf %1151, %1159 : f32
    %1187 = arith.subf %1185, %1186 : f32
    %1188 = arith.mulf %1184, %1187 : f32
    %1189 = arith.subf %1188, %1180 : f32
    %1190 = arith.divf %1189, %1188 : f32
    %1191 = arith.subf %1181, %1190 : f32
    %cst_281 = arith.constant 1.000000e+00 : f32
    %1192 = arith.subf %cst_281, %1191 : f32
    %1193 = arith.addf %1107, %1192 : f32
    %1194 = vector.broadcast %1115 : vector<8x1xi32> to vector<8x5xi32>
    %1195 = arith.cmpi eq, %0, %1194 : vector<8x5xi32>
    %1196 = arith.extui %1195 : vector<8x5xi1> to vector<8x5xi32>
    %1197 = arith.sitofp %1196 : vector<8x5xi32> to vector<8x5xf32>
    %1198 = arith.mulf %1197, %632 : vector<8x5xf32>
    %cst_282 = arith.constant dense<0.000000e+00> : vector<8xf32>
    %1199 = vector.multi_reduction <add>, %1198, %cst_282 [1] : vector<8x5xf32> to vector<8xf32>
    %1200 = vector.shape_cast %1199 : vector<8xf32> to vector<8x1xf32>
    %cst_283 = arith.constant 0.000000e+00 : f32
    %1201 = vector.broadcast %cst_283 : f32 to vector<8x1xf32>
    %1202 = arith.subf %1201, %1200 : vector<8x1xf32>
    %c4_i32_284 = arith.constant 4 : i32
    %1203 = vector.broadcast %c4_i32_284 : i32 to vector<8x1xi32>
    %1204 = arith.cmpi eq, %1115, %1203 : vector<8x1xi32>
    %cst_285 = arith.constant 1.000000e-01 : f32
    %cst_286 = arith.constant 1.000000e+00 : f32
    %1205 = vector.broadcast %cst_285 : f32 to vector<8x1xf32>
    %1206 = vector.broadcast %cst_286 : f32 to vector<8x1xf32>
    %1207 = arith.select %1204, %1205, %1206 : vector<8x1xi1>, vector<8x1xf32>
    %1208 = arith.mulf %1202, %1207 : vector<8x1xf32>
    %1209 = vector.shape_cast %1208 : vector<8x1xf32> to vector<1x8x1xf32>
    %cst_287 = arith.constant dense<0.000000e+00> : vector<1xf32>
    %1210 = vector.multi_reduction <add>, %1209, %cst_287 [1, 2] : vector<1x8x1xf32> to vector<1xf32>
    %1211 = vector.shape_cast %1210 : vector<1xf32> to vector<1x1x1xf32>
    %1212 = vector.extract %1211[0, 0, 0] : f32 from vector<1x1x1xf32>
    %1213 = arith.addf %609, %1212 : f32
    %1214 = vector.shape_cast %1207 : vector<8x1xf32> to vector<1x8x1xf32>
    %cst_288 = arith.constant dense<0.000000e+00> : vector<1xf32>
    %1215 = vector.multi_reduction <add>, %1214, %cst_288 [1, 2] : vector<1x8x1xf32> to vector<1xf32>
    %1216 = vector.shape_cast %1215 : vector<1xf32> to vector<1x1x1xf32>
    %1217 = vector.extract %1216[0, 0, 0] : f32 from vector<1x1x1xf32>
    %1218 = arith.addf %614, %1217 : f32
    %1219 = arith.divf %1213, %1218 : f32
    %c0_289 = arith.constant 0 : index
    %c0_290 = arith.constant 0 : index
    %1220 = memref.load %arg5[%c0_289, %c0_290] : memref<1x3xf32, #tpu.memory_space<smem>>
    memref.store %1219, %arg5[%c0_289, %c0_290] : memref<1x3xf32, #tpu.memory_space<smem>>
    %cst_291 = arith.constant 6.000000e+00 : f32
    %1221 = arith.divf %1147, %cst_291 : f32
    %c0_292 = arith.constant 0 : index
    %c1_293 = arith.constant 1 : index
    %1222 = memref.load %arg5[%c0_292, %c1_293] : memref<1x3xf32, #tpu.memory_space<smem>>
    memref.store %1221, %arg5[%c0_292, %c1_293] : memref<1x3xf32, #tpu.memory_space<smem>>
    %cst_294 = arith.constant 6.000000e+00 : f32
    %1223 = arith.divf %1193, %cst_294 : f32
    %c0_295 = arith.constant 0 : index
    %c2_296 = arith.constant 2 : index
    %1224 = memref.load %arg5[%c0_295, %c2_296] : memref<1x3xf32, #tpu.memory_space<smem>>
    memref.store %1223, %arg5[%c0_295, %c2_296] : memref<1x3xf32, #tpu.memory_space<smem>>
    return
  }
}

</mosaic_0001>

<llo_original>
// kernel: set_criterion_forward.1
$region0: #{set_criterion_forward.1}
  #allocation0 [shape = 'u32[]', space=smem, size = 0x4, offset = 0x4, fixed_abs, tag = 'smem constant byte address 0x4 - core index']
  #allocation1 [shape = 'u32[72,128]{1,0:T(1,128)}', space=vmem, size = 0x9000, scoped, tag = 'internal scratch']
  %s0 = inlined_call_operand.vmem [shape: s32[2,3], index: 0, kind: input, shape index: {}]
  %s1 = inlined_call_operand.vmem [shape: f32[2,12], index: 1, kind: input, shape index: {}]
  %s2 = inlined_call_operand.vmem [shape: f32[2,8,5], index: 2, kind: input, shape index: {}]
  %s3 = inlined_call_operand.vmem [shape: f32[2,8,4], index: 3, kind: input, shape index: {}]
  %s4 = inlined_call_operand.hbm [shape: f32[3,8,384], index: 4, kind: input, shape index: {}]
  %s5 = inlined_call_operand.vmem [shape: f32[1,3], index: 5, kind: output, shape index: {}]
  %s6 = sld [smem:[#allocation0]]
  $region42: #{set_criterion_forward.1} parent=0
    _
  %s8 = ssub.s32 1, %s6
  %s9 = scalar_select 0, %s8, %s6
  $region1: #{set_criterion_forward.1} parent=0
    #allocation2 [shape = 'u8[1024]{0}', space=smem, size = 0x400, scoped, tag = 'input window, operand 0, single buffered']
    #allocation3 [shape = 's32[1]{0}', space=sflag, size = 0x4, scoped, tag = 'scoped memory for set_criterion_forward.1']
    #allocation4 [shape = 's32[1]{0}', space=sflag, size = 0x4, scoped, tag = 'scoped memory for set_criterion_forward.1']
    #allocation5 [shape = 's32[1]{0}', space=sflag, size = 0x4, scoped, tag = 'scoped memory for set_criterion_forward.1']
    #allocation6 [shape = 'u8[1024]{0}', space=smem, size = 0x400, scoped, tag = 'input window, operand 1, single buffered']
    #allocation7 [shape = 's32[1]{0}', space=sflag, size = 0x4, scoped, tag = 'scoped memory for set_criterion_forward.1']
    #allocation8 [shape = 'u8[36864]{0}', space=vmem, size = 0x9000, scoped, tag = 'input window, operand 4, single buffered']
    #allocation9 [shape = 'u8[512]{0}', space=smem, size = 0x200, scoped, tag = 'output window, operand 0, single buffered']
    %10 = vsyncpa [#allocation4], 0
    %11 = vsyncpa [#allocation7], 0
    %12 = vsyncpa [#allocation3], 0
    %13 = vsyncpa [#allocation5], 0
    // Predicated region
    $region2: #{set_criterion_forward.1} parent=1 // pred_check
      _
    $region3: #{set_criterion_forward.1} parent=1 // pred_check_branch
      %15 = sbr.rel (0) target = $region5
    $region4: #{set_criterion_forward.1} parent=1 // pred_region
      %17 = vsyncadd [#allocation4], 0
      %s19 = sshll.u32 %s0, 4
      %s20 = int_to_ptr.vmem [resolvable:$true] %s19
      %22 = dma.vmem_to_smem %s20, 32, [#allocation2], [#allocation4]
    $region5: #{set_criterion_forward.1} parent=1 // pred_fallthru
      _
    // Predicated region
    $region6: #{set_criterion_forward.1} parent=1 // pred_check
      _
    $region7: #{set_criterion_forward.1} parent=1 // pred_check_branch
      %24 = sbr.rel (0) target = $region9
    $region8: #{set_criterion_forward.1} parent=1 // pred_region
      %26 = vsyncadd [#allocation7], 0
      %s28 = sshll.u32 %s1, 4
      %s29 = int_to_ptr.vmem [resolvable:$true] %s28
      %31 = dma.vmem_to_smem %s29, 32, [#allocation6], [#allocation7]
    $region9: #{set_criterion_forward.1} parent=1 // pred_fallthru
      _
    // Predicated region
    $region10: #{set_criterion_forward.1} parent=1 // pred_check
      _
    $region11: #{set_criterion_forward.1} parent=1 // pred_check_branch
      %33 = sbr.rel (0) target = $region13
    $region12: #{set_criterion_forward.1} parent=1 // pred_region
      _
    $region13: #{set_criterion_forward.1} parent=1 // pred_fallthru
      _
    // Predicated region
    $region14: #{set_criterion_forward.1} parent=1 // pred_check
      _
    $region15: #{set_criterion_forward.1} parent=1 // pred_check_branch
      %35 = sbr.rel (0) target = $region17
    $region16: #{set_criterion_forward.1} parent=1 // pred_region
      _
    $region17: #{set_criterion_forward.1} parent=1 // pred_fallthru
      _
    // Predicated region
    $region18: #{set_criterion_forward.1} parent=1 // pred_check
      _
    $region19: #{set_criterion_forward.1} parent=1 // pred_check_branch
      %37 = sbr.rel (0) target = $region21
    $region20: #{set_criterion_forward.1} parent=1 // pred_region
      %39 = vsyncadd [#allocation3], 0
      %s40 = sshll.u32 %s4, 4
      %s41 = int_to_ptr.hbm [resolvable:$true] %s40
      %s42 = sshll.u32 [#allocation8], 4
      %s43 = int_to_ptr.vmem [resolvable:$true] %s42
      %48 = dma.hbm_to_vmem [thread:$0]  %s41, 1152, %s43, [#allocation3], 384, 384, 24
    $region21: #{set_criterion_forward.1} parent=1 // pred_fallthru
      _
    // Predicated region
    $region22: #{set_criterion_forward.1} parent=1 // pred_check
      _
    $region23: #{set_criterion_forward.1} parent=1 // pred_check_branch
      %50 = sbr.rel (0) target = $region25
    $region24: #{set_criterion_forward.1} parent=1 // pred_region
      %52 = dma.done [#allocation4], 32
    $region25: #{set_criterion_forward.1} parent=1 // pred_fallthru
      _
    // Predicated region
    $region26: #{set_criterion_forward.1} parent=1 // pred_check
      _
    $region27: #{set_criterion_forward.1} parent=1 // pred_check_branch
      %54 = sbr.rel (0) target = $region29
    $region28: #{set_criterion_forward.1} parent=1 // pred_region
      %56 = dma.done [#allocation7], 32
    $region29: #{set_criterion_forward.1} parent=1 // pred_fallthru
      _
    // Predicated region
    $region30: #{set_criterion_forward.1} parent=1 // pred_check
      _
    $region31: #{set_criterion_forward.1} parent=1 // pred_check_branch
      %58 = sbr.rel (0) target = $region33
    $region32: #{set_criterion_forward.1} parent=1 // pred_region
      %60 = dma.done [#allocation3], 1152
    $region33: #{set_criterion_forward.1} parent=1 // pred_fallthru
      _
    %61 = sfence
    %v62 = vlaneseq
    %v63 = vand.u32 %v62, 127
    %v64 = vadd.s32 %v63, 128
    %v65 = vadd.s32 %v63, 256
    %v66 = vcvt.s32.f32 %v63
    %v67 = vcvt.s32.f32 %v64
    %v68 = vcvt.s32.f32 %v65
    %vm69 = vcmp.lt.s32.totalorder %v63, 336
    %vm70 = vcmp.lt.s32.totalorder %v64, 336
    %vm71 = vcmp.lt.s32.totalorder %v65, 336
    %v72 = vld [vmem:[#allocation8] sm:$0xff]
    %v73 = vld [vmem:[#allocation8 + $0x8] sm:$0xff]
    %v74 = vld [vmem:[#allocation8 + $0x10] sm:$0xff]
    %s75 = scalar_lea.vmem [#allocation8], 24
    %v76 = vld [vmem:[%s75] sm:$0xff]
    %v77 = vld [vmem:[%s75 + $0x8] sm:$0xff]
    %v78 = vld [vmem:[%s75 + $0x10] sm:$0xff]
    %s79 = scalar_lea.vmem [#allocation8], 48
    %v80 = vld [vmem:[%s79] sm:$0xff]
    %v81 = vld [vmem:[%s79 + $0x8] sm:$0xff]
    %v82 = vld [vmem:[%s79 + $0x10] sm:$0xff]
    %v83 = vld [vmem:[%s2] sm:$0xff]
    %v84 = vld [vmem:[%s3] sm:$0xff]
    %vm85 = vcmask 39936
    %v86 = vsel %vm85, %v83, -inf
    %87 = vmax.xlane.f32.xlu0 %v86
    %v88 = vpop.xlane.xlu0 %87
    %v89 = vsub.f32 %v83, %v88
    %v90 = vmul.f32 %v89, 1.442695
    %v91 = vpow.pop %v90
    %v92 = vsel %vm85, %v91, 0.0
    %93 = vadd.xlane.f32.xlu0 %v92
    %v94 = vpop.xlane.xlu0 %93
    %v95 = vrcp.pop %v94
    %v96 = vmul.f32 %v94, %v95
    %v97 = vsub.f32 1.0, %v96
    %v98 = vmul.f32 %v95, %v97
    %v99 = vadd.f32 %v95, %v98
    %vm100 = vweird.f32 %v94
    %vm101 = vweird.f32 %v95
    %vm102 = vmor %vm100, %vm101
    %v103 = vsel %vm102, %v95, %v99
    %v104 = vand.u32 2147483647, %v94
    %vm105 = vcmp.eq.f32.partialorder %v104, 8.507059e+37
    %v106 = vand.u32 %v94, 2147483648
    %v107 = vor.u32 1.1754944e-38, %v106
    %v108 = vsel %vm105, %v107, %v103
    %v109 = vmul.f32 %v91, %v108
    %v110 = vlog2.pop %v94
    %v111 = vmul.f32 %v110, 0.6931472
    %v112 = vsub.f32 %v89, %v111
    %v113 = vmul.f32 %v84, 0.5
    %115 = vrot.lane.b32.xlu0 %v113, 126
    %v116 = vpop.permute.xlu0 %115
    %v118 = vsub.f32 %v84, %v116
    %v119 = vadd.f32 %v84, %v116
    %v120 = vsub.f32 %v119, %v118
    %122 = vrot.lane.b32.xlu0 %v120, 127
    %v123 = vpop.permute.xlu0 %122
    %v125 = vmul.f32 %v120, %v123
    %s126 = sld [smem:[#allocation2]]
    %s127 = sld [smem:[#allocation6]]
    %s128 = sld [smem:[#allocation6 + $0x1]]
    %s129 = sld [smem:[#allocation6 + $0x2]]
    %s130 = sld [smem:[#allocation6 + $0x3]]
    %v131 = vstv %s126
    %vm132 = vcmp.eq.s32.totalorder %v63, %v131
    %v133 = vsel %vm132, 1, 0
    %v134 = vcvt.s32.f32 %v133
    %v135 = vmul.f32 %v109, %v134
    %v136 = vsel %vm85, %v135, 0.0
    %137 = vadd.xlane.f32.xlu0 %v136
    %v138 = vpop.xlane.xlu0 %137
    %v139 = vsub.f32 0.0, %v138
    %v140 = vstv %s127
    %v141 = vsub.f32 %v84, %v140
    %v142 = vand.u32 2147483647, %v141
    %v143 = vstv %s128
    %v144 = vsub.f32 %v84, %v143
    %v145 = vand.u32 2147483647, %v144
    %147 = vrot.lane.b32.xlu0 %v145, 127
    %v148 = vpop.permute.xlu0 %147
    %v150 = vadd.f32 %v142, %v148
    %v151 = vstv %s129
    %v152 = vsub.f32 %v84, %v151
    %v153 = vand.u32 2147483647, %v152
    %155 = vrot.lane.b32.xlu0 %v153, 126
    %v156 = vpop.permute.xlu0 %155
    %v158 = vadd.f32 %v150, %v156
    %v159 = vstv %s130
    %v160 = vsub.f32 %v84, %v159
    %v161 = vand.u32 2147483647, %v160
    %163 = vrot.lane.b32.xlu0 %v161, 125
    %v164 = vpop.permute.xlu0 %163
    %v166 = vadd.f32 %v158, %v164
    %s167 = smul.f32 %s129, 0.5
    %s168 = ssub.f32 %s127, %s167
    %s169 = smul.f32 %s130, 0.5
    %s170 = ssub.f32 %s128, %s169
    %s171 = sadd.f32 %s127, %s167
    %s172 = sadd.f32 %s128, %s169
    %s173 = ssub.f32 %s171, %s168
    %s174 = ssub.f32 %s172, %s170
    %s175 = smul.f32 %s173, %s174
    %v176 = vstv %s171
    %v177 = vmin.f32 %v119, %v176
    %v178 = vstv %s168
    %v179 = vmax.f32 %v118, %v178
    %v180 = vsub.f32 %v177, %v179
    %v181 = vmax.f32 %v180, 0.0
    %v182 = vstv %s172
    %v183 = vmin.f32 %v119, %v182
    %v184 = vstv %s170
    %v185 = vmax.f32 %v118, %v184
    %v186 = vsub.f32 %v183, %v185
    %v187 = vmax.f32 %v186, 0.0
    %189 = vrot.lane.b32.xlu0 %v187, 127
    %v190 = vpop.permute.xlu0 %189
    %v192 = vmul.f32 %v181, %v190
    %v193 = vstv %s175
    %v194 = vadd.f32 %v125, %v193
    %v195 = vsub.f32 %v194, %v192
    %v196 = vrcp.pop %v195
    %v197 = vmul.f32 %v195, %v196
    %v198 = vsub.f32 1.0, %v197
    %v199 = vmul.f32 %v196, %v198
    %v200 = vadd.f32 %v196, %v199
    %vm201 = vweird.f32 %v195
    %vm202 = vweird.f32 %v196
    %vm203 = vmor %vm201, %vm202
    %v204 = vsel %vm203, %v196, %v200
    %v205 = vand.u32 2147483647, %v195
    %vm206 = vcmp.eq.f32.partialorder %v205, 8.507059e+37
    %v207 = vand.u32 %v195, 2147483648
    %v208 = vor.u32 1.1754944e-38, %v207
    %v209 = vsel %vm206, %v208, %v204
    %v210 = vmul.f32 %v192, %v209
    %v211 = vmax.f32 %v119, %v176
    %v212 = vmin.f32 %v118, %v178
    %v213 = vsub.f32 %v211, %v212
    %v214 = vmax.f32 %v119, %v182
    %v215 = vmin.f32 %v118, %v184
    %v216 = vsub.f32 %v214, %v215
    %218 = vrot.lane.b32.xlu0 %v216, 127
    %v219 = vpop.permute.xlu0 %218
    %v221 = vmul.f32 %v213, %v219
    %v222 = vsub.f32 %v221, %v195
    %v223 = vrcp.pop %v221
    %v224 = vmul.f32 %v221, %v223
    %v225 = vsub.f32 1.0, %v224
    %v226 = vmul.f32 %v223, %v225
    %v227 = vadd.f32 %v223, %v226
    %vm228 = vweird.f32 %v221
    %vm229 = vweird.f32 %v223
    %vm230 = vmor %vm228, %vm229
    %v231 = vsel %vm230, %v223, %v227
    %v232 = vand.u32 2147483647, %v221
    %vm233 = vcmp.eq.f32.partialorder %v232, 8.507059e+37
    %v234 = vand.u32 %v221, 2147483648
    %v235 = vor.u32 1.1754944e-38, %v234
    %v236 = vsel %vm233, %v235, %v231
    %v237 = vmul.f32 %v222, %v236
    %v238 = vsub.f32 %v210, %v237
    %v239 = vmul.f32 %v166, 5.0
    %v240 = vadd.f32 %v239, %v139
    %v241 = vsub.f32 0.0, %v238
    %v242 = vmul.f32 %v241, 2.0
    %v243 = vadd.f32 %v240, %v242
    %245 = vset.pattern.permute.xlu0 0
    %246 = vperm.xlu0 %245, %v243
    %v247 = vpop.permute.xlu0 %246
    %v249 = vmul.f32 %v72, %v247
    %v250 = vmul.f32 %v73, %v247
    %v251 = vmul.f32 %v74, %v247
    %v252 = vrot.slane %v249, 4
    %v253 = vadd.f32 %v249, %v252
    %v254 = vrot.slane %v253, 2
    %v255 = vadd.f32 %v253, %v254
    %v256 = vrot.slane %v255, 1
    %v257 = vadd.f32 %v255, %v256
    %v258 = vrot.slane %v250, 4
    %v259 = vadd.f32 %v250, %v258
    %v260 = vrot.slane %v259, 2
    %v261 = vadd.f32 %v259, %v260
    %v262 = vrot.slane %v261, 1
    %v263 = vadd.f32 %v261, %v262
    %v264 = vrot.slane %v251, 4
    %v265 = vadd.f32 %v251, %v264
    %v266 = vrot.slane %v265, 2
    %v267 = vadd.f32 %v265, %v266
    %v268 = vrot.slane %v267, 1
    %v269 = vadd.f32 %v267, %v268
    %v270 = vadd.f32 %v257, 0.0
    %v271 = vadd.f32 %v263, 0.0
    %v272 = vadd.f32 %v269, 0.0
    %s273 = sld [smem:[#allocation2 + $0x1]]
    %s274 = sld [smem:[#allocation6 + $0x4]]
    %s275 = sld [smem:[#allocation6 + $0x5]]
    %s276 = sld [smem:[#allocation6 + $0x6]]
    %s277 = sld [smem:[#allocation6 + $0x7]]
    %v278 = vstv %s273
    %vm279 = vcmp.eq.s32.totalorder %v63, %v278
    %v280 = vsel %vm279, 1, 0
    %v281 = vcvt.s32.f32 %v280
    %v282 = vmul.f32 %v109, %v281
    %v283 = vsel %vm85, %v282, 0.0
    %284 = vadd.xlane.f32.xlu0 %v283
    %v285 = vpop.xlane.xlu0 %284
    %v286 = vsub.f32 0.0, %v285
    %v287 = vstv %s274
    %v288 = vsub.f32 %v84, %v287
    %v289 = vand.u32 2147483647, %v288
    %v290 = vstv %s275
    %v291 = vsub.f32 %v84, %v290
    %v292 = vand.u32 2147483647, %v291
    %294 = vrot.lane.b32.xlu0 %v292, 127
    %v295 = vpop.permute.xlu0 %294
    %v297 = vadd.f32 %v289, %v295
    %v298 = vstv %s276
    %v299 = vsub.f32 %v84, %v298
    %v300 = vand.u32 2147483647, %v299
    %302 = vrot.lane.b32.xlu0 %v300, 126
    %v303 = vpop.permute.xlu0 %302
    %v305 = vadd.f32 %v297, %v303
    %v306 = vstv %s277
    %v307 = vsub.f32 %v84, %v306
    %v308 = vand.u32 2147483647, %v307
    %310 = vrot.lane.b32.xlu0 %v308, 125
    %v311 = vpop.permute.xlu0 %310
    %v313 = vadd.f32 %v305, %v311
    %s314 = smul.f32 %s276, 0.5
    %s315 = ssub.f32 %s274, %s314
    %s316 = smul.f32 %s277, 0.5
    %s317 = ssub.f32 %s275, %s316
    %s318 = sadd.f32 %s274, %s314
    %s319 = sadd.f32 %s275, %s316
    %s320 = ssub.f32 %s318, %s315
    %s321 = ssub.f32 %s319, %s317
    %s322 = smul.f32 %s320, %s321
    %v323 = vstv %s318
    %v324 = vmin.f32 %v119, %v323
    %v325 = vstv %s315
    %v326 = vmax.f32 %v118, %v325
    %v327 = vsub.f32 %v324, %v326
    %v328 = vmax.f32 %v327, 0.0
    %v329 = vstv %s319
    %v330 = vmin.f32 %v119, %v329
    %v331 = vstv %s317
    %v332 = vmax.f32 %v118, %v331
    %v333 = vsub.f32 %v330, %v332
    %v334 = vmax.f32 %v333, 0.0
    %336 = vrot.lane.b32.xlu0 %v334, 127
    %v337 = vpop.permute.xlu0 %336
    %v339 = vmul.f32 %v328, %v337
    %v340 = vstv %s322
    %v341 = vadd.f32 %v125, %v340
    %v342 = vsub.f32 %v341, %v339
    %v343 = vrcp.pop %v342
    %v344 = vmul.f32 %v342, %v343
    %v345 = vsub.f32 1.0, %v344
    %v346 = vmul.f32 %v343, %v345
    %v347 = vadd.f32 %v343, %v346
    %vm348 = vweird.f32 %v342
    %vm349 = vweird.f32 %v343
    %vm350 = vmor %vm348, %vm349
    %v351 = vsel %vm350, %v343, %v347
    %v352 = vand.u32 2147483647, %v342
    %vm353 = vcmp.eq.f32.partialorder %v352, 8.507059e+37
    %v354 = vand.u32 %v342, 2147483648
    %v355 = vor.u32 1.1754944e-38, %v354
    %v356 = vsel %vm353, %v355, %v351
    %v357 = vmul.f32 %v339, %v356
    %v358 = vmax.f32 %v119, %v323
    %v359 = vmin.f32 %v118, %v325
    %v360 = vsub.f32 %v358, %v359
    %v361 = vmax.f32 %v119, %v329
    %v362 = vmin.f32 %v118, %v331
    %v363 = vsub.f32 %v361, %v362
    %365 = vrot.lane.b32.xlu0 %v363, 127
    %v366 = vpop.permute.xlu0 %365
    %v368 = vmul.f32 %v360, %v366
    %v369 = vsub.f32 %v368, %v342
    %v370 = vrcp.pop %v368
    %v371 = vmul.f32 %v368, %v370
    %v372 = vsub.f32 1.0, %v371
    %v373 = vmul.f32 %v370, %v372
    %v374 = vadd.f32 %v370, %v373
    %vm375 = vweird.f32 %v368
    %vm376 = vweird.f32 %v370
    %vm377 = vmor %vm375, %vm376
    %v378 = vsel %vm377, %v370, %v374
    %v379 = vand.u32 2147483647, %v368
    %vm380 = vcmp.eq.f32.partialorder %v379, 8.507059e+37
    %v381 = vand.u32 %v368, 2147483648
    %v382 = vor.u32 1.1754944e-38, %v381
    %v383 = vsel %vm380, %v382, %v378
    %v384 = vmul.f32 %v369, %v383
    %v385 = vsub.f32 %v357, %v384
    %v386 = vmul.f32 %v313, 5.0
    %v387 = vadd.f32 %v386, %v286
    %v388 = vsub.f32 0.0, %v385
    %v389 = vmul.f32 %v388, 2.0
    %v390 = vadd.f32 %v387, %v389
    %392 = vset.pattern.permute.xlu0 0
    %393 = vperm.xlu0 %392, %v390
    %v394 = vpop.permute.xlu0 %393
    %v396 = vmul.f32 %v76, %v394
    %v397 = vmul.f32 %v77, %v394
    %v398 = vmul.f32 %v78, %v394
    %v399 = vrot.slane %v396, 4
    %v400 = vadd.f32 %v396, %v399
    %v401 = vrot.slane %v400, 2
    %v402 = vadd.f32 %v400, %v401
    %v403 = vrot.slane %v402, 1
    %v404 = vadd.f32 %v402, %v403
    %v405 = vrot.slane %v397, 4
    %v406 = vadd.f32 %v397, %v405
    %v407 = vrot.slane %v406, 2
    %v408 = vadd.f32 %v406, %v407
    %v409 = vrot.slane %v408, 1
    %v410 = vadd.f32 %v408, %v409
    %v411 = vrot.slane %v398, 4
    %v412 = vadd.f32 %v398, %v411
    %v413 = vrot.slane %v412, 2
    %v414 = vadd.f32 %v412, %v413
    %v415 = vrot.slane %v414, 1
    %v416 = vadd.f32 %v414, %v415
    %v417 = vadd.f32 %v270, %v404
    %v418 = vadd.f32 %v271, %v410
    %v419 = vadd.f32 %v272, %v416
    %s420 = sld [smem:[#allocation2 + $0x2]]
    %s421 = sld [smem:[#allocation6 + $0x8]]
    %s422 = sld [smem:[#allocation6 + $0x9]]
    %s423 = sld [smem:[#allocation6 + $0xa]]
    %s424 = sld [smem:[#allocation6 + $0xb]]
    %v425 = vstv %s420
    %vm426 = vcmp.eq.s32.totalorder %v63, %v425
    %v427 = vsel %vm426, 1, 0
    %v428 = vcvt.s32.f32 %v427
    %v429 = vmul.f32 %v109, %v428
    %v430 = vsel %vm85, %v429, 0.0
    %431 = vadd.xlane.f32.xlu0 %v430
    %v432 = vpop.xlane.xlu0 %431
    %v433 = vsub.f32 0.0, %v432
    %v434 = vstv %s421
    %v435 = vsub.f32 %v84, %v434
    %v436 = vand.u32 2147483647, %v435
    %v437 = vstv %s422
    %v438 = vsub.f32 %v84, %v437
    %v439 = vand.u32 2147483647, %v438
    %441 = vrot.lane.b32.xlu0 %v439, 127
    %v442 = vpop.permute.xlu0 %441
    %v444 = vadd.f32 %v436, %v442
    %v445 = vstv %s423
    %v446 = vsub.f32 %v84, %v445
    %v447 = vand.u32 2147483647, %v446
    %449 = vrot.lane.b32.xlu0 %v447, 126
    %v450 = vpop.permute.xlu0 %449
    %v452 = vadd.f32 %v444, %v450
    %v453 = vstv %s424
    %v454 = vsub.f32 %v84, %v453
    %v455 = vand.u32 2147483647, %v454
    %457 = vrot.lane.b32.xlu0 %v455, 125
    %v458 = vpop.permute.xlu0 %457
    %v460 = vadd.f32 %v452, %v458
    %s461 = smul.f32 %s423, 0.5
    %s462 = ssub.f32 %s421, %s461
    %s463 = smul.f32 %s424, 0.5
    %s464 = ssub.f32 %s422, %s463
    %s465 = sadd.f32 %s421, %s461
    %s466 = sadd.f32 %s422, %s463
    %s467 = ssub.f32 %s465, %s462
    %s468 = ssub.f32 %s466, %s464
    %s469 = smul.f32 %s467, %s468
    %v470 = vstv %s465
    %v471 = vmin.f32 %v119, %v470
    %v472 = vstv %s462
    %v473 = vmax.f32 %v118, %v472
    %v474 = vsub.f32 %v471, %v473
    %v475 = vmax.f32 %v474, 0.0
    %v476 = vstv %s466
    %v477 = vmin.f32 %v119, %v476
    %v478 = vstv %s464
    %v479 = vmax.f32 %v118, %v478
    %v480 = vsub.f32 %v477, %v479
    %v481 = vmax.f32 %v480, 0.0
    %483 = vrot.lane.b32.xlu0 %v481, 127
    %v484 = vpop.permute.xlu0 %483
    %v486 = vmul.f32 %v475, %v484
    %v487 = vstv %s469
    %v488 = vadd.f32 %v125, %v487
    %v489 = vsub.f32 %v488, %v486
    %v490 = vrcp.pop %v489
    %v491 = vmul.f32 %v489, %v490
    %v492 = vsub.f32 1.0, %v491
    %v493 = vmul.f32 %v490, %v492
    %v494 = vadd.f32 %v490, %v493
    %vm495 = vweird.f32 %v489
    %vm496 = vweird.f32 %v490
    %vm497 = vmor %vm495, %vm496
    %v498 = vsel %vm497, %v490, %v494
    %v499 = vand.u32 2147483647, %v489
    %vm500 = vcmp.eq.f32.partialorder %v499, 8.507059e+37
    %v501 = vand.u32 %v489, 2147483648
    %v502 = vor.u32 1.1754944e-38, %v501
    %v503 = vsel %vm500, %v502, %v498
    %v504 = vmul.f32 %v486, %v503
    %v505 = vmax.f32 %v119, %v470
    %v506 = vmin.f32 %v118, %v472
    %v507 = vsub.f32 %v505, %v506
    %v508 = vmax.f32 %v119, %v476
    %v509 = vmin.f32 %v118, %v478
    %v510 = vsub.f32 %v508, %v509
    %512 = vrot.lane.b32.xlu0 %v510, 127
    %v513 = vpop.permute.xlu0 %512
    %v515 = vmul.f32 %v507, %v513
    %v516 = vsub.f32 %v515, %v489
    %v517 = vrcp.pop %v515
    %v518 = vmul.f32 %v515, %v517
    %v519 = vsub.f32 1.0, %v518
    %v520 = vmul.f32 %v517, %v519
    %v521 = vadd.f32 %v517, %v520
    %vm522 = vweird.f32 %v515
    %vm523 = vweird.f32 %v517
    %vm524 = vmor %vm522, %vm523
    %v525 = vsel %vm524, %v517, %v521
    %v526 = vand.u32 2147483647, %v515
    %vm527 = vcmp.eq.f32.partialorder %v526, 8.507059e+37
    %v528 = vand.u32 %v515, 2147483648
    %v529 = vor.u32 1.1754944e-38, %v528
    %v530 = vsel %vm527, %v529, %v525
    %v531 = vmul.f32 %v516, %v530
    %v532 = vsub.f32 %v504, %v531
    %v533 = vmul.f32 %v460, 5.0
    %v534 = vadd.f32 %v533, %v433
    %v535 = vsub.f32 0.0, %v532
    %v536 = vmul.f32 %v535, 2.0
    %v537 = vadd.f32 %v534, %v536
    %539 = vset.pattern.permute.xlu0 0
    %540 = vperm.xlu0 %539, %v537
    %v541 = vpop.permute.xlu0 %540
    %v543 = vmul.f32 %v80, %v541
    %v544 = vmul.f32 %v81, %v541
    %v545 = vmul.f32 %v82, %v541
    %v546 = vrot.slane %v543, 4
    %v547 = vadd.f32 %v543, %v546
    %v548 = vrot.slane %v547, 2
    %v549 = vadd.f32 %v547, %v548
    %v550 = vrot.slane %v549, 1
    %v551 = vadd.f32 %v549, %v550
    %v552 = vrot.slane %v544, 4
    %v553 = vadd.f32 %v544, %v552
    %v554 = vrot.slane %v553, 2
    %v555 = vadd.f32 %v553, %v554
    %v556 = vrot.slane %v555, 1
    %v557 = vadd.f32 %v555, %v556
    %v558 = vrot.slane %v545, 4
    %v559 = vadd.f32 %v545, %v558
    %v560 = vrot.slane %v559, 2
    %v561 = vadd.f32 %v559, %v560
    %v562 = vrot.slane %v561, 1
    %v563 = vadd.f32 %v561, %v562
    %v564 = vadd.f32 %v417, %v551
    %v565 = vadd.f32 %v418, %v557
    %v566 = vadd.f32 %v419, %v563
    %v567 = vsel %vm69, %v564, 1e+30
    %v568 = vsel %vm70, %v565, 1e+30
    %v569 = vsel %vm71, %v566, 1e+30
    %v570 = vmin.f32 %v567, %v568
    %v571 = vmin.f32 %v570, %v569
    %572 = vmin.xlane.f32.xlu0 %v571
    %v573 = vpop.xlane.xlu0 %572
    %s574 = vtos %v573
    %v575 = vstv %s574
    %vm576 = vcmp.le.f32.partialorder %v567, %v575
    %vm577 = vcmp.le.f32.partialorder %v568, %v575
    %vm578 = vcmp.le.f32.partialorder %v569, %v575
    %v579 = vsel %vm576, %v66, 384.0
    %v580 = vsel %vm577, %v67, 384.0
    %v581 = vsel %vm578, %v68, 384.0
    %v582 = vmin.f32 %v579, %v580
    %v583 = vmin.f32 %v582, %v581
    %584 = vmin.xlane.f32.xlu0 %v583
    %v585 = vpop.xlane.xlu0 %584
    %s586 = vtos %v585
    %v587 = vstv %s586
    %vm588 = vcmp.eq.f32.partialorder %v66, %v587
    %vm589 = vcmp.eq.f32.partialorder %v67, %v587
    %vm590 = vcmp.eq.f32.partialorder %v68, %v587
    %v591 = vsel %vm588, 1, 0
    %v592 = vsel %vm589, 1, 0
    %v593 = vsel %vm590, 1, 0
    %v594 = vcvt.s32.f32 %v591
    %v595 = vcvt.s32.f32 %v592
    %v596 = vcvt.s32.f32 %v593
    %v597 = vmul.f32 %v72, %v594
    %v598 = vmul.f32 %v73, %v595
    %v599 = vmul.f32 %v74, %v596
    %v600 = vadd.f32 %v597, %v598
    %v601 = vadd.f32 %v600, %v599
    %602 = vadd.xlane.f32.xlu0 %v601
    %v603 = vpop.xlane.xlu0 %602
    %vm604 = vcmp.gt.f32.partialorder %v603, 0.5
    %v605 = vsel %vm604, %v131, 4
    %v606 = vmul.f32 %v84, %v603
    %vm607 = vcmask 7168
    %v608 = vsel %vm607, %v606, 0.0
    %609 = vadd.xlane.f32.xlu0 %v608
    %v610 = vpop.xlane.xlu0 %609
    %v611 = vrot.slane %v610, 4
    %v612 = vadd.f32 %v610, %v611
    %v613 = vrot.slane %v612, 2
    %v614 = vadd.f32 %v612, %v613
    %v615 = vrot.slane %v614, 1
    %v616 = vadd.f32 %v614, %v615
    %s617 = vtos %v616
    %619 = vrot.lane.b32.xlu0 %v606, 127
    %v620 = vpop.permute.xlu0 %619
    %v622 = vsel %vm607, %v620, 0.0
    %623 = vadd.xlane.f32.xlu0 %v622
    %v624 = vpop.xlane.xlu0 %623
    %v625 = vrot.slane %v624, 4
    %v626 = vadd.f32 %v624, %v625
    %v627 = vrot.slane %v626, 2
    %v628 = vadd.f32 %v626, %v627
    %v629 = vrot.slane %v628, 1
    %v630 = vadd.f32 %v628, %v629
    %s631 = vtos %v630
    %632 = vrot.lane.b32.xlu0 %v606, 126
    %v633 = vpop.permute.xlu0 %632
    %v635 = vsel %vm607, %v633, 0.0
    %636 = vadd.xlane.f32.xlu0 %v635
    %v637 = vpop.xlane.xlu0 %636
    %v638 = vrot.slane %v637, 4
    %v639 = vadd.f32 %v637, %v638
    %v640 = vrot.slane %v639, 2
    %v641 = vadd.f32 %v639, %v640
    %v642 = vrot.slane %v641, 1
    %v643 = vadd.f32 %v641, %v642
    %s644 = vtos %v643
    %645 = vrot.lane.b32.xlu0 %v606, 125
    %v646 = vpop.permute.xlu0 %645
    %v648 = vsel %vm607, %v646, 0.0
    %649 = vadd.xlane.f32.xlu0 %v648
    %v650 = vpop.xlane.xlu0 %649
    %v651 = vrot.slane %v650, 4
    %v652 = vadd.f32 %v650, %v651
    %v653 = vrot.slane %v652, 2
    %v654 = vadd.f32 %v652, %v653
    %v655 = vrot.slane %v654, 1
    %v656 = vadd.f32 %v654, %v655
    %s657 = vtos %v656
    %s658 = ssub.f32 %s617, %s127
    %s659 = sand.u32 2147483647, %s658
    %s660 = ssub.f32 %s631, %s128
    %s661 = sand.u32 2147483647, %s660
    %s662 = sadd.f32 %s659, %s661
    %s663 = ssub.f32 %s644, %s129
    %s664 = sand.u32 2147483647, %s663
    %s665 = sadd.f32 %s662, %s664
    %s666 = ssub.f32 %s657, %s130
    %s667 = sand.u32 2147483647, %s666
    %s668 = sadd.f32 %s665, %s667
    %s669 = sadd.f32 %s668, 0.0
    %s670 = smul.f32 %s644, 0.5
    %s671 = ssub.f32 %s617, %s670
    %s672 = smul.f32 %s657, 0.5
    %s673 = ssub.f32 %s631, %s672
    %s674 = sadd.f32 %s617, %s670
    %s675 = sadd.f32 %s631, %s672
    %s676 = smin.f32 %s674, %s171
    %s677 = smax.f32 %s671, %s168
    %s678 = ssub.f32 %s676, %s677
    %s679 = smax.f32 %s678, 0.0
    %s680 = smin.f32 %s675, %s172
    %s681 = smax.f32 %s673, %s170
    %s682 = ssub.f32 %s680, %s681
    %s683 = smax.f32 %s682, 0.0
    %s684 = smul.f32 %s679, %s683
    %s685 = ssub.f32 %s674, %s671
    %s686 = ssub.f32 %s675, %s673
    %s687 = smul.f32 %s685, %s686
    %s688 = sadd.f32 %s687, %s175
    %s689 = ssub.f32 %s688, %s684
    %v690 = vstv %s689
    %v691 = vrcp.pop %v690
    %v692 = vmul.f32 %v690, %v691
    %v693 = vsub.f32 1.0, %v692
    %v694 = vmul.f32 %v691, %v693
    %v695 = vadd.f32 %v691, %v694
    %vm696 = vweird.f32 %v690
    %vm697 = vweird.f32 %v691
    %vm698 = vmor %vm696, %vm697
    %v699 = vsel %vm698, %v691, %v695
    %v700 = vand.u32 2147483647, %v690
    %vm701 = vcmp.eq.f32.partialorder %v700, 8.507059e+37
    %v702 = vand.u32 %v690, 2147483648
    %v703 = vor.u32 1.1754944e-38, %v702
    %v704 = vsel %vm701, %v703, %v699
    %s705 = vtos %v704
    %s706 = smul.f32 %s684, %s705
    %s707 = smax.f32 %s674, %s171
    %s708 = smin.f32 %s671, %s168
    %s709 = ssub.f32 %s707, %s708
    %s710 = smax.f32 %s675, %s172
    %s711 = smin.f32 %s673, %s170
    %s712 = ssub.f32 %s710, %s711
    %s713 = smul.f32 %s709, %s712
    %s714 = ssub.f32 %s713, %s689
    %v715 = vstv %s713
    %v716 = vrcp.pop %v715
    %v717 = vmul.f32 %v715, %v716
    %v718 = vsub.f32 1.0, %v717
    %v719 = vmul.f32 %v716, %v718
    %v720 = vadd.f32 %v716, %v719
    %vm721 = vweird.f32 %v715
    %vm722 = vweird.f32 %v716
    %vm723 = vmor %vm721, %vm722
    %v724 = vsel %vm723, %v716, %v720
    %v725 = vand.u32 2147483647, %v715
    %vm726 = vcmp.eq.f32.partialorder %v725, 8.507059e+37
    %v727 = vand.u32 %v715, 2147483648
    %v728 = vor.u32 1.1754944e-38, %v727
    %v729 = vsel %vm726, %v728, %v724
    %s730 = vtos %v729
    %s731 = smul.f32 %s714, %s730
    %s732 = ssub.f32 %s706, %s731
    %s733 = ssub.f32 1.0, %s732
    %s734 = sadd.f32 %s733, 0.0
    %v735 = vmul.f32 %v76, %v594
    %v736 = vmul.f32 %v77, %v595
    %v737 = vmul.f32 %v78, %v596
    %v738 = vadd.f32 %v735, %v736
    %v739 = vadd.f32 %v738, %v737
    %740 = vadd.xlane.f32.xlu0 %v739
    %v741 = vpop.xlane.xlu0 %740
    %vm742 = vcmp.gt.f32.partialorder %v741, 0.5
    %v743 = vsel %vm742, %v278, %v605
    %v744 = vmul.f32 %v84, %v741
    %v745 = vsel %vm607, %v744, 0.0
    %746 = vadd.xlane.f32.xlu0 %v745
    %v747 = vpop.xlane.xlu0 %746
    %v748 = vrot.slane %v747, 4
    %v749 = vadd.f32 %v747, %v748
    %v750 = vrot.slane %v749, 2
    %v751 = vadd.f32 %v749, %v750
    %v752 = vrot.slane %v751, 1
    %v753 = vadd.f32 %v751, %v752
    %s754 = vtos %v753
    %756 = vrot.lane.b32.xlu0 %v744, 127
    %v757 = vpop.permute.xlu0 %756
    %v759 = vsel %vm607, %v757, 0.0
    %760 = vadd.xlane.f32.xlu0 %v759
    %v761 = vpop.xlane.xlu0 %760
    %v762 = vrot.slane %v761, 4
    %v763 = vadd.f32 %v761, %v762
    %v764 = vrot.slane %v763, 2
    %v765 = vadd.f32 %v763, %v764
    %v766 = vrot.slane %v765, 1
    %v767 = vadd.f32 %v765, %v766
    %s768 = vtos %v767
    %769 = vrot.lane.b32.xlu0 %v744, 126
    %v770 = vpop.permute.xlu0 %769
    %v772 = vsel %vm607, %v770, 0.0
    %773 = vadd.xlane.f32.xlu0 %v772
    %v774 = vpop.xlane.xlu0 %773
    %v775 = vrot.slane %v774, 4
    %v776 = vadd.f32 %v774, %v775
    %v777 = vrot.slane %v776, 2
    %v778 = vadd.f32 %v776, %v777
    %v779 = vrot.slane %v778, 1
    %v780 = vadd.f32 %v778, %v779
    %s781 = vtos %v780
    %782 = vrot.lane.b32.xlu0 %v744, 125
    %v783 = vpop.permute.xlu0 %782
    %v785 = vsel %vm607, %v783, 0.0
    %786 = vadd.xlane.f32.xlu0 %v785
    %v787 = vpop.xlane.xlu0 %786
    %v788 = vrot.slane %v787, 4
    %v789 = vadd.f32 %v787, %v788
    %v790 = vrot.slane %v789, 2
    %v791 = vadd.f32 %v789, %v790
    %v792 = vrot.slane %v791, 1
    %v793 = vadd.f32 %v791, %v792
    %s794 = vtos %v793
    %s795 = ssub.f32 %s754, %s274
    %s796 = sand.u32 2147483647, %s795
    %s797 = ssub.f32 %s768, %s275
    %s798 = sand.u32 2147483647, %s797
    %s799 = sadd.f32 %s796, %s798
    %s800 = ssub.f32 %s781, %s276
    %s801 = sand.u32 2147483647, %s800
    %s802 = sadd.f32 %s799, %s801
    %s803 = ssub.f32 %s794, %s277
    %s804 = sand.u32 2147483647, %s803
    %s805 = sadd.f32 %s802, %s804
    %s806 = sadd.f32 %s669, %s805
    %s807 = smul.f32 %s781, 0.5
    %s808 = ssub.f32 %s754, %s807
    %s809 = smul.f32 %s794, 0.5
    %s810 = ssub.f32 %s768, %s809
    %s811 = sadd.f32 %s754, %s807
    %s812 = sadd.f32 %s768, %s809
    %s813 = smin.f32 %s811, %s318
    %s814 = smax.f32 %s808, %s315
    %s815 = ssub.f32 %s813, %s814
    %s816 = smax.f32 %s815, 0.0
    %s817 = smin.f32 %s812, %s319
    %s818 = smax.f32 %s810, %s317
    %s819 = ssub.f32 %s817, %s818
    %s820 = smax.f32 %s819, 0.0
    %s821 = smul.f32 %s816, %s820
    %s822 = ssub.f32 %s811, %s808
    %s823 = ssub.f32 %s812, %s810
    %s824 = smul.f32 %s822, %s823
    %s825 = sadd.f32 %s824, %s322
    %s826 = ssub.f32 %s825, %s821
    %v827 = vstv %s826
    %v828 = vrcp.pop %v827
    %v829 = vmul.f32 %v827, %v828
    %v830 = vsub.f32 1.0, %v829
    %v831 = vmul.f32 %v828, %v830
    %v832 = vadd.f32 %v828, %v831
    %vm833 = vweird.f32 %v827
    %vm834 = vweird.f32 %v828
    %vm835 = vmor %vm833, %vm834
    %v836 = vsel %vm835, %v828, %v832
    %v837 = vand.u32 2147483647, %v827
    %vm838 = vcmp.eq.f32.partialorder %v837, 8.507059e+37
    %v839 = vand.u32 %v827, 2147483648
    %v840 = vor.u32 1.1754944e-38, %v839
    %v841 = vsel %vm838, %v840, %v836
    %s842 = vtos %v841
    %s843 = smul.f32 %s821, %s842
    %s844 = smax.f32 %s811, %s318
    %s845 = smin.f32 %s808, %s315
    %s846 = ssub.f32 %s844, %s845
    %s847 = smax.f32 %s812, %s319
    %s848 = smin.f32 %s810, %s317
    %s849 = ssub.f32 %s847, %s848
    %s850 = smul.f32 %s846, %s849
    %s851 = ssub.f32 %s850, %s826
    %v852 = vstv %s850
    %v853 = vrcp.pop %v852
    %v854 = vmul.f32 %v852, %v853
    %v855 = vsub.f32 1.0, %v854
    %v856 = vmul.f32 %v853, %v855
    %v857 = vadd.f32 %v853, %v856
    %vm858 = vweird.f32 %v852
    %vm859 = vweird.f32 %v853
    %vm860 = vmor %vm858, %vm859
    %v861 = vsel %vm860, %v853, %v857
    %v862 = vand.u32 2147483647, %v852
    %vm863 = vcmp.eq.f32.partialorder %v862, 8.507059e+37
    %v864 = vand.u32 %v852, 2147483648
    %v865 = vor.u32 1.1754944e-38, %v864
    %v866 = vsel %vm863, %v865, %v861
    %s867 = vtos %v866
    %s868 = smul.f32 %s851, %s867
    %s869 = ssub.f32 %s843, %s868
    %s870 = ssub.f32 1.0, %s869
    %s871 = sadd.f32 %s734, %s870
    %v872 = vmul.f32 %v80, %v594
    %v873 = vmul.f32 %v81, %v595
    %v874 = vmul.f32 %v82, %v596
    %v875 = vadd.f32 %v872, %v873
    %v876 = vadd.f32 %v875, %v874
    %877 = vadd.xlane.f32.xlu0 %v876
    %v878 = vpop.xlane.xlu0 %877
    %vm879 = vcmp.gt.f32.partialorder %v878, 0.5
    %v880 = vsel %vm879, %v425, %v743
    %v881 = vmul.f32 %v84, %v878
    %v882 = vsel %vm607, %v881, 0.0
    %883 = vadd.xlane.f32.xlu0 %v882
    %v884 = vpop.xlane.xlu0 %883
    %v885 = vrot.slane %v884, 4
    %v886 = vadd.f32 %v884, %v885
    %v887 = vrot.slane %v886, 2
    %v888 = vadd.f32 %v886, %v887
    %v889 = vrot.slane %v888, 1
    %v890 = vadd.f32 %v888, %v889
    %s891 = vtos %v890
    %893 = vrot.lane.b32.xlu0 %v881, 127
    %v894 = vpop.permute.xlu0 %893
    %v896 = vsel %vm607, %v894, 0.0
    %897 = vadd.xlane.f32.xlu0 %v896
    %v898 = vpop.xlane.xlu0 %897
    %v899 = vrot.slane %v898, 4
    %v900 = vadd.f32 %v898, %v899
    %v901 = vrot.slane %v900, 2
    %v902 = vadd.f32 %v900, %v901
    %v903 = vrot.slane %v902, 1
    %v904 = vadd.f32 %v902, %v903
    %s905 = vtos %v904
    %906 = vrot.lane.b32.xlu0 %v881, 126
    %v907 = vpop.permute.xlu0 %906
    %v909 = vsel %vm607, %v907, 0.0
    %910 = vadd.xlane.f32.xlu0 %v909
    %v911 = vpop.xlane.xlu0 %910
    %v912 = vrot.slane %v911, 4
    %v913 = vadd.f32 %v911, %v912
    %v914 = vrot.slane %v913, 2
    %v915 = vadd.f32 %v913, %v914
    %v916 = vrot.slane %v915, 1
    %v917 = vadd.f32 %v915, %v916
    %s918 = vtos %v917
    %919 = vrot.lane.b32.xlu0 %v881, 125
    %v920 = vpop.permute.xlu0 %919
    %v922 = vsel %vm607, %v920, 0.0
    %923 = vadd.xlane.f32.xlu0 %v922
    %v924 = vpop.xlane.xlu0 %923
    %v925 = vrot.slane %v924, 4
    %v926 = vadd.f32 %v924, %v925
    %v927 = vrot.slane %v926, 2
    %v928 = vadd.f32 %v926, %v927
    %v929 = vrot.slane %v928, 1
    %v930 = vadd.f32 %v928, %v929
    %s931 = vtos %v930
    %s932 = ssub.f32 %s891, %s421
    %s933 = sand.u32 2147483647, %s932
    %s934 = ssub.f32 %s905, %s422
    %s935 = sand.u32 2147483647, %s934
    %s936 = sadd.f32 %s933, %s935
    %s937 = ssub.f32 %s918, %s423
    %s938 = sand.u32 2147483647, %s937
    %s939 = sadd.f32 %s936, %s938
    %s940 = ssub.f32 %s931, %s424
    %s941 = sand.u32 2147483647, %s940
    %s942 = sadd.f32 %s939, %s941
    %s943 = sadd.f32 %s806, %s942
    %s944 = smul.f32 %s918, 0.5
    %s945 = ssub.f32 %s891, %s944
    %s946 = smul.f32 %s931, 0.5
    %s947 = ssub.f32 %s905, %s946
    %s948 = sadd.f32 %s891, %s944
    %s949 = sadd.f32 %s905, %s946
    %s950 = smin.f32 %s948, %s465
    %s951 = smax.f32 %s945, %s462
    %s952 = ssub.f32 %s950, %s951
    %s953 = smax.f32 %s952, 0.0
    %s954 = smin.f32 %s949, %s466
    %s955 = smax.f32 %s947, %s464
    %s956 = ssub.f32 %s954, %s955
    %s957 = smax.f32 %s956, 0.0
    %s958 = smul.f32 %s953, %s957
    %s959 = ssub.f32 %s948, %s945
    %s960 = ssub.f32 %s949, %s947
    %s961 = smul.f32 %s959, %s960
    %s962 = sadd.f32 %s961, %s469
    %s963 = ssub.f32 %s962, %s958
    %v964 = vstv %s963
    %v965 = vrcp.pop %v964
    %v966 = vmul.f32 %v964, %v965
    %v967 = vsub.f32 1.0, %v966
    %v968 = vmul.f32 %v965, %v967
    %v969 = vadd.f32 %v965, %v968
    %vm970 = vweird.f32 %v964
    %vm971 = vweird.f32 %v965
    %vm972 = vmor %vm970, %vm971
    %v973 = vsel %vm972, %v965, %v969
    %v974 = vand.u32 2147483647, %v964
    %vm975 = vcmp.eq.f32.partialorder %v974, 8.507059e+37
    %v976 = vand.u32 %v964, 2147483648
    %v977 = vor.u32 1.1754944e-38, %v976
    %v978 = vsel %vm975, %v977, %v973
    %s979 = vtos %v978
    %s980 = smul.f32 %s958, %s979
    %s981 = smax.f32 %s948, %s465
    %s982 = smin.f32 %s945, %s462
    %s983 = ssub.f32 %s981, %s982
    %s984 = smax.f32 %s949, %s466
    %s985 = smin.f32 %s947, %s464
    %s986 = ssub.f32 %s984, %s985
    %s987 = smul.f32 %s983, %s986
    %s988 = ssub.f32 %s987, %s963
    %v989 = vstv %s987
    %v990 = vrcp.pop %v989
    %v991 = vmul.f32 %v989, %v990
    %v992 = vsub.f32 1.0, %v991
    %v993 = vmul.f32 %v990, %v992
    %v994 = vadd.f32 %v990, %v993
    %vm995 = vweird.f32 %v989
    %vm996 = vweird.f32 %v990
    %vm997 = vmor %vm995, %vm996
    %v998 = vsel %vm997, %v990, %v994
    %v999 = vand.u32 2147483647, %v989
    %vm1000 = vcmp.eq.f32.partialorder %v999, 8.507059e+37
    %v1001 = vand.u32 %v989, 2147483648
    %v1002 = vor.u32 1.1754944e-38, %v1001
    %v1003 = vsel %vm1000, %v1002, %v998
    %s1004 = vtos %v1003
    %s1005 = smul.f32 %s988, %s1004
    %s1006 = ssub.f32 %s980, %s1005
    %s1007 = ssub.f32 1.0, %s1006
    %s1008 = sadd.f32 %s871, %s1007
    %vm1009 = vcmp.eq.s32.totalorder %v63, %v880
    %v1010 = vsel %vm1009, 1, 0
    %v1011 = vcvt.s32.f32 %v1010
    %v1012 = vmul.f32 %v1011, %v112
    %v1013 = vsel %vm85, %v1012, 0.0
    %1014 = vadd.xlane.f32.xlu0 %v1013
    %v1015 = vpop.xlane.xlu0 %1014
    %v1016 = vsub.f32 0.0, %v1015
    %vm1017 = vcmp.eq.s32.totalorder %v880, 4
    %v1018 = vsel %vm1017, 0.1, 1.0
    %v1019 = vmul.f32 %v1016, %v1018
    %v1020 = vsel %vm607, %v1019, 0.0
    %1021 = vadd.xlane.f32.xlu0 %v1020
    %v1022 = vpop.xlane.xlu0 %1021
    %v1023 = vrot.slane %v1022, 4
    %v1024 = vadd.f32 %v1022, %v1023
    %v1025 = vrot.slane %v1024, 2
    %v1026 = vadd.f32 %v1024, %v1025
    %v1027 = vrot.slane %v1026, 1
    %v1028 = vadd.f32 %v1026, %v1027
    %s1029 = vtos %v1028
    %s1030 = sadd.f32 %s1029, 0.0
    %v1031 = vsel %vm607, %v1018, 0.0
    %1032 = vadd.xlane.f32.xlu0 %v1031
    %v1033 = vpop.xlane.xlu0 %1032
    %v1034 = vrot.slane %v1033, 4
    %v1035 = vadd.f32 %v1033, %v1034
    %v1036 = vrot.slane %v1035, 2
    %v1037 = vadd.f32 %v1035, %v1036
    %v1038 = vrot.slane %v1037, 1
    %v1039 = vadd.f32 %v1037, %v1038
    %s1040 = vtos %v1039
    %s1041 = sadd.f32 %s1040, 0.0
    %s1042 = scalar_lea.vmem %s2, 8
    %v1043 = vld [vmem:[%s1042] sm:$0xff]
    %s1044 = scalar_lea.vmem %s3, 8
    %v1045 = vld [vmem:[%s1044] sm:$0xff]
    %v1046 = vsel %vm85, %v1043, -inf
    %1047 = vmax.xlane.f32.xlu0 %v1046
    %v1048 = vpop.xlane.xlu0 %1047
    %v1049 = vsub.f32 %v1043, %v1048
    %v1050 = vmul.f32 %v1049, 1.442695
    %v1051 = vpow.pop %v1050
    %v1052 = vsel %vm85, %v1051, 0.0
    %1053 = vadd.xlane.f32.xlu0 %v1052
    %v1054 = vpop.xlane.xlu0 %1053
    %v1055 = vrcp.pop %v1054
    %v1056 = vmul.f32 %v1054, %v1055
    %v1057 = vsub.f32 1.0, %v1056
    %v1058 = vmul.f32 %v1055, %v1057
    %v1059 = vadd.f32 %v1055, %v1058
    %vm1060 = vweird.f32 %v1054
    %vm1061 = vweird.f32 %v1055
    %vm1062 = vmor %vm1060, %vm1061
    %v1063 = vsel %vm1062, %v1055, %v1059
    %v1064 = vand.u32 2147483647, %v1054
    %vm1065 = vcmp.eq.f32.partialorder %v1064, 8.507059e+37
    %v1066 = vand.u32 %v1054, 2147483648
    %v1067 = vor.u32 1.1754944e-38, %v1066
    %v1068 = vsel %vm1065, %v1067, %v1063
    %v1069 = vmul.f32 %v1051, %v1068
    %v1070 = vlog2.pop %v1054
    %v1071 = vmul.f32 %v1070, 0.6931472
    %v1072 = vsub.f32 %v1049, %v1071
    %v1073 = vmul.f32 %v1045, 0.5
    %1075 = vrot.lane.b32.xlu0 %v1073, 126
    %v1076 = vpop.permute.xlu0 %1075
    %v1078 = vsub.f32 %v1045, %v1076
    %v1079 = vadd.f32 %v1045, %v1076
    %v1080 = vsub.f32 %v1079, %v1078
    %1082 = vrot.lane.b32.xlu0 %v1080, 127
    %v1083 = vpop.permute.xlu0 %1082
    %v1085 = vmul.f32 %v1080, %v1083
    %s1086 = sld [smem:[#allocation2 + $0x80]]
    %s1087 = sld [smem:[#allocation6 + $0x80]]
    %s1088 = sld [smem:[#allocation6 + $0x81]]
    %s1089 = sld [smem:[#allocation6 + $0x82]]
    %s1090 = sld [smem:[#allocation6 + $0x83]]
    %v1091 = vstv %s1086
    %vm1092 = vcmp.eq.s32.totalorder %v63, %v1091
    %v1093 = vsel %vm1092, 1, 0
    %v1094 = vcvt.s32.f32 %v1093
    %v1095 = vmul.f32 %v1069, %v1094
    %v1096 = vsel %vm85, %v1095, 0.0
    %1097 = vadd.xlane.f32.xlu0 %v1096
    %v1098 = vpop.xlane.xlu0 %1097
    %v1099 = vsub.f32 0.0, %v1098
    %v1100 = vstv %s1087
    %v1101 = vsub.f32 %v1045, %v1100
    %v1102 = vand.u32 2147483647, %v1101
    %v1103 = vstv %s1088
    %v1104 = vsub.f32 %v1045, %v1103
    %v1105 = vand.u32 2147483647, %v1104
    %1107 = vrot.lane.b32.xlu0 %v1105, 127
    %v1108 = vpop.permute.xlu0 %1107
    %v1110 = vadd.f32 %v1102, %v1108
    %v1111 = vstv %s1089
    %v1112 = vsub.f32 %v1045, %v1111
    %v1113 = vand.u32 2147483647, %v1112
    %1115 = vrot.lane.b32.xlu0 %v1113, 126
    %v1116 = vpop.permute.xlu0 %1115
    %v1118 = vadd.f32 %v1110, %v1116
    %v1119 = vstv %s1090
    %v1120 = vsub.f32 %v1045, %v1119
    %v1121 = vand.u32 2147483647, %v1120
    %1123 = vrot.lane.b32.xlu0 %v1121, 125
    %v1124 = vpop.permute.xlu0 %1123
    %v1126 = vadd.f32 %v1118, %v1124
    %s1127 = smul.f32 %s1089, 0.5
    %s1128 = ssub.f32 %s1087, %s1127
    %s1129 = smul.f32 %s1090, 0.5
    %s1130 = ssub.f32 %s1088, %s1129
    %s1131 = sadd.f32 %s1087, %s1127
    %s1132 = sadd.f32 %s1088, %s1129
    %s1133 = ssub.f32 %s1131, %s1128
    %s1134 = ssub.f32 %s1132, %s1130
    %s1135 = smul.f32 %s1133, %s1134
    %v1136 = vstv %s1131
    %v1137 = vmin.f32 %v1079, %v1136
    %v1138 = vstv %s1128
    %v1139 = vmax.f32 %v1078, %v1138
    %v1140 = vsub.f32 %v1137, %v1139
    %v1141 = vmax.f32 %v1140, 0.0
    %v1142 = vstv %s1132
    %v1143 = vmin.f32 %v1079, %v1142
    %v1144 = vstv %s1130
    %v1145 = vmax.f32 %v1078, %v1144
    %v1146 = vsub.f32 %v1143, %v1145
    %v1147 = vmax.f32 %v1146, 0.0
    %1149 = vrot.lane.b32.xlu0 %v1147, 127
    %v1150 = vpop.permute.xlu0 %1149
    %v1152 = vmul.f32 %v1141, %v1150
    %v1153 = vstv %s1135
    %v1154 = vadd.f32 %v1085, %v1153
    %v1155 = vsub.f32 %v1154, %v1152
    %v1156 = vrcp.pop %v1155
    %v1157 = vmul.f32 %v1155, %v1156
    %v1158 = vsub.f32 1.0, %v1157
    %v1159 = vmul.f32 %v1156, %v1158
    %v1160 = vadd.f32 %v1156, %v1159
    %vm1161 = vweird.f32 %v1155
    %vm1162 = vweird.f32 %v1156
    %vm1163 = vmor %vm1161, %vm1162
    %v1164 = vsel %vm1163, %v1156, %v1160
    %v1165 = vand.u32 2147483647, %v1155
    %vm1166 = vcmp.eq.f32.partialorder %v1165, 8.507059e+37
    %v1167 = vand.u32 %v1155, 2147483648
    %v1168 = vor.u32 1.1754944e-38, %v1167
    %v1169 = vsel %vm1166, %v1168, %v1164
    %v1170 = vmul.f32 %v1152, %v1169
    %v1171 = vmax.f32 %v1079, %v1136
    %v1172 = vmin.f32 %v1078, %v1138
    %v1173 = vsub.f32 %v1171, %v1172
    %v1174 = vmax.f32 %v1079, %v1142
    %v1175 = vmin.f32 %v1078, %v1144
    %v1176 = vsub.f32 %v1174, %v1175
    %1178 = vrot.lane.b32.xlu0 %v1176, 127
    %v1179 = vpop.permute.xlu0 %1178
    %v1181 = vmul.f32 %v1173, %v1179
    %v1182 = vsub.f32 %v1181, %v1155
    %v1183 = vrcp.pop %v1181
    %v1184 = vmul.f32 %v1181, %v1183
    %v1185 = vsub.f32 1.0, %v1184
    %v1186 = vmul.f32 %v1183, %v1185
    %v1187 = vadd.f32 %v1183, %v1186
    %vm1188 = vweird.f32 %v1181
    %vm1189 = vweird.f32 %v1183
    %vm1190 = vmor %vm1188, %vm1189
    %v1191 = vsel %vm1190, %v1183, %v1187
    %v1192 = vand.u32 2147483647, %v1181
    %vm1193 = vcmp.eq.f32.partialorder %v1192, 8.507059e+37
    %v1194 = vand.u32 %v1181, 2147483648
    %v1195 = vor.u32 1.1754944e-38, %v1194
    %v1196 = vsel %vm1193, %v1195, %v1191
    %v1197 = vmul.f32 %v1182, %v1196
    %v1198 = vsub.f32 %v1170, %v1197
    %v1199 = vmul.f32 %v1126, 5.0
    %v1200 = vadd.f32 %v1199, %v1099
    %v1201 = vsub.f32 0.0, %v1198
    %v1202 = vmul.f32 %v1201, 2.0
    %v1203 = vadd.f32 %v1200, %v1202
    %1205 = vset.pattern.permute.xlu0 0
    %1206 = vperm.xlu0 %1205, %v1203
    %v1207 = vpop.permute.xlu0 %1206
    %v1209 = vmul.f32 %v72, %v1207
    %v1210 = vmul.f32 %v73, %v1207
    %v1211 = vmul.f32 %v74, %v1207
    %v1212 = vrot.slane %v1209, 4
    %v1213 = vadd.f32 %v1209, %v1212
    %v1214 = vrot.slane %v1213, 2
    %v1215 = vadd.f32 %v1213, %v1214
    %v1216 = vrot.slane %v1215, 1
    %v1217 = vadd.f32 %v1215, %v1216
    %v1218 = vrot.slane %v1210, 4
    %v1219 = vadd.f32 %v1210, %v1218
    %v1220 = vrot.slane %v1219, 2
    %v1221 = vadd.f32 %v1219, %v1220
    %v1222 = vrot.slane %v1221, 1
    %v1223 = vadd.f32 %v1221, %v1222
    %v1224 = vrot.slane %v1211, 4
    %v1225 = vadd.f32 %v1211, %v1224
    %v1226 = vrot.slane %v1225, 2
    %v1227 = vadd.f32 %v1225, %v1226
    %v1228 = vrot.slane %v1227, 1
    %v1229 = vadd.f32 %v1227, %v1228
    %v1230 = vadd.f32 %v1217, 0.0
    %v1231 = vadd.f32 %v1223, 0.0
    %v1232 = vadd.f32 %v1229, 0.0
    %s1233 = sld [smem:[#allocation2 + $0x81]]
    %s1234 = sld [smem:[#allocation6 + $0x84]]
    %s1235 = sld [smem:[#allocation6 + $0x85]]
    %s1236 = sld [smem:[#allocation6 + $0x86]]
    %s1237 = sld [smem:[#allocation6 + $0x87]]
    %v1238 = vstv %s1233
    %vm1239 = vcmp.eq.s32.totalorder %v63, %v1238
    %v1240 = vsel %vm1239, 1, 0
    %v1241 = vcvt.s32.f32 %v1240
    %v1242 = vmul.f32 %v1069, %v1241
    %v1243 = vsel %vm85, %v1242, 0.0
    %1244 = vadd.xlane.f32.xlu0 %v1243
    %v1245 = vpop.xlane.xlu0 %1244
    %v1246 = vsub.f32 0.0, %v1245
    %v1247 = vstv %s1234
    %v1248 = vsub.f32 %v1045, %v1247
    %v1249 = vand.u32 2147483647, %v1248
    %v1250 = vstv %s1235
    %v1251 = vsub.f32 %v1045, %v1250
    %v1252 = vand.u32 2147483647, %v1251
    %1254 = vrot.lane.b32.xlu0 %v1252, 127
    %v1255 = vpop.permute.xlu0 %1254
    %v1257 = vadd.f32 %v1249, %v1255
    %v1258 = vstv %s1236
    %v1259 = vsub.f32 %v1045, %v1258
    %v1260 = vand.u32 2147483647, %v1259
    %1262 = vrot.lane.b32.xlu0 %v1260, 126
    %v1263 = vpop.permute.xlu0 %1262
    %v1265 = vadd.f32 %v1257, %v1263
    %v1266 = vstv %s1237
    %v1267 = vsub.f32 %v1045, %v1266
    %v1268 = vand.u32 2147483647, %v1267
    %1270 = vrot.lane.b32.xlu0 %v1268, 125
    %v1271 = vpop.permute.xlu0 %1270
    %v1273 = vadd.f32 %v1265, %v1271
    %s1274 = smul.f32 %s1236, 0.5
    %s1275 = ssub.f32 %s1234, %s1274
    %s1276 = smul.f32 %s1237, 0.5
    %s1277 = ssub.f32 %s1235, %s1276
    %s1278 = sadd.f32 %s1234, %s1274
    %s1279 = sadd.f32 %s1235, %s1276
    %s1280 = ssub.f32 %s1278, %s1275
    %s1281 = ssub.f32 %s1279, %s1277
    %s1282 = smul.f32 %s1280, %s1281
    %v1283 = vstv %s1278
    %v1284 = vmin.f32 %v1079, %v1283
    %v1285 = vstv %s1275
    %v1286 = vmax.f32 %v1078, %v1285
    %v1287 = vsub.f32 %v1284, %v1286
    %v1288 = vmax.f32 %v1287, 0.0
    %v1289 = vstv %s1279
    %v1290 = vmin.f32 %v1079, %v1289
    %v1291 = vstv %s1277
    %v1292 = vmax.f32 %v1078, %v1291
    %v1293 = vsub.f32 %v1290, %v1292
    %v1294 = vmax.f32 %v1293, 0.0
    %1296 = vrot.lane.b32.xlu0 %v1294, 127
    %v1297 = vpop.permute.xlu0 %1296
    %v1299 = vmul.f32 %v1288, %v1297
    %v1300 = vstv %s1282
    %v1301 = vadd.f32 %v1085, %v1300
    %v1302 = vsub.f32 %v1301, %v1299
    %v1303 = vrcp.pop %v1302
    %v1304 = vmul.f32 %v1302, %v1303
    %v1305 = vsub.f32 1.0, %v1304
    %v1306 = vmul.f32 %v1303, %v1305
    %v1307 = vadd.f32 %v1303, %v1306
    %vm1308 = vweird.f32 %v1302
    %vm1309 = vweird.f32 %v1303
    %vm1310 = vmor %vm1308, %vm1309
    %v1311 = vsel %vm1310, %v1303, %v1307
    %v1312 = vand.u32 2147483647, %v1302
    %vm1313 = vcmp.eq.f32.partialorder %v1312, 8.507059e+37
    %v1314 = vand.u32 %v1302, 2147483648
    %v1315 = vor.u32 1.1754944e-38, %v1314
    %v1316 = vsel %vm1313, %v1315, %v1311
    %v1317 = vmul.f32 %v1299, %v1316
    %v1318 = vmax.f32 %v1079, %v1283
    %v1319 = vmin.f32 %v1078, %v1285
    %v1320 = vsub.f32 %v1318, %v1319
    %v1321 = vmax.f32 %v1079, %v1289
    %v1322 = vmin.f32 %v1078, %v1291
    %v1323 = vsub.f32 %v1321, %v1322
    %1325 = vrot.lane.b32.xlu0 %v1323, 127
    %v1326 = vpop.permute.xlu0 %1325
    %v1328 = vmul.f32 %v1320, %v1326
    %v1329 = vsub.f32 %v1328, %v1302
    %v1330 = vrcp.pop %v1328
    %v1331 = vmul.f32 %v1328, %v1330
    %v1332 = vsub.f32 1.0, %v1331
    %v1333 = vmul.f32 %v1330, %v1332
    %v1334 = vadd.f32 %v1330, %v1333
    %vm1335 = vweird.f32 %v1328
    %vm1336 = vweird.f32 %v1330
    %vm1337 = vmor %vm1335, %vm1336
    %v1338 = vsel %vm1337, %v1330, %v1334
    %v1339 = vand.u32 2147483647, %v1328
    %vm1340 = vcmp.eq.f32.partialorder %v1339, 8.507059e+37
    %v1341 = vand.u32 %v1328, 2147483648
    %v1342 = vor.u32 1.1754944e-38, %v1341
    %v1343 = vsel %vm1340, %v1342, %v1338
    %v1344 = vmul.f32 %v1329, %v1343
    %v1345 = vsub.f32 %v1317, %v1344
    %v1346 = vmul.f32 %v1273, 5.0
    %v1347 = vadd.f32 %v1346, %v1246
    %v1348 = vsub.f32 0.0, %v1345
    %v1349 = vmul.f32 %v1348, 2.0
    %v1350 = vadd.f32 %v1347, %v1349
    %1352 = vset.pattern.permute.xlu0 0
    %1353 = vperm.xlu0 %1352, %v1350
    %v1354 = vpop.permute.xlu0 %1353
    %v1356 = vmul.f32 %v76, %v1354
    %v1357 = vmul.f32 %v77, %v1354
    %v1358 = vmul.f32 %v78, %v1354
    %v1359 = vrot.slane %v1356, 4
    %v1360 = vadd.f32 %v1356, %v1359
    %v1361 = vrot.slane %v1360, 2
    %v1362 = vadd.f32 %v1360, %v1361
    %v1363 = vrot.slane %v1362, 1
    %v1364 = vadd.f32 %v1362, %v1363
    %v1365 = vrot.slane %v1357, 4
    %v1366 = vadd.f32 %v1357, %v1365
    %v1367 = vrot.slane %v1366, 2
    %v1368 = vadd.f32 %v1366, %v1367
    %v1369 = vrot.slane %v1368, 1
    %v1370 = vadd.f32 %v1368, %v1369
    %v1371 = vrot.slane %v1358, 4
    %v1372 = vadd.f32 %v1358, %v1371
    %v1373 = vrot.slane %v1372, 2
    %v1374 = vadd.f32 %v1372, %v1373
    %v1375 = vrot.slane %v1374, 1
    %v1376 = vadd.f32 %v1374, %v1375
    %v1377 = vadd.f32 %v1230, %v1364
    %v1378 = vadd.f32 %v1231, %v1370
    %v1379 = vadd.f32 %v1232, %v1376
    %s1380 = sld [smem:[#allocation2 + $0x82]]
    %s1381 = sld [smem:[#allocation6 + $0x88]]
    %s1382 = sld [smem:[#allocation6 + $0x89]]
    %s1383 = sld [smem:[#allocation6 + $0x8a]]
    %s1384 = sld [smem:[#allocation6 + $0x8b]]
    %v1385 = vstv %s1380
    %vm1386 = vcmp.eq.s32.totalorder %v63, %v1385
    %v1387 = vsel %vm1386, 1, 0
    %v1388 = vcvt.s32.f32 %v1387
    %v1389 = vmul.f32 %v1069, %v1388
    %v1390 = vsel %vm85, %v1389, 0.0
    %1391 = vadd.xlane.f32.xlu0 %v1390
    %v1392 = vpop.xlane.xlu0 %1391
    %v1393 = vsub.f32 0.0, %v1392
    %v1394 = vstv %s1381
    %v1395 = vsub.f32 %v1045, %v1394
    %v1396 = vand.u32 2147483647, %v1395
    %v1397 = vstv %s1382
    %v1398 = vsub.f32 %v1045, %v1397
    %v1399 = vand.u32 2147483647, %v1398
    %1401 = vrot.lane.b32.xlu0 %v1399, 127
    %v1402 = vpop.permute.xlu0 %1401
    %v1404 = vadd.f32 %v1396, %v1402
    %v1405 = vstv %s1383
    %v1406 = vsub.f32 %v1045, %v1405
    %v1407 = vand.u32 2147483647, %v1406
    %1409 = vrot.lane.b32.xlu0 %v1407, 126
    %v1410 = vpop.permute.xlu0 %1409
    %v1412 = vadd.f32 %v1404, %v1410
    %v1413 = vstv %s1384
    %v1414 = vsub.f32 %v1045, %v1413
    %v1415 = vand.u32 2147483647, %v1414
    %1417 = vrot.lane.b32.xlu0 %v1415, 125
    %v1418 = vpop.permute.xlu0 %1417
    %v1420 = vadd.f32 %v1412, %v1418
    %s1421 = smul.f32 %s1383, 0.5
    %s1422 = ssub.f32 %s1381, %s1421
    %s1423 = smul.f32 %s1384, 0.5
    %s1424 = ssub.f32 %s1382, %s1423
    %s1425 = sadd.f32 %s1381, %s1421
    %s1426 = sadd.f32 %s1382, %s1423
    %s1427 = ssub.f32 %s1425, %s1422
    %s1428 = ssub.f32 %s1426, %s1424
    %s1429 = smul.f32 %s1427, %s1428
    %v1430 = vstv %s1425
    %v1431 = vmin.f32 %v1079, %v1430
    %v1432 = vstv %s1422
    %v1433 = vmax.f32 %v1078, %v1432
    %v1434 = vsub.f32 %v1431, %v1433
    %v1435 = vmax.f32 %v1434, 0.0
    %v1436 = vstv %s1426
    %v1437 = vmin.f32 %v1079, %v1436
    %v1438 = vstv %s1424
    %v1439 = vmax.f32 %v1078, %v1438
    %v1440 = vsub.f32 %v1437, %v1439
    %v1441 = vmax.f32 %v1440, 0.0
    %1443 = vrot.lane.b32.xlu0 %v1441, 127
    %v1444 = vpop.permute.xlu0 %1443
    %v1446 = vmul.f32 %v1435, %v1444
    %v1447 = vstv %s1429
    %v1448 = vadd.f32 %v1085, %v1447
    %v1449 = vsub.f32 %v1448, %v1446
    %v1450 = vrcp.pop %v1449
    %v1451 = vmul.f32 %v1449, %v1450
    %v1452 = vsub.f32 1.0, %v1451
    %v1453 = vmul.f32 %v1450, %v1452
    %v1454 = vadd.f32 %v1450, %v1453
    %vm1455 = vweird.f32 %v1449
    %vm1456 = vweird.f32 %v1450
    %vm1457 = vmor %vm1455, %vm1456
    %v1458 = vsel %vm1457, %v1450, %v1454
    %v1459 = vand.u32 2147483647, %v1449
    %vm1460 = vcmp.eq.f32.partialorder %v1459, 8.507059e+37
    %v1461 = vand.u32 %v1449, 2147483648
    %v1462 = vor.u32 1.1754944e-38, %v1461
    %v1463 = vsel %vm1460, %v1462, %v1458
    %v1464 = vmul.f32 %v1446, %v1463
    %v1465 = vmax.f32 %v1079, %v1430
    %v1466 = vmin.f32 %v1078, %v1432
    %v1467 = vsub.f32 %v1465, %v1466
    %v1468 = vmax.f32 %v1079, %v1436
    %v1469 = vmin.f32 %v1078, %v1438
    %v1470 = vsub.f32 %v1468, %v1469
    %1472 = vrot.lane.b32.xlu0 %v1470, 127
    %v1473 = vpop.permute.xlu0 %1472
    %v1475 = vmul.f32 %v1467, %v1473
    %v1476 = vsub.f32 %v1475, %v1449
    %v1477 = vrcp.pop %v1475
    %v1478 = vmul.f32 %v1475, %v1477
    %v1479 = vsub.f32 1.0, %v1478
    %v1480 = vmul.f32 %v1477, %v1479
    %v1481 = vadd.f32 %v1477, %v1480
    %vm1482 = vweird.f32 %v1475
    %vm1483 = vweird.f32 %v1477
    %vm1484 = vmor %vm1482, %vm1483
    %v1485 = vsel %vm1484, %v1477, %v1481
    %v1486 = vand.u32 2147483647, %v1475
    %vm1487 = vcmp.eq.f32.partialorder %v1486, 8.507059e+37
    %v1488 = vand.u32 %v1475, 2147483648
    %v1489 = vor.u32 1.1754944e-38, %v1488
    %v1490 = vsel %vm1487, %v1489, %v1485
    %v1491 = vmul.f32 %v1476, %v1490
    %v1492 = vsub.f32 %v1464, %v1491
    %v1493 = vmul.f32 %v1420, 5.0
    %v1494 = vadd.f32 %v1493, %v1393
    %v1495 = vsub.f32 0.0, %v1492
    %v1496 = vmul.f32 %v1495, 2.0
    %v1497 = vadd.f32 %v1494, %v1496
    %1499 = vset.pattern.permute.xlu0 0
    %1500 = vperm.xlu0 %1499, %v1497
    %v1501 = vpop.permute.xlu0 %1500
    %v1503 = vmul.f32 %v80, %v1501
    %v1504 = vmul.f32 %v81, %v1501
    %v1505 = vmul.f32 %v82, %v1501
    %v1506 = vrot.slane %v1503, 4
    %v1507 = vadd.f32 %v1503, %v1506
    %v1508 = vrot.slane %v1507, 2
    %v1509 = vadd.f32 %v1507, %v1508
    %v1510 = vrot.slane %v1509, 1
    %v1511 = vadd.f32 %v1509, %v1510
    %v1512 = vrot.slane %v1504, 4
    %v1513 = vadd.f32 %v1504, %v1512
    %v1514 = vrot.slane %v1513, 2
    %v1515 = vadd.f32 %v1513, %v1514
    %v1516 = vrot.slane %v1515, 1
    %v1517 = vadd.f32 %v1515, %v1516
    %v1518 = vrot.slane %v1505, 4
    %v1519 = vadd.f32 %v1505, %v1518
    %v1520 = vrot.slane %v1519, 2
    %v1521 = vadd.f32 %v1519, %v1520
    %v1522 = vrot.slane %v1521, 1
    %v1523 = vadd.f32 %v1521, %v1522
    %v1524 = vadd.f32 %v1377, %v1511
    %v1525 = vadd.f32 %v1378, %v1517
    %v1526 = vadd.f32 %v1379, %v1523
    %v1527 = vsel %vm69, %v1524, 1e+30
    %v1528 = vsel %vm70, %v1525, 1e+30
    %v1529 = vsel %vm71, %v1526, 1e+30
    %v1530 = vmin.f32 %v1527, %v1528
    %v1531 = vmin.f32 %v1530, %v1529
    %1532 = vmin.xlane.f32.xlu0 %v1531
    %v1533 = vpop.xlane.xlu0 %1532
    %s1534 = vtos %v1533
    %v1535 = vstv %s1534
    %vm1536 = vcmp.le.f32.partialorder %v1527, %v1535
    %vm1537 = vcmp.le.f32.partialorder %v1528, %v1535
    %vm1538 = vcmp.le.f32.partialorder %v1529, %v1535
    %v1539 = vsel %vm1536, %v66, 384.0
    %v1540 = vsel %vm1537, %v67, 384.0
    %v1541 = vsel %vm1538, %v68, 384.0
    %v1542 = vmin.f32 %v1539, %v1540
    %v1543 = vmin.f32 %v1542, %v1541
    %1544 = vmin.xlane.f32.xlu0 %v1543
    %v1545 = vpop.xlane.xlu0 %1544
    %s1546 = vtos %v1545
    %v1547 = vstv %s1546
    %vm1548 = vcmp.eq.f32.partialorder %v66, %v1547
    %vm1549 = vcmp.eq.f32.partialorder %v67, %v1547
    %vm1550 = vcmp.eq.f32.partialorder %v68, %v1547
    %v1551 = vsel %vm1548, 1, 0
    %v1552 = vsel %vm1549, 1, 0
    %v1553 = vsel %vm1550, 1, 0
    %v1554 = vcvt.s32.f32 %v1551
    %v1555 = vcvt.s32.f32 %v1552
    %v1556 = vcvt.s32.f32 %v1553
    %v1557 = vmul.f32 %v72, %v1554
    %v1558 = vmul.f32 %v73, %v1555
    %v1559 = vmul.f32 %v74, %v1556
    %v1560 = vadd.f32 %v1557, %v1558
    %v1561 = vadd.f32 %v1560, %v1559
    %1562 = vadd.xlane.f32.xlu0 %v1561
    %v1563 = vpop.xlane.xlu0 %1562
    %vm1564 = vcmp.gt.f32.partialorder %v1563, 0.5
    %v1565 = vsel %vm1564, %v1091, 4
    %v1566 = vmul.f32 %v1045, %v1563
    %v1567 = vsel %vm607, %v1566, 0.0
    %1568 = vadd.xlane.f32.xlu0 %v1567
    %v1569 = vpop.xlane.xlu0 %1568
    %v1570 = vrot.slane %v1569, 4
    %v1571 = vadd.f32 %v1569, %v1570
    %v1572 = vrot.slane %v1571, 2
    %v1573 = vadd.f32 %v1571, %v1572
    %v1574 = vrot.slane %v1573, 1
    %v1575 = vadd.f32 %v1573, %v1574
    %s1576 = vtos %v1575
    %1578 = vrot.lane.b32.xlu0 %v1566, 127
    %v1579 = vpop.permute.xlu0 %1578
    %v1581 = vsel %vm607, %v1579, 0.0
    %1582 = vadd.xlane.f32.xlu0 %v1581
    %v1583 = vpop.xlane.xlu0 %1582
    %v1584 = vrot.slane %v1583, 4
    %v1585 = vadd.f32 %v1583, %v1584
    %v1586 = vrot.slane %v1585, 2
    %v1587 = vadd.f32 %v1585, %v1586
    %v1588 = vrot.slane %v1587, 1
    %v1589 = vadd.f32 %v1587, %v1588
    %s1590 = vtos %v1589
    %1591 = vrot.lane.b32.xlu0 %v1566, 126
    %v1592 = vpop.permute.xlu0 %1591
    %v1594 = vsel %vm607, %v1592, 0.0
    %1595 = vadd.xlane.f32.xlu0 %v1594
    %v1596 = vpop.xlane.xlu0 %1595
    %v1597 = vrot.slane %v1596, 4
    %v1598 = vadd.f32 %v1596, %v1597
    %v1599 = vrot.slane %v1598, 2
    %v1600 = vadd.f32 %v1598, %v1599
    %v1601 = vrot.slane %v1600, 1
    %v1602 = vadd.f32 %v1600, %v1601
    %s1603 = vtos %v1602
    %1604 = vrot.lane.b32.xlu0 %v1566, 125
    %v1605 = vpop.permute.xlu0 %1604
    %v1607 = vsel %vm607, %v1605, 0.0
    %1608 = vadd.xlane.f32.xlu0 %v1607
    %v1609 = vpop.xlane.xlu0 %1608
    %v1610 = vrot.slane %v1609, 4
    %v1611 = vadd.f32 %v1609, %v1610
    %v1612 = vrot.slane %v1611, 2
    %v1613 = vadd.f32 %v1611, %v1612
    %v1614 = vrot.slane %v1613, 1
    %v1615 = vadd.f32 %v1613, %v1614
    %s1616 = vtos %v1615
    %s1617 = ssub.f32 %s1576, %s1087
    %s1618 = sand.u32 2147483647, %s1617
    %s1619 = ssub.f32 %s1590, %s1088
    %s1620 = sand.u32 2147483647, %s1619
    %s1621 = sadd.f32 %s1618, %s1620
    %s1622 = ssub.f32 %s1603, %s1089
    %s1623 = sand.u32 2147483647, %s1622
    %s1624 = sadd.f32 %s1621, %s1623
    %s1625 = ssub.f32 %s1616, %s1090
    %s1626 = sand.u32 2147483647, %s1625
    %s1627 = sadd.f32 %s1624, %s1626
    %s1628 = sadd.f32 %s943, %s1627
    %s1629 = smul.f32 %s1603, 0.5
    %s1630 = ssub.f32 %s1576, %s1629
    %s1631 = smul.f32 %s1616, 0.5
    %s1632 = ssub.f32 %s1590, %s1631
    %s1633 = sadd.f32 %s1576, %s1629
    %s1634 = sadd.f32 %s1590, %s1631
    %s1635 = smin.f32 %s1633, %s1131
    %s1636 = smax.f32 %s1630, %s1128
    %s1637 = ssub.f32 %s1635, %s1636
    %s1638 = smax.f32 %s1637, 0.0
    %s1639 = smin.f32 %s1634, %s1132
    %s1640 = smax.f32 %s1632, %s1130
    %s1641 = ssub.f32 %s1639, %s1640
    %s1642 = smax.f32 %s1641, 0.0
    %s1643 = smul.f32 %s1638, %s1642
    %s1644 = ssub.f32 %s1633, %s1630
    %s1645 = ssub.f32 %s1634, %s1632
    %s1646 = smul.f32 %s1644, %s1645
    %s1647 = sadd.f32 %s1646, %s1135
    %s1648 = ssub.f32 %s1647, %s1643
    %v1649 = vstv %s1648
    %v1650 = vrcp.pop %v1649
    %v1651 = vmul.f32 %v1649, %v1650
    %v1652 = vsub.f32 1.0, %v1651
    %v1653 = vmul.f32 %v1650, %v1652
    %v1654 = vadd.f32 %v1650, %v1653
    %vm1655 = vweird.f32 %v1649
    %vm1656 = vweird.f32 %v1650
    %vm1657 = vmor %vm1655, %vm1656
    %v1658 = vsel %vm1657, %v1650, %v1654
    %v1659 = vand.u32 2147483647, %v1649
    %vm1660 = vcmp.eq.f32.partialorder %v1659, 8.507059e+37
    %v1661 = vand.u32 %v1649, 2147483648
    %v1662 = vor.u32 1.1754944e-38, %v1661
    %v1663 = vsel %vm1660, %v1662, %v1658
    %s1664 = vtos %v1663
    %s1665 = smul.f32 %s1643, %s1664
    %s1666 = smax.f32 %s1633, %s1131
    %s1667 = smin.f32 %s1630, %s1128
    %s1668 = ssub.f32 %s1666, %s1667
    %s1669 = smax.f32 %s1634, %s1132
    %s1670 = smin.f32 %s1632, %s1130
    %s1671 = ssub.f32 %s1669, %s1670
    %s1672 = smul.f32 %s1668, %s1671
    %s1673 = ssub.f32 %s1672, %s1648
    %v1674 = vstv %s1672
    %v1675 = vrcp.pop %v1674
    %v1676 = vmul.f32 %v1674, %v1675
    %v1677 = vsub.f32 1.0, %v1676
    %v1678 = vmul.f32 %v1675, %v1677
    %v1679 = vadd.f32 %v1675, %v1678
    %vm1680 = vweird.f32 %v1674
    %vm1681 = vweird.f32 %v1675
    %vm1682 = vmor %vm1680, %vm1681
    %v1683 = vsel %vm1682, %v1675, %v1679
    %v1684 = vand.u32 2147483647, %v1674
    %vm1685 = vcmp.eq.f32.partialorder %v1684, 8.507059e+37
    %v1686 = vand.u32 %v1674, 2147483648
    %v1687 = vor.u32 1.1754944e-38, %v1686
    %v1688 = vsel %vm1685, %v1687, %v1683
    %s1689 = vtos %v1688
    %s1690 = smul.f32 %s1673, %s1689
    %s1691 = ssub.f32 %s1665, %s1690
    %s1692 = ssub.f32 1.0, %s1691
    %s1693 = sadd.f32 %s1008, %s1692
    %v1694 = vmul.f32 %v76, %v1554
    %v1695 = vmul.f32 %v77, %v1555
    %v1696 = vmul.f32 %v78, %v1556
    %v1697 = vadd.f32 %v1694, %v1695
    %v1698 = vadd.f32 %v1697, %v1696
    %1699 = vadd.xlane.f32.xlu0 %v1698
    %v1700 = vpop.xlane.xlu0 %1699
    %vm1701 = vcmp.gt.f32.partialorder %v1700, 0.5
    %v1702 = vsel %vm1701, %v1238, %v1565
    %v1703 = vmul.f32 %v1045, %v1700
    %v1704 = vsel %vm607, %v1703, 0.0
    %1705 = vadd.xlane.f32.xlu0 %v1704
    %v1706 = vpop.xlane.xlu0 %1705
    %v1707 = vrot.slane %v1706, 4
    %v1708 = vadd.f32 %v1706, %v1707
    %v1709 = vrot.slane %v1708, 2
    %v1710 = vadd.f32 %v1708, %v1709
    %v1711 = vrot.slane %v1710, 1
    %v1712 = vadd.f32 %v1710, %v1711
    %s1713 = vtos %v1712
    %1715 = vrot.lane.b32.xlu0 %v1703, 127
    %v1716 = vpop.permute.xlu0 %1715
    %v1718 = vsel %vm607, %v1716, 0.0
    %1719 = vadd.xlane.f32.xlu0 %v1718
    %v1720 = vpop.xlane.xlu0 %1719
    %v1721 = vrot.slane %v1720, 4
    %v1722 = vadd.f32 %v1720, %v1721
    %v1723 = vrot.slane %v1722, 2
    %v1724 = vadd.f32 %v1722, %v1723
    %v1725 = vrot.slane %v1724, 1
    %v1726 = vadd.f32 %v1724, %v1725
    %s1727 = vtos %v1726
    %1728 = vrot.lane.b32.xlu0 %v1703, 126
    %v1729 = vpop.permute.xlu0 %1728
    %v1731 = vsel %vm607, %v1729, 0.0
    %1732 = vadd.xlane.f32.xlu0 %v1731
    %v1733 = vpop.xlane.xlu0 %1732
    %v1734 = vrot.slane %v1733, 4
    %v1735 = vadd.f32 %v1733, %v1734
    %v1736 = vrot.slane %v1735, 2
    %v1737 = vadd.f32 %v1735, %v1736
    %v1738 = vrot.slane %v1737, 1
    %v1739 = vadd.f32 %v1737, %v1738
    %s1740 = vtos %v1739
    %1741 = vrot.lane.b32.xlu0 %v1703, 125
    %v1742 = vpop.permute.xlu0 %1741
    %v1744 = vsel %vm607, %v1742, 0.0
    %1745 = vadd.xlane.f32.xlu0 %v1744
    %v1746 = vpop.xlane.xlu0 %1745
    %v1747 = vrot.slane %v1746, 4
    %v1748 = vadd.f32 %v1746, %v1747
    %v1749 = vrot.slane %v1748, 2
    %v1750 = vadd.f32 %v1748, %v1749
    %v1751 = vrot.slane %v1750, 1
    %v1752 = vadd.f32 %v1750, %v1751
    %s1753 = vtos %v1752
    %s1754 = ssub.f32 %s1713, %s1234
    %s1755 = sand.u32 2147483647, %s1754
    %s1756 = ssub.f32 %s1727, %s1235
    %s1757 = sand.u32 2147483647, %s1756
    %s1758 = sadd.f32 %s1755, %s1757
    %s1759 = ssub.f32 %s1740, %s1236
    %s1760 = sand.u32 2147483647, %s1759
    %s1761 = sadd.f32 %s1758, %s1760
    %s1762 = ssub.f32 %s1753, %s1237
    %s1763 = sand.u32 2147483647, %s1762
    %s1764 = sadd.f32 %s1761, %s1763
    %s1765 = sadd.f32 %s1628, %s1764
    %s1766 = smul.f32 %s1740, 0.5
    %s1767 = ssub.f32 %s1713, %s1766
    %s1768 = smul.f32 %s1753, 0.5
    %s1769 = ssub.f32 %s1727, %s1768
    %s1770 = sadd.f32 %s1713, %s1766
    %s1771 = sadd.f32 %s1727, %s1768
    %s1772 = smin.f32 %s1770, %s1278
    %s1773 = smax.f32 %s1767, %s1275
    %s1774 = ssub.f32 %s1772, %s1773
    %s1775 = smax.f32 %s1774, 0.0
    %s1776 = smin.f32 %s1771, %s1279
    %s1777 = smax.f32 %s1769, %s1277
    %s1778 = ssub.f32 %s1776, %s1777
    %s1779 = smax.f32 %s1778, 0.0
    %s1780 = smul.f32 %s1775, %s1779
    %s1781 = ssub.f32 %s1770, %s1767
    %s1782 = ssub.f32 %s1771, %s1769
    %s1783 = smul.f32 %s1781, %s1782
    %s1784 = sadd.f32 %s1783, %s1282
    %s1785 = ssub.f32 %s1784, %s1780
    %v1786 = vstv %s1785
    %v1787 = vrcp.pop %v1786
    %v1788 = vmul.f32 %v1786, %v1787
    %v1789 = vsub.f32 1.0, %v1788
    %v1790 = vmul.f32 %v1787, %v1789
    %v1791 = vadd.f32 %v1787, %v1790
    %vm1792 = vweird.f32 %v1786
    %vm1793 = vweird.f32 %v1787
    %vm1794 = vmor %vm1792, %vm1793
    %v1795 = vsel %vm1794, %v1787, %v1791
    %v1796 = vand.u32 2147483647, %v1786
    %vm1797 = vcmp.eq.f32.partialorder %v1796, 8.507059e+37
    %v1798 = vand.u32 %v1786, 2147483648
    %v1799 = vor.u32 1.1754944e-38, %v1798
    %v1800 = vsel %vm1797, %v1799, %v1795
    %s1801 = vtos %v1800
    %s1802 = smul.f32 %s1780, %s1801
    %s1803 = smax.f32 %s1770, %s1278
    %s1804 = smin.f32 %s1767, %s1275
    %s1805 = ssub.f32 %s1803, %s1804
    %s1806 = smax.f32 %s1771, %s1279
    %s1807 = smin.f32 %s1769, %s1277
    %s1808 = ssub.f32 %s1806, %s1807
    %s1809 = smul.f32 %s1805, %s1808
    %s1810 = ssub.f32 %s1809, %s1785
    %v1811 = vstv %s1809
    %v1812 = vrcp.pop %v1811
    %v1813 = vmul.f32 %v1811, %v1812
    %v1814 = vsub.f32 1.0, %v1813
    %v1815 = vmul.f32 %v1812, %v1814
    %v1816 = vadd.f32 %v1812, %v1815
    %vm1817 = vweird.f32 %v1811
    %vm1818 = vweird.f32 %v1812
    %vm1819 = vmor %vm1817, %vm1818
    %v1820 = vsel %vm1819, %v1812, %v1816
    %v1821 = vand.u32 2147483647, %v1811
    %vm1822 = vcmp.eq.f32.partialorder %v1821, 8.507059e+37
    %v1823 = vand.u32 %v1811, 2147483648
    %v1824 = vor.u32 1.1754944e-38, %v1823
    %v1825 = vsel %vm1822, %v1824, %v1820
    %s1826 = vtos %v1825
    %s1827 = smul.f32 %s1810, %s1826
    %s1828 = ssub.f32 %s1802, %s1827
    %s1829 = ssub.f32 1.0, %s1828
    %s1830 = sadd.f32 %s1693, %s1829
    %v1831 = vmul.f32 %v80, %v1554
    %v1832 = vmul.f32 %v81, %v1555
    %v1833 = vmul.f32 %v82, %v1556
    %v1834 = vadd.f32 %v1831, %v1832
    %v1835 = vadd.f32 %v1834, %v1833
    %1836 = vadd.xlane.f32.xlu0 %v1835
    %v1837 = vpop.xlane.xlu0 %1836
    %vm1838 = vcmp.gt.f32.partialorder %v1837, 0.5
    %v1839 = vsel %vm1838, %v1385, %v1702
    %v1840 = vmul.f32 %v1045, %v1837
    %v1841 = vsel %vm607, %v1840, 0.0
    %1842 = vadd.xlane.f32.xlu0 %v1841
    %v1843 = vpop.xlane.xlu0 %1842
    %v1844 = vrot.slane %v1843, 4
    %v1845 = vadd.f32 %v1843, %v1844
    %v1846 = vrot.slane %v1845, 2
    %v1847 = vadd.f32 %v1845, %v1846
    %v1848 = vrot.slane %v1847, 1
    %v1849 = vadd.f32 %v1847, %v1848
    %s1850 = vtos %v1849
    %1852 = vrot.lane.b32.xlu0 %v1840, 127
    %v1853 = vpop.permute.xlu0 %1852
    %v1855 = vsel %vm607, %v1853, 0.0
    %1856 = vadd.xlane.f32.xlu0 %v1855
    %v1857 = vpop.xlane.xlu0 %1856
    %v1858 = vrot.slane %v1857, 4
    %v1859 = vadd.f32 %v1857, %v1858
    %v1860 = vrot.slane %v1859, 2
    %v1861 = vadd.f32 %v1859, %v1860
    %v1862 = vrot.slane %v1861, 1
    %v1863 = vadd.f32 %v1861, %v1862
    %s1864 = vtos %v1863
    %1865 = vrot.lane.b32.xlu0 %v1840, 126
    %v1866 = vpop.permute.xlu0 %1865
    %v1868 = vsel %vm607, %v1866, 0.0
    %1869 = vadd.xlane.f32.xlu0 %v1868
    %v1870 = vpop.xlane.xlu0 %1869
    %v1871 = vrot.slane %v1870, 4
    %v1872 = vadd.f32 %v1870, %v1871
    %v1873 = vrot.slane %v1872, 2
    %v1874 = vadd.f32 %v1872, %v1873
    %v1875 = vrot.slane %v1874, 1
    %v1876 = vadd.f32 %v1874, %v1875
    %s1877 = vtos %v1876
    %1878 = vrot.lane.b32.xlu0 %v1840, 125
    %v1879 = vpop.permute.xlu0 %1878
    %v1881 = vsel %vm607, %v1879, 0.0
    %1882 = vadd.xlane.f32.xlu0 %v1881
    %v1883 = vpop.xlane.xlu0 %1882
    %v1884 = vrot.slane %v1883, 4
    %v1885 = vadd.f32 %v1883, %v1884
    %v1886 = vrot.slane %v1885, 2
    %v1887 = vadd.f32 %v1885, %v1886
    %v1888 = vrot.slane %v1887, 1
    %v1889 = vadd.f32 %v1887, %v1888
    %s1890 = vtos %v1889
    %s1891 = ssub.f32 %s1850, %s1381
    %s1892 = sand.u32 2147483647, %s1891
    %s1893 = ssub.f32 %s1864, %s1382
    %s1894 = sand.u32 2147483647, %s1893
    %s1895 = sadd.f32 %s1892, %s1894
    %s1896 = ssub.f32 %s1877, %s1383
    %s1897 = sand.u32 2147483647, %s1896
    %s1898 = sadd.f32 %s1895, %s1897
    %s1899 = ssub.f32 %s1890, %s1384
    %s1900 = sand.u32 2147483647, %s1899
    %s1901 = sadd.f32 %s1898, %s1900
    %s1902 = sadd.f32 %s1765, %s1901
    %s1903 = smul.f32 %s1877, 0.5
    %s1904 = ssub.f32 %s1850, %s1903
    %s1905 = smul.f32 %s1890, 0.5
    %s1906 = ssub.f32 %s1864, %s1905
    %s1907 = sadd.f32 %s1850, %s1903
    %s1908 = sadd.f32 %s1864, %s1905
    %s1909 = smin.f32 %s1907, %s1425
    %s1910 = smax.f32 %s1904, %s1422
    %s1911 = ssub.f32 %s1909, %s1910
    %s1912 = smax.f32 %s1911, 0.0
    %s1913 = smin.f32 %s1908, %s1426
    %s1914 = smax.f32 %s1906, %s1424
    %s1915 = ssub.f32 %s1913, %s1914
    %s1916 = smax.f32 %s1915, 0.0
    %s1917 = smul.f32 %s1912, %s1916
    %s1918 = ssub.f32 %s1907, %s1904
    %s1919 = ssub.f32 %s1908, %s1906
    %s1920 = smul.f32 %s1918, %s1919
    %s1921 = sadd.f32 %s1920, %s1429
    %s1922 = ssub.f32 %s1921, %s1917
    %v1923 = vstv %s1922
    %v1924 = vrcp.pop %v1923
    %v1925 = vmul.f32 %v1923, %v1924
    %v1926 = vsub.f32 1.0, %v1925
    %v1927 = vmul.f32 %v1924, %v1926
    %v1928 = vadd.f32 %v1924, %v1927
    %vm1929 = vweird.f32 %v1923
    %vm1930 = vweird.f32 %v1924
    %vm1931 = vmor %vm1929, %vm1930
    %v1932 = vsel %vm1931, %v1924, %v1928
    %v1933 = vand.u32 2147483647, %v1923
    %vm1934 = vcmp.eq.f32.partialorder %v1933, 8.507059e+37
    %v1935 = vand.u32 %v1923, 2147483648
    %v1936 = vor.u32 1.1754944e-38, %v1935
    %v1937 = vsel %vm1934, %v1936, %v1932
    %s1938 = vtos %v1937
    %s1939 = smul.f32 %s1917, %s1938
    %s1940 = smax.f32 %s1907, %s1425
    %s1941 = smin.f32 %s1904, %s1422
    %s1942 = ssub.f32 %s1940, %s1941
    %s1943 = smax.f32 %s1908, %s1426
    %s1944 = smin.f32 %s1906, %s1424
    %s1945 = ssub.f32 %s1943, %s1944
    %s1946 = smul.f32 %s1942, %s1945
    %s1947 = ssub.f32 %s1946, %s1922
    %v1948 = vstv %s1946
    %v1949 = vrcp.pop %v1948
    %v1950 = vmul.f32 %v1948, %v1949
    %v1951 = vsub.f32 1.0, %v1950
    %v1952 = vmul.f32 %v1949, %v1951
    %v1953 = vadd.f32 %v1949, %v1952
    %vm1954 = vweird.f32 %v1948
    %vm1955 = vweird.f32 %v1949
    %vm1956 = vmor %vm1954, %vm1955
    %v1957 = vsel %vm1956, %v1949, %v1953
    %v1958 = vand.u32 2147483647, %v1948
    %vm1959 = vcmp.eq.f32.partialorder %v1958, 8.507059e+37
    %v1960 = vand.u32 %v1948, 2147483648
    %v1961 = vor.u32 1.1754944e-38, %v1960
    %v1962 = vsel %vm1959, %v1961, %v1957
    %s1963 = vtos %v1962
    %s1964 = smul.f32 %s1947, %s1963
    %s1965 = ssub.f32 %s1939, %s1964
    %s1966 = ssub.f32 1.0, %s1965
    %s1967 = sadd.f32 %s1830, %s1966
    %vm1968 = vcmp.eq.s32.totalorder %v63, %v1839
    %v1969 = vsel %vm1968, 1, 0
    %v1970 = vcvt.s32.f32 %v1969
    %v1971 = vmul.f32 %v1970, %v1072
    %v1972 = vsel %vm85, %v1971, 0.0
    %1973 = vadd.xlane.f32.xlu0 %v1972
    %v1974 = vpop.xlane.xlu0 %1973
    %v1975 = vsub.f32 0.0, %v1974
    %vm1976 = vcmp.eq.s32.totalorder %v1839, 4
    %v1977 = vsel %vm1976, 0.1, 1.0
    %v1978 = vmul.f32 %v1975, %v1977
    %v1979 = vsel %vm607, %v1978, 0.0
    %1980 = vadd.xlane.f32.xlu0 %v1979
    %v1981 = vpop.xlane.xlu0 %1980
    %v1982 = vrot.slane %v1981, 4
    %v1983 = vadd.f32 %v1981, %v1982
    %v1984 = vrot.slane %v1983, 2
    %v1985 = vadd.f32 %v1983, %v1984
    %v1986 = vrot.slane %v1985, 1
    %v1987 = vadd.f32 %v1985, %v1986
    %s1988 = vtos %v1987
    %s1989 = sadd.f32 %s1030, %s1988
    %v1990 = vsel %vm607, %v1977, 0.0
    %1991 = vadd.xlane.f32.xlu0 %v1990
    %v1992 = vpop.xlane.xlu0 %1991
    %v1993 = vrot.slane %v1992, 4
    %v1994 = vadd.f32 %v1992, %v1993
    %v1995 = vrot.slane %v1994, 2
    %v1996 = vadd.f32 %v1994, %v1995
    %v1997 = vrot.slane %v1996, 1
    %v1998 = vadd.f32 %v1996, %v1997
    %s1999 = vtos %v1998
    %s2000 = sadd.f32 %s1041, %s1999
    %v2001 = vstv %s2000
    %v2002 = vrcp.pop %v2001
    %v2003 = vmul.f32 %v2001, %v2002
    %v2004 = vsub.f32 1.0, %v2003
    %v2005 = vmul.f32 %v2002, %v2004
    %v2006 = vadd.f32 %v2002, %v2005
    %vm2007 = vweird.f32 %v2001
    %vm2008 = vweird.f32 %v2002
    %vm2009 = vmor %vm2007, %vm2008
    %v2010 = vsel %vm2009, %v2002, %v2006
    %v2011 = vand.u32 2147483647, %v2001
    %vm2012 = vcmp.eq.f32.partialorder %v2011, 8.507059e+37
    %v2013 = vand.u32 %v2001, 2147483648
    %v2014 = vor.u32 1.1754944e-38, %v2013
    %v2015 = vsel %vm2012, %v2014, %v2010
    %s2016 = vtos %v2015
    %s2017 = smul.f32 %s1989, %s2016
    %s2018 = scalar_lea.smem [#allocation9], 0
    %2019 = sst [smem:[%s2018]] %s2017
    %v2020 = vrcp.pop 6.0
    %v2021 = vmul.f32 6.0, %v2020
    %v2022 = vsub.f32 1.0, %v2021
    %v2023 = vmul.f32 %v2020, %v2022
    %v2024 = vadd.f32 %v2020, %v2023
    %vm2025 = vweird.f32 %v2020
    %v2026 = vsel %vm2025, %v2020, %v2024
    %s2027 = vtos %v2026
    %s2028 = smul.f32 %s1902, %s2027
    %s2029 = scalar_lea.smem [#allocation9], 1
    %2030 = sst [smem:[%s2029]] %s2028
    %v2031 = vrcp.pop 6.0
    %v2032 = vmul.f32 6.0, %v2031
    %v2033 = vsub.f32 1.0, %v2032
    %v2034 = vmul.f32 %v2031, %v2033
    %v2035 = vadd.f32 %v2031, %v2034
    %vm2036 = vweird.f32 %v2031
    %v2037 = vsel %vm2036, %v2031, %v2035
    %s2038 = vtos %v2037
    %s2039 = smul.f32 %s1967, %s2038
    %s2040 = scalar_lea.smem [#allocation9], 2
    %2041 = sst [smem:[%s2040]] %s2039
    // Predicated region
    $region34: #{set_criterion_forward.1} parent=1 // pred_check
      _
    $region35: #{set_criterion_forward.1} parent=1 // pred_check_branch
      %2043 = sbr.rel (0) target = $region37
    $region36: #{set_criterion_forward.1} parent=1 // pred_region
      %2045 = vsyncadd [#allocation5], 0
      %s2047 = sshll.u32 %s5, 4
      %s2048 = int_to_ptr.vmem [resolvable:$true] %s2047
      %2050 = dma.smem_to_vmem [#allocation9], 16, %s2048, [#allocation5]
    $region37: #{set_criterion_forward.1} parent=1 // pred_fallthru
      _
    // Predicated region
    $region38: #{set_criterion_forward.1} parent=1 // pred_check
      _
    $region39: #{set_criterion_forward.1} parent=1 // pred_check_branch
      %2052 = sbr.rel (0) target = $region41
    $region40: #{set_criterion_forward.1} parent=1 // pred_region
      %2054 = dma.done [#allocation5], 16
    $region41: #{set_criterion_forward.1} parent=1 // pred_fallthru
      _
    %2055 = sfence
    %2056 = vsyncpa [#allocation3], 1
    %2057 = vsyncpa [#allocation4], 1
    %2058 = vsyncpa [#allocation7], 1
    %2059 = vsyncpa [#allocation5], 1

</llo_original>
